<compile_context>
chip_gen: v5e
topology: v5e:2x2
jax: 0.10.0
libtpu: 0.0.40
codegen_flags: <defaults>
</compile_context>

<pallas_src>
import jax
import jax.numpy as jnp
from jax.experimental import pallas as pl
from jax.experimental.pallas import tpu as pltpu

# ------------------------- small, deterministic config -------------------------
IMG = 224                       # forward() asserts im_size == 224
PATCH = 32                      # stride-32 patch stem (ResNet-50 stand-in -> 7x7 grid)
PATCH_DIM = PATCH * PATCH * 3   # 3072
N_PATCH = (IMG // PATCH) ** 2   # 49
P_PAD = 64                      # patches per image padded to a sublane/bf16-friendly count
HIDDEN = 32                     # encoder feature dim (stand-in for 2048)
PROJ_HIDDEN = 64
PROJ_DIM = 32
PRED_HIDDEN = 64
NUM_SEG = 16                    # config['data']['slic_segments']
MASK_DIM = 56
ROI_OUT = 7
ROI_SAMPLING = 2                # TODO(synk): torchvision roi_align uses adaptive (per-ROI) sampling_ratio=-1
LANE = 128                      # every feature dim is zero-padded to 128 lanes


# ================================ Pallas kernel ================================
def _fused_kernel(x_ref, m_ref,
                  ew_on, eb_on, ew_tg, eb_tg,
                  pw1_on, pb1_on, pw2_on, pb2_on,
                  pw1_tg, pb1_tg, pw2_tg, pb2_tg,
                  qw1, qb1, qw2, qb2,
                  q_ref, tz_ref):
    """Per image: encoder GEMM (online+target) -> maskpool -> proj MLP (both) ->
    predictor MLP (online).  All matmuls bf16 on the MXU with f32 accumulation,
    all intermediates stay in VMEM / vregs, all shapes 128-lane dense."""
    x = x_ref[0]                                        # (P_PAD, 3072) bf16 patches
    m_b = m_ref[0]                                      # (NUM_SEG, P_PAD) bf16 masks
    area = jnp.sum(m_b.astype(jnp.float32), axis=-1, keepdims=True)
    inv_area = 1.0 / (area + 1e-6)                      # exact (16x1; negligible cost)

    def branch(ew, eb, pw1, pb1, pw2, pb2):
        # patch embedding: relu(x @ W + b); padded lanes of W/b are zero.
        f = jnp.dot(x, ew[...], preferred_element_type=jnp.float32) + eb[...]
        f = jnp.maximum(f, 0.0)                         # (P_PAD, 128) f32
        # mask-weighted average pooling (padded patch rows have zero mask weight)
        pooled = jnp.dot(m_b, f.astype(jnp.bfloat16),
                         preferred_element_type=jnp.float32) * inv_area   # (16, 128)
        # projection MLP (2 layers, fused)
        h = jnp.dot(pooled.astype(jnp.bfloat16), pw1[...],
                    preferred_element_type=jnp.float32) + pb1[...]
        h = jnp.maximum(h, 0.0)
        z = jnp.dot(h.astype(jnp.bfloat16), pw2[...],
                    preferred_element_type=jnp.float32) + pb2[...]        # (16, 128)
        return z

    z_on = branch(ew_on, eb_on, pw1_on, pb1_on, pw2_on, pb2_on)
    z_tg = branch(ew_tg, eb_tg, pw1_tg, pb1_tg, pw2_tg, pb2_tg)
    tz_ref[0] = z_tg

    # predictor MLP on the online projection
    hq = jnp.dot(z_on.astype(jnp.bfloat16), qw1[...],
                 preferred_element_type=jnp.float32) + qb1[...]
    hq = jnp.maximum(hq, 0.0)
    q = jnp.dot(hq.astype(jnp.bfloat16), qw2[...],
                preferred_element_type=jnp.float32) + qb2[...]
    q_ref[0] = q
    # TODO(synk): the original projection/predictor MLPs contain BatchNorm1d; omitted.


def fused_forward(patches, masks, on_p, tg_p, pred_p):
    """patches: (2B, P_PAD, 3072) bf16; masks: (2B, NUM_SEG, P_PAD) bf16.
    Returns q (online predictor output) and target_z, both (2B, NUM_SEG, 128) f32,
    in natural (view1-then-view2) image order."""
    two_b = patches.shape[0]

    def batched(shape):
        return pl.BlockSpec((1,) + shape, lambda b: (b, 0, 0))

    def resident(shape):
        return pl.BlockSpec(shape, lambda b: (0, 0))

    in_specs = [
        batched((P_PAD, PATCH_DIM)),          # patches
        batched((NUM_SEG, P_PAD)),            # masks
        resident((PATCH_DIM, LANE)),          # enc_w online
        resident((1, LANE)),                  # enc_b online
        resident((PATCH_DIM, LANE)),          # enc_w target
        resident((1, LANE)),                  # enc_b target
        resident((LANE, LANE)), resident((1, LANE)),   # proj_w1 / b1 online
        resident((LANE, LANE)), resident((1, LANE)),   # proj_w2 / b2 online
        resident((LANE, LANE)), resident((1, LANE)),   # proj_w1 / b1 target
        resident((LANE, LANE)), resident((1, LANE)),   # proj_w2 / b2 target
        resident((LANE, LANE)), resident((1, LANE)),   # pred_w1 / b1
        resident((LANE, LANE)), resident((1, LANE)),   # pred_w2 / b2
    ]
    out_specs = (
        pl.BlockSpec((1, NUM_SEG, LANE), lambda b: (b, 0, 0)),   # q
        pl.BlockSpec((1, NUM_SEG, LANE), lambda b: (b, 0, 0)),   # target_z
    )
    out_shape = (
        jax.ShapeDtypeStruct((two_b, NUM_SEG, LANE), jnp.float32),
        jax.ShapeDtypeStruct((two_b, NUM_SEG, LANE), jnp.float32),
    )
    # TODO(synk): if HIDDEN is scaled to the real 2048-wide backbone, the resident
    # full-K/full-N weight blocks must be re-tiled and vmem_limit_bytes set for
    # v7x's 64 MiB VMEM.
    q, tz = pl.pallas_call(
        _fused_kernel,
        out_shape=out_shape,
        grid_spec=pltpu.PrefetchScalarGridSpec(
            num_scalar_prefetch=0,
            grid=(two_b,),                    # >= 2 -> both v7x TCs; real work per step
            in_specs=in_specs,
            out_specs=out_specs,
        ),
        compiler_params=pltpu.CompilerParams(dimension_semantics=("parallel",)),
    )(patches, masks,
      on_p['enc_w'], on_p['enc_b'], tg_p['enc_w'], tg_p['enc_b'],
      on_p['proj_w1'], on_p['proj_b1'], on_p['proj_w2'], on_p['proj_b2'],
      tg_p['proj_w1'], tg_p['proj_b1'], tg_p['proj_w2'], tg_p['proj_b2'],
      pred_p['pred_w1'], pred_p['pred_b1'], pred_p['pred_w2'], pred_p['pred_b2'])
    return q, tz


# ================================ JAX glue ================================
def nearest_resize_labels(mask, resize_to):
    """(B, H, W) int labels -> nearest-resized (B, h, w)."""
    B, H, W = mask.shape
    h, w = resize_to
    yi = (jnp.arange(h) * H) // h
    xi = (jnp.arange(w) * W) // w
    return mask[:, yi[:, None], xi[None, :]]


def _interp_matrix_1d(start, extent, out_size, sr, dim):
    """Bilinear sampling weights (averaged over sr sample points): (out_size, dim)."""
    bin_sz = extent / out_size
    oi = jnp.arange(out_size, dtype=jnp.float32)
    si = jnp.arange(sr, dtype=jnp.float32)
    coords = start + oi[:, None] * bin_sz + (si[None, :] + 0.5) * bin_sz / sr  # (out, sr)
    coords = jnp.clip(coords, 0.0, dim - 1.0)
    grid = jnp.arange(dim, dtype=jnp.float32)
    w = jnp.maximum(0.0, 1.0 - jnp.abs(coords[..., None] - grid))              # (out, sr, dim)
    return w.mean(axis=1)                                                      # (out, dim)


def _roi_weight_matrices(box, out_size=ROI_OUT, sr=ROI_SAMPLING, dim=MASK_DIM):
    # box = [x1, y1, x2, y2] in mask-pixel coords.
    x1, y1, x2, y2 = box[0], box[1], box[2], box[3]
    roi_w = jnp.maximum(x2 - x1, 1.0)
    roi_h = jnp.maximum(y2 - y1, 1.0)
    Ay = _interp_matrix_1d(y1, roi_h, out_size, sr, dim)   # (7, 56)
    Ax = _interp_matrix_1d(x1, roi_w, out_size, sr, dim)   # (7, 56)
    return Ay, Ax


_roi_weights_batched = jax.vmap(_roi_weight_matrices)


def roi_align(feat_bchw, boxes):
    """Separable roi_align: aligned[b,c] = Ay @ feat[b,c] @ Ax^T (bf16, MXU-friendly)."""
    Ay, Ax = _roi_weights_batched(boxes)                   # (B,7,56) f32
    Ay = Ay.astype(feat_bchw.dtype)
    Ax = Ax.astype(feat_bchw.dtype)
    return jnp.einsum('biy,bcyx,bjx->bcij', Ay, feat_bchw, Ax)


def handle_flip(aligned_mask, flip):
    flipped = aligned_mask[..., ::-1]
    cond = (flip == 1).reshape(-1, 1, 1, 1)
    return jnp.where(cond, flipped, aligned_mask)


def patchify(views_nchw):
    """(2B, 3, 224, 224) f32 -> (2B, P_PAD, 3072) bf16 patch matrix (shared by both
    branches).  Cast to bf16 before the layout shuffles so copies are half-size."""
    x = jnp.transpose(views_nchw.astype(jnp.bfloat16), (0, 2, 3, 1))   # NHWC bf16
    two_b = x.shape[0]
    gh = gw = IMG // PATCH
    p = x.reshape(two_b, gh, PATCH, gw, PATCH, 3).transpose(0, 1, 3, 2, 4, 5)
    p = p.reshape(two_b, gh * gw, PATCH_DIM)
    # TODO(synk): fold this patchify (reshape/transpose) into the Pallas kernel so
    # the image is read from HBM exactly once (NCHW block + row-permuted weights).
    return jnp.pad(p, ((0, 0), (0, P_PAD - gh * gw), (0, 0)))


# ================================ R2O forward ================================
def r2o_forward(online_prep, predictor_prep, online_raw, target_raw,
                view1, view2, mm, raw_image, roi_t, slic_mask, clustering_k=9999):
    im_size = view1.shape[-1]
    b = view1.shape[0]
    assert im_size == 224
    idx = jnp.array([1, 0, 3, 2], dtype=jnp.int32)

    if clustering_k < 9999:
        # TODO(synk): KMeans.fit_transform on FPN 'c4' features (iterative clustering)
        # has no clean Pallas equivalent; only the slic-only branch is implemented.
        raise NotImplementedError("kmeans branch not implemented")

    # nearest-resize the SLIC label map once; bf16 one-hot from it (no argmax round-trip).
    converted_idx = nearest_resize_labels(slic_mask, (MASK_DIM, MASK_DIM))     # (B,56,56)
    onehot = (converted_idx[:, None, :, :] ==
              jnp.arange(NUM_SEG, dtype=converted_idx.dtype)[None, :, None, None])
    converted_idx_b = onehot.astype(jnp.bfloat16)                              # (B,16,56,56)
    raw_masks = jnp.ones((b, 1, 0, 0), jnp.float32)
    raw_mask_target = converted_idx

    rois_1 = roi_t[:, 0, :4][:, idx] * MASK_DIM       # [x1,y1,x2,y2] in mask pixels
    rois_2 = roi_t[:, 1, :4][:, idx] * MASK_DIM
    flip_1 = roi_t[:, 0, 4]
    flip_2 = roi_t[:, 1, 4]

    aligned_1 = handle_flip(roi_align(converted_idx_b, rois_1), flip_1)
    aligned_2 = handle_flip(roi_align(converted_idx_b, rois_2), flip_2)
    mask_b, mask_c, h, w = aligned_1.shape
    aligned_1 = aligned_1.reshape(mask_b, mask_c, h * w)
    aligned_2 = aligned_2.reshape(mask_b, mask_c, h * w)

    # natural (view1-then-view2) pair order: identical pairing for online and target;
    # only the target OUTPUT row order differs (fixed up after the kernel).
    masks = jnp.concatenate([aligned_1, aligned_2], axis=0)        # (2B, 16, 49) bf16
    masks_padded = jnp.pad(masks, ((0, 0), (0, 0), (0, P_PAD - h * w)))

    num_segs = jnp.mean(
        jnp.sum(onehot.any(axis=(2, 3)), axis=1).astype(jnp.float32))

    # momentum update of the target network: k = mm * k + (1 - mm) * q.
    # The bf16 pad/cast of the prepared target weights is computed directly from the
    # EMA expression (fuses into one elementwise pass under jit; no extra f32 round-trip).
    new_target_raw = jax.tree_util.tree_map(
        lambda kk, qq: mm * kk + (1.0 - mm) * qq, target_raw, online_raw)
    target_prep = prepare_encoder_proj_params(new_target_raw)

    # patchify ONCE; shared by the online and target branches inside the fused kernel.
    patches = patchify(jnp.concatenate([view1, view2], axis=0))    # (2B, 64, 3072) bf16

    q128, tz128 = fused_forward(patches, masks_padded,
                                online_prep, target_prep, predictor_prep)

    # slice to the real projection width exactly once, at the very end.
    q = q128.reshape(2 * b * NUM_SEG, LANE)[:, :PROJ_DIM]
    # target branch in the reference consumes cat([view2, view1]): swap the halves.
    target_z = jnp.concatenate([tz128[b:], tz128[:b]], axis=0)
    target_z = target_z.reshape(2 * b * NUM_SEG, LANE)[:, :PROJ_DIM]

    pinds = None
    tinds = None
    outs = (q, target_z, pinds, tinds, masks.astype(jnp.float32), raw_masks,
            raw_mask_target, num_segs, converted_idx)
    return outs, new_target_raw


# ============================== param init / prep ==============================
def init_encoder_proj_params(key):
    ks = jax.random.split(key, 3)
    w = lambda k, shape, s: s * jax.random.normal(k, shape, dtype=jnp.float32)
    return {
        'enc_w': w(ks[0], (PATCH_DIM, HIDDEN), 0.02),
        'enc_b': jnp.zeros((HIDDEN,), jnp.float32),
        'proj_w1': w(ks[1], (HIDDEN, PROJ_HIDDEN), 0.1),
        'proj_b1': jnp.zeros((PROJ_HIDDEN,), jnp.float32),
        'proj_w2': w(ks[2], (PROJ_HIDDEN, PROJ_DIM), 0.1),
        'proj_b2': jnp.zeros((PROJ_DIM,), jnp.float32),
    }


def init_predictor_params(key):
    ks = jax.random.split(key, 2)
    w = lambda k, shape, s: s * jax.random.normal(k, shape, dtype=jnp.float32)
    return {
        'pred_w1': w(ks[0], (PROJ_DIM, PRED_HIDDEN), 0.1),
        'pred_b1': jnp.zeros((PRED_HIDDEN,), jnp.float32),
        'pred_w2': w(ks[1], (PRED_HIDDEN, PROJ_DIM), 0.1),
        'pred_b2': jnp.zeros((PROJ_DIM,), jnp.float32),
    }


def _pad_w(w, k_to, n_to):
    """Zero-pad a (K, N) weight to (k_to, n_to) and cast to bf16 (lane-dense MXU input)."""
    K, N = w.shape
    return jnp.pad(w.astype(jnp.bfloat16), ((0, k_to - K), (0, n_to - N)))


def _pad_b(bvec, n_to):
    N = bvec.shape[0]
    return jnp.pad(bvec.astype(jnp.float32), (0, n_to - N)).reshape(1, n_to)


def prepare_encoder_proj_params(raw):
    """Pad/cast encoder + projection weights: every feature dim -> 128 lanes, bf16."""
    return {
        'enc_w': _pad_w(raw['enc_w'], PATCH_DIM, LANE),     # (3072, 128) bf16
        'enc_b': _pad_b(raw['enc_b'], LANE),                # (1, 128) f32
        'proj_w1': _pad_w(raw['proj_w1'], LANE, LANE),      # (128, 128) bf16
        'proj_b1': _pad_b(raw['proj_b1'], LANE),
        'proj_w2': _pad_w(raw['proj_w2'], LANE, LANE),
        'proj_b2': _pad_b(raw['proj_b2'], LANE),
    }


def prepare_predictor_params(raw):
    return {
        'pred_w1': _pad_w(raw['pred_w1'], LANE, LANE),
        'pred_b1': _pad_b(raw['pred_b1'], LANE),
        'pred_w2': _pad_w(raw['pred_w2'], LANE, LANE),
        'pred_b2': _pad_b(raw['pred_b2'], LANE),
    }


# ================================== main ==================================
if __name__ == "__main__":
    B = 2
    key = jax.random.PRNGKey(0)
    k1, k2, k3, k4 = jax.random.split(key, 4)

    view1 = jax.random.normal(k1, (B, 3, IMG, IMG), jnp.float32)
    view2 = jax.random.normal(k2, (B, 3, IMG, IMG), jnp.float32)
    raw_image = jax.random.normal(k3, (B, 3, IMG, IMG), jnp.float32)

    # roi_t: (B, 2, 5) = two crops per image, columns [y1, x1, y2, x2, flip] (normalized)
    kr = jax.random.split(k4, 5)
    y1 = jax.random.uniform(kr[0], (B, 2, 1), minval=0.0, maxval=0.25)
    x1 = jax.random.uniform(kr[1], (B, 2, 1), minval=0.0, maxval=0.25)
    y2 = jax.random.uniform(kr[2], (B, 2, 1), minval=0.7, maxval=1.0)
    x2 = jax.random.uniform(kr[3], (B, 2, 1), minval=0.7, maxval=1.0)
    flip = jax.random.bernoulli(kr[4], 0.5, (B, 2, 1)).astype(jnp.float32)
    roi_t = jnp.concatenate([y1, x1, y2, x2, flip], axis=-1)

    # spatially coherent 16-segment "SLIC" label map on the raw 224x224 image
    ys = jnp.arange(IMG) // 56
    xs = jnp.arange(IMG) // 56
    slic_mask = jnp.broadcast_to((ys[:, None] * 4 + xs[None, :]).astype(jnp.int32),
                                 (B, IMG, IMG))

    online_raw = init_encoder_proj_params(jax.random.PRNGKey(1))
    # _initializes_target_network: target starts as an exact copy of online
    target_raw = jax.tree_util.tree_map(lambda a: a, online_raw)
    predictor_raw = init_predictor_params(jax.random.PRNGKey(2))

    # pad/cast online + predictor weights ONCE; target prep is fused with the EMA per step.
    online_prep = prepare_encoder_proj_params(online_raw)
    predictor_prep = prepare_predictor_params(predictor_raw)

    forward = jax.jit(r2o_forward)   # clustering_k stays at its (static) default 9999

    outs, target_raw = forward(
        online_prep, predictor_prep, online_raw, target_raw,
        view1, view2, 0.99, raw_image, roi_t, slic_mask)

    (q, target_z, pinds, tinds, masks, raw_masks,
     raw_mask_target, num_segs, converted_idx) = outs

    jax.block_until_ready((q, target_z, masks, raw_mask_target, num_segs, converted_idx))
    print("KERNEL_OK")
</pallas_src>

<mosaic_0001>
module attributes {stable_mosaic.version = 11 : i64} {
  func.func @_fused_kernel(%arg0: i32, %arg1: memref<1x64x3072xbf16, #tpu.memory_space<vmem>>, %arg2: memref<1x16x64xbf16, #tpu.memory_space<vmem>>, %arg3: memref<3072x128xbf16, #tpu.memory_space<vmem>>, %arg4: memref<1x128xf32, #tpu.memory_space<vmem>>, %arg5: memref<3072x128xbf16, #tpu.memory_space<vmem>>, %arg6: memref<1x128xf32, #tpu.memory_space<vmem>>, %arg7: memref<128x128xbf16, #tpu.memory_space<vmem>>, %arg8: memref<1x128xf32, #tpu.memory_space<vmem>>, %arg9: memref<128x128xbf16, #tpu.memory_space<vmem>>, %arg10: memref<1x128xf32, #tpu.memory_space<vmem>>, %arg11: memref<128x128xbf16, #tpu.memory_space<vmem>>, %arg12: memref<1x128xf32, #tpu.memory_space<vmem>>, %arg13: memref<128x128xbf16, #tpu.memory_space<vmem>>, %arg14: memref<1x128xf32, #tpu.memory_space<vmem>>, %arg15: memref<128x128xbf16, #tpu.memory_space<vmem>>, %arg16: memref<1x128xf32, #tpu.memory_space<vmem>>, %arg17: memref<128x128xbf16, #tpu.memory_space<vmem>>, %arg18: memref<1x128xf32, #tpu.memory_space<vmem>>, %arg19: memref<1x16x128xf32, #tpu.memory_space<vmem>>, %arg20: memref<1x16x128xf32, #tpu.memory_space<vmem>>) attributes {dimension_semantics = [#tpu.dimension_semantics<parallel>], iteration_bounds = array<i64: 4>, scalar_prefetch = 0 : i64, scratch_operands = 0 : i64, tpu.core_type = #tpu.core_type<tc>, window_params = [{transform_indices = @transform_0, window_bounds = array<i64: 1, 64, 3072>}, {transform_indices = @transform_1, window_bounds = array<i64: 1, 16, 64>}, {pipeline_mode = #tpu.pipeline_mode<synchronous>, transform_indices = @transform_2, window_bounds = array<i64: 3072, 128>}, {pipeline_mode = #tpu.pipeline_mode<synchronous>, transform_indices = @transform_3, window_bounds = array<i64: 1, 128>}, {pipeline_mode = #tpu.pipeline_mode<synchronous>, transform_indices = @transform_4, window_bounds = array<i64: 3072, 128>}, {pipeline_mode = #tpu.pipeline_mode<synchronous>, transform_indices = @transform_5, window_bounds = array<i64: 1, 128>}, {pipeline_mode = #tpu.pipeline_mode<synchronous>, transform_indices = @transform_6, window_bounds = array<i64: 128, 128>}, {pipeline_mode = #tpu.pipeline_mode<synchronous>, transform_indices = @transform_7, window_bounds = array<i64: 1, 128>}, {pipeline_mode = #tpu.pipeline_mode<synchronous>, transform_indices = @transform_8, window_bounds = array<i64: 128, 128>}, {pipeline_mode = #tpu.pipeline_mode<synchronous>, transform_indices = @transform_9, window_bounds = array<i64: 1, 128>}, {pipeline_mode = #tpu.pipeline_mode<synchronous>, transform_indices = @transform_10, window_bounds = array<i64: 128, 128>}, {pipeline_mode = #tpu.pipeline_mode<synchronous>, transform_indices = @transform_11, window_bounds = array<i64: 1, 128>}, {pipeline_mode = #tpu.pipeline_mode<synchronous>, transform_indices = @transform_12, window_bounds = array<i64: 128, 128>}, {pipeline_mode = #tpu.pipeline_mode<synchronous>, transform_indices = @transform_13, window_bounds = array<i64: 1, 128>}, {pipeline_mode = #tpu.pipeline_mode<synchronous>, transform_indices = @transform_14, window_bounds = array<i64: 128, 128>}, {pipeline_mode = #tpu.pipeline_mode<synchronous>, transform_indices = @transform_15, window_bounds = array<i64: 1, 128>}, {pipeline_mode = #tpu.pipeline_mode<synchronous>, transform_indices = @transform_16, window_bounds = array<i64: 128, 128>}, {pipeline_mode = #tpu.pipeline_mode<synchronous>, transform_indices = @transform_17, window_bounds = array<i64: 1, 128>}, {transform_indices = @transform_18, window_bounds = array<i64: 1, 16, 128>}, {transform_indices = @transform_19, window_bounds = array<i64: 1, 16, 128>}]} {
    %c0 = arith.constant 0 : index
    %c0_0 = arith.constant 0 : index
    %c0_1 = arith.constant 0 : index
    %0 = vector.load %arg1[%c0, %c0_0, %c0_1] : memref<1x64x3072xbf16, #tpu.memory_space<vmem>>, vector<1x64x3072xbf16>
    %1 = vector.shape_cast %0 : vector<1x64x3072xbf16> to vector<64x3072xbf16>
    %c0_2 = arith.constant 0 : index
    %c0_3 = arith.constant 0 : index
    %c0_4 = arith.constant 0 : index
    %2 = vector.load %arg2[%c0_2, %c0_3, %c0_4] : memref<1x16x64xbf16, #tpu.memory_space<vmem>>, vector<1x16x64xbf16>
    %3 = vector.shape_cast %2 : vector<1x16x64xbf16> to vector<16x64xbf16>
    %4 = arith.extf %3 : vector<16x64xbf16> to vector<16x64xf32>
    %cst = arith.constant dense<0.000000e+00> : vector<16xf32>
    %5 = vector.multi_reduction <add>, %4, %cst [1] : vector<16x64xf32> to vector<16xf32>
    %6 = vector.shape_cast %5 : vector<16xf32> to vector<16x1xf32>
    %cst_5 = arith.constant 9.99999997E-7 : f32
    %7 = vector.broadcast %cst_5 : f32 to vector<16x1xf32>
    %8 = arith.addf %6, %7 : vector<16x1xf32>
    %cst_6 = arith.constant 1.000000e+00 : f32
    %9 = vector.broadcast %cst_6 : f32 to vector<16x1xf32>
    %10 = arith.divf %9, %8 : vector<16x1xf32>
    %c0_7 = arith.constant 0 : index
    %c0_8 = arith.constant 0 : index
    %11 = vector.load %arg3[%c0_7, %c0_8] : memref<3072x128xbf16, #tpu.memory_space<vmem>>, vector<3072x128xbf16>
    %cst_9 = arith.constant dense<0.000000e+00> : vector<64x128xf32>
    %12 = tpu.matmul %1, %11, %cst_9 {dimension_numbers = #tpu.dot_dimension_numbers<[1], [0], [0], [1], [0, 0, 1, 1], [], []>} : vector<64x3072xbf16>, vector<3072x128xbf16>, vector<64x128xf32> -> vector<64x128xf32>
    %c0_10 = arith.constant 0 : index
    %c0_11 = arith.constant 0 : index
    %13 = vector.load %arg4[%c0_10, %c0_11] : memref<1x128xf32, #tpu.memory_space<vmem>>, vector<1x128xf32>
    %14 = vector.broadcast %13 : vector<1x128xf32> to vector<64x128xf32>
    %15 = arith.addf %12, %14 : vector<64x128xf32>
    %cst_12 = arith.constant 0.000000e+00 : f32
    %16 = vector.broadcast %cst_12 : f32 to vector<64x128xf32>
    %17 = arith.maximumf %15, %16 : vector<64x128xf32>
    %18 = arith.truncf %17 : vector<64x128xf32> to vector<64x128xbf16>
    %cst_13 = arith.constant dense<0.000000e+00> : vector<16x128xf32>
    %19 = tpu.matmul %3, %18, %cst_13 {dimension_numbers = #tpu.dot_dimension_numbers<[1], [0], [0], [1], [0, 0, 1, 1], [], []>} : vector<16x64xbf16>, vector<64x128xbf16>, vector<16x128xf32> -> vector<16x128xf32>
    %20 = vector.broadcast %10 : vector<16x1xf32> to vector<16x128xf32>
    %21 = arith.mulf %19, %20 : vector<16x128xf32>
    %22 = arith.truncf %21 : vector<16x128xf32> to vector<16x128xbf16>
    %c0_14 = arith.constant 0 : index
    %c0_15 = arith.constant 0 : index
    %23 = vector.load %arg7[%c0_14, %c0_15] : memref<128x128xbf16, #tpu.memory_space<vmem>>, vector<128x128xbf16>
    %cst_16 = arith.constant dense<0.000000e+00> : vector<16x128xf32>
    %24 = tpu.matmul %22, %23, %cst_16 {dimension_numbers = #tpu.dot_dimension_numbers<[1], [0], [0], [1], [0, 0, 1, 1], [], []>} : vector<16x128xbf16>, vector<128x128xbf16>, vector<16x128xf32> -> vector<16x128xf32>
    %c0_17 = arith.constant 0 : index
    %c0_18 = arith.constant 0 : index
    %25 = vector.load %arg8[%c0_17, %c0_18] : memref<1x128xf32, #tpu.memory_space<vmem>>, vector<1x128xf32>
    %26 = vector.broadcast %25 : vector<1x128xf32> to vector<16x128xf32>
    %27 = arith.addf %24, %26 : vector<16x128xf32>
    %cst_19 = arith.constant 0.000000e+00 : f32
    %28 = vector.broadcast %cst_19 : f32 to vector<16x128xf32>
    %29 = arith.maximumf %27, %28 : vector<16x128xf32>
    %30 = arith.truncf %29 : vector<16x128xf32> to vector<16x128xbf16>
    %c0_20 = arith.constant 0 : index
    %c0_21 = arith.constant 0 : index
    %31 = vector.load %arg9[%c0_20, %c0_21] : memref<128x128xbf16, #tpu.memory_space<vmem>>, vector<128x128xbf16>
    %cst_22 = arith.constant dense<0.000000e+00> : vector<16x128xf32>
    %32 = tpu.matmul %30, %31, %cst_22 {dimension_numbers = #tpu.dot_dimension_numbers<[1], [0], [0], [1], [0, 0, 1, 1], [], []>} : vector<16x128xbf16>, vector<128x128xbf16>, vector<16x128xf32> -> vector<16x128xf32>
    %c0_23 = arith.constant 0 : index
    %c0_24 = arith.constant 0 : index
    %33 = vector.load %arg10[%c0_23, %c0_24] : memref<1x128xf32, #tpu.memory_space<vmem>>, vector<1x128xf32>
    %34 = vector.broadcast %33 : vector<1x128xf32> to vector<16x128xf32>
    %35 = arith.addf %32, %34 : vector<16x128xf32>
    %c0_25 = arith.constant 0 : index
    %c0_26 = arith.constant 0 : index
    %36 = vector.load %arg5[%c0_25, %c0_26] : memref<3072x128xbf16, #tpu.memory_space<vmem>>, vector<3072x128xbf16>
    %cst_27 = arith.constant dense<0.000000e+00> : vector<64x128xf32>
    %37 = tpu.matmul %1, %36, %cst_27 {dimension_numbers = #tpu.dot_dimension_numbers<[1], [0], [0], [1], [0, 0, 1, 1], [], []>} : vector<64x3072xbf16>, vector<3072x128xbf16>, vector<64x128xf32> -> vector<64x128xf32>
    %c0_28 = arith.constant 0 : index
    %c0_29 = arith.constant 0 : index
    %38 = vector.load %arg6[%c0_28, %c0_29] : memref<1x128xf32, #tpu.memory_space<vmem>>, vector<1x128xf32>
    %39 = vector.broadcast %38 : vector<1x128xf32> to vector<64x128xf32>
    %40 = arith.addf %37, %39 : vector<64x128xf32>
    %cst_30 = arith.constant 0.000000e+00 : f32
    %41 = vector.broadcast %cst_30 : f32 to vector<64x128xf32>
    %42 = arith.maximumf %40, %41 : vector<64x128xf32>
    %43 = arith.truncf %42 : vector<64x128xf32> to vector<64x128xbf16>
    %cst_31 = arith.constant dense<0.000000e+00> : vector<16x128xf32>
    %44 = tpu.matmul %3, %43, %cst_31 {dimension_numbers = #tpu.dot_dimension_numbers<[1], [0], [0], [1], [0, 0, 1, 1], [], []>} : vector<16x64xbf16>, vector<64x128xbf16>, vector<16x128xf32> -> vector<16x128xf32>
    %45 = vector.broadcast %10 : vector<16x1xf32> to vector<16x128xf32>
    %46 = arith.mulf %44, %45 : vector<16x128xf32>
    %47 = arith.truncf %46 : vector<16x128xf32> to vector<16x128xbf16>
    %c0_32 = arith.constant 0 : index
    %c0_33 = arith.constant 0 : index
    %48 = vector.load %arg11[%c0_32, %c0_33] : memref<128x128xbf16, #tpu.memory_space<vmem>>, vector<128x128xbf16>
    %cst_34 = arith.constant dense<0.000000e+00> : vector<16x128xf32>
    %49 = tpu.matmul %47, %48, %cst_34 {dimension_numbers = #tpu.dot_dimension_numbers<[1], [0], [0], [1], [0, 0, 1, 1], [], []>} : vector<16x128xbf16>, vector<128x128xbf16>, vector<16x128xf32> -> vector<16x128xf32>
    %c0_35 = arith.constant 0 : index
    %c0_36 = arith.constant 0 : index
    %50 = vector.load %arg12[%c0_35, %c0_36] : memref<1x128xf32, #tpu.memory_space<vmem>>, vector<1x128xf32>
    %51 = vector.broadcast %50 : vector<1x128xf32> to vector<16x128xf32>
    %52 = arith.addf %49, %51 : vector<16x128xf32>
    %cst_37 = arith.constant 0.000000e+00 : f32
    %53 = vector.broadcast %cst_37 : f32 to vector<16x128xf32>
    %54 = arith.maximumf %52, %53 : vector<16x128xf32>
    %55 = arith.truncf %54 : vector<16x128xf32> to vector<16x128xbf16>
    %c0_38 = arith.constant 0 : index
    %c0_39 = arith.constant 0 : index
    %56 = vector.load %arg13[%c0_38, %c0_39] : memref<128x128xbf16, #tpu.memory_space<vmem>>, vector<128x128xbf16>
    %cst_40 = arith.constant dense<0.000000e+00> : vector<16x128xf32>
    %57 = tpu.matmul %55, %56, %cst_40 {dimension_numbers = #tpu.dot_dimension_numbers<[1], [0], [0], [1], [0, 0, 1, 1], [], []>} : vector<16x128xbf16>, vector<128x128xbf16>, vector<16x128xf32> -> vector<16x128xf32>
    %c0_41 = arith.constant 0 : index
    %c0_42 = arith.constant 0 : index
    %58 = vector.load %arg14[%c0_41, %c0_42] : memref<1x128xf32, #tpu.memory_space<vmem>>, vector<1x128xf32>
    %59 = vector.broadcast %58 : vector<1x128xf32> to vector<16x128xf32>
    %60 = arith.addf %57, %59 : vector<16x128xf32>
    %c0_43 = arith.constant 0 : index
    %c0_44 = arith.constant 0 : index
    %c0_45 = arith.constant 0 : index
    %61 = vector.load %arg20[%c0_43, %c0_44, %c0_45] : memref<1x16x128xf32, #tpu.memory_space<vmem>>, vector<1x16x128xf32>
    %62 = vector.shape_cast %61 : vector<1x16x128xf32> to vector<16x128xf32>
    %63 = vector.shape_cast %60 : vector<16x128xf32> to vector<1x16x128xf32>
    tpu.vector_store %arg20[%c0_43, %c0_44, %c0_45], %63 {strides = array<i32>} : memref<1x16x128xf32, #tpu.memory_space<vmem>>, vector<1x16x128xf32>,
    %64 = arith.truncf %35 : vector<16x128xf32> to vector<16x128xbf16>
    %c0_46 = arith.constant 0 : index
    %c0_47 = arith.constant 0 : index
    %65 = vector.load %arg15[%c0_46, %c0_47] : memref<128x128xbf16, #tpu.memory_space<vmem>>, vector<128x128xbf16>
    %cst_48 = arith.constant dense<0.000000e+00> : vector<16x128xf32>
    %66 = tpu.matmul %64, %65, %cst_48 {dimension_numbers = #tpu.dot_dimension_numbers<[1], [0], [0], [1], [0, 0, 1, 1], [], []>} : vector<16x128xbf16>, vector<128x128xbf16>, vector<16x128xf32> -> vector<16x128xf32>
    %c0_49 = arith.constant 0 : index
    %c0_50 = arith.constant 0 : index
    %67 = vector.load %arg16[%c0_49, %c0_50] : memref<1x128xf32, #tpu.memory_space<vmem>>, vector<1x128xf32>
    %68 = vector.broadcast %67 : vector<1x128xf32> to vector<16x128xf32>
    %69 = arith.addf %66, %68 : vector<16x128xf32>
    %cst_51 = arith.constant 0.000000e+00 : f32
    %70 = vector.broadcast %cst_51 : f32 to vector<16x128xf32>
    %71 = arith.maximumf %69, %70 : vector<16x128xf32>
    %72 = arith.truncf %71 : vector<16x128xf32> to vector<16x128xbf16>
    %c0_52 = arith.constant 0 : index
    %c0_53 = arith.constant 0 : index
    %73 = vector.load %arg17[%c0_52, %c0_53] : memref<128x128xbf16, #tpu.memory_space<vmem>>, vector<128x128xbf16>
    %cst_54 = arith.constant dense<0.000000e+00> : vector<16x128xf32>
    %74 = tpu.matmul %72, %73, %cst_54 {dimension_numbers = #tpu.dot_dimension_numbers<[1], [0], [0], [1], [0, 0, 1, 1], [], []>} : vector<16x128xbf16>, vector<128x128xbf16>, vector<16x128xf32> -> vector<16x128xf32>
    %c0_55 = arith.constant 0 : index
    %c0_56 = arith.constant 0 : index
    %75 = vector.load %arg18[%c0_55, %c0_56] : memref<1x128xf32, #tpu.memory_space<vmem>>, vector<1x128xf32>
    %76 = vector.broadcast %75 : vector<1x128xf32> to vector<16x128xf32>
    %77 = arith.addf %74, %76 : vector<16x128xf32>
    %c0_57 = arith.constant 0 : index
    %c0_58 = arith.constant 0 : index
    %c0_59 = arith.constant 0 : index
    %78 = vector.load %arg19[%c0_57, %c0_58, %c0_59] : memref<1x16x128xf32, #tpu.memory_space<vmem>>, vector<1x16x128xf32>
    %79 = vector.shape_cast %78 : vector<1x16x128xf32> to vector<16x128xf32>
    %80 = vector.shape_cast %77 : vector<16x128xf32> to vector<1x16x128xf32>
    tpu.vector_store %arg19[%c0_57, %c0_58, %c0_59], %80 {strides = array<i32>} : memref<1x16x128xf32, #tpu.memory_space<vmem>>, vector<1x16x128xf32>,
    return
  }
  func.func @transform_0(%arg0: i32) -> (i32, i32, i32) {
    %c0_i32 = arith.constant 0 : i32
    %c0_i32_0 = arith.constant 0 : i32
    %c0_i32_1 = arith.constant 0 : i32
    return %arg0, %c0_i32, %c0_i32_0 : i32, i32, i32
  }
  func.func @transform_1(%arg0: i32) -> (i32, i32, i32) {
    %c0_i32 = arith.constant 0 : i32
    %c0_i32_0 = arith.constant 0 : i32
    %c0_i32_1 = arith.constant 0 : i32
    return %arg0, %c0_i32, %c0_i32_0 : i32, i32, i32
  }
  func.func @transform_2(%arg0: i32) -> (i32, i32) {
    %c0_i32 = arith.constant 0 : i32
    %c0_i32_0 = arith.constant 0 : i32
    %c0_i32_1 = arith.constant 0 : i32
    return %c0_i32, %c0_i32_0 : i32, i32
  }
  func.func @transform_3(%arg0: i32) -> (i32, i32) {
    %c0_i32 = arith.constant 0 : i32
    %c0_i32_0 = arith.constant 0 : i32
    %c0_i32_1 = arith.constant 0 : i32
    return %c0_i32, %c0_i32_0 : i32, i32
  }
  func.func @transform_4(%arg0: i32) -> (i32, i32) {
    %c0_i32 = arith.constant 0 : i32
    %c0_i32_0 = arith.constant 0 : i32
    %c0_i32_1 = arith.constant 0 : i32
    return %c0_i32, %c0_i32_0 : i32, i32
  }
  func.func @transform_5(%arg0: i32) -> (i32, i32) {
    %c0_i32 = arith.constant 0 : i32
    %c0_i32_0 = arith.constant 0 : i32
    %c0_i32_1 = arith.constant 0 : i32
    return %c0_i32, %c0_i32_0 : i32, i32
  }
  func.func @transform_6(%arg0: i32) -> (i32, i32) {
    %c0_i32 = arith.constant 0 : i32
    %c0_i32_0 = arith.constant 0 : i32
    %c0_i32_1 = arith.constant 0 : i32
    return %c0_i32, %c0_i32_0 : i32, i32
  }
  func.func @transform_7(%arg0: i32) -> (i32, i32) {
    %c0_i32 = arith.constant 0 : i32
    %c0_i32_0 = arith.constant 0 : i32
    %c0_i32_1 = arith.constant 0 : i32
    return %c0_i32, %c0_i32_0 : i32, i32
  }
  func.func @transform_8(%arg0: i32) -> (i32, i32) {
    %c0_i32 = arith.constant 0 : i32
    %c0_i32_0 = arith.constant 0 : i32
    %c0_i32_1 = arith.constant 0 : i32
    return %c0_i32, %c0_i32_0 : i32, i32
  }
  func.func @transform_9(%arg0: i32) -> (i32, i32) {
    %c0_i32 = arith.constant 0 : i32
    %c0_i32_0 = arith.constant 0 : i32
    %c0_i32_1 = arith.constant 0 : i32
    return %c0_i32, %c0_i32_0 : i32, i32
  }
  func.func @transform_10(%arg0: i32) -> (i32, i32) {
    %c0_i32 = arith.constant 0 : i32
    %c0_i32_0 = arith.constant 0 : i32
    %c0_i32_1 = arith.constant 0 : i32
    return %c0_i32, %c0_i32_0 : i32, i32
  }
  func.func @transform_11(%arg0: i32) -> (i32, i32) {
    %c0_i32 = arith.constant 0 : i32
    %c0_i32_0 = arith.constant 0 : i32
    %c0_i32_1 = arith.constant 0 : i32
    return %c0_i32, %c0_i32_0 : i32, i32
  }
  func.func @transform_12(%arg0: i32) -> (i32, i32) {
    %c0_i32 = arith.constant 0 : i32
    %c0_i32_0 = arith.constant 0 : i32
    %c0_i32_1 = arith.constant 0 : i32
    return %c0_i32, %c0_i32_0 : i32, i32
  }
  func.func @transform_13(%arg0: i32) -> (i32, i32) {
    %c0_i32 = arith.constant 0 : i32
    %c0_i32_0 = arith.constant 0 : i32
    %c0_i32_1 = arith.constant 0 : i32
    return %c0_i32, %c0_i32_0 : i32, i32
  }
  func.func @transform_14(%arg0: i32) -> (i32, i32) {
    %c0_i32 = arith.constant 0 : i32
    %c0_i32_0 = arith.constant 0 : i32
    %c0_i32_1 = arith.constant 0 : i32
    return %c0_i32, %c0_i32_0 : i32, i32
  }
  func.func @transform_15(%arg0: i32) -> (i32, i32) {
    %c0_i32 = arith.constant 0 : i32
    %c0_i32_0 = arith.constant 0 : i32
    %c0_i32_1 = arith.constant 0 : i32
    return %c0_i32, %c0_i32_0 : i32, i32
  }
  func.func @transform_16(%arg0: i32) -> (i32, i32) {
    %c0_i32 = arith.constant 0 : i32
    %c0_i32_0 = arith.constant 0 : i32
    %c0_i32_1 = arith.constant 0 : i32
    return %c0_i32, %c0_i32_0 : i32, i32
  }
  func.func @transform_17(%arg0: i32) -> (i32, i32) {
    %c0_i32 = arith.constant 0 : i32
    %c0_i32_0 = arith.constant 0 : i32
    %c0_i32_1 = arith.constant 0 : i32
    return %c0_i32, %c0_i32_0 : i32, i32
  }
  func.func @transform_18(%arg0: i32) -> (i32, i32, i32) {
    %c0_i32 = arith.constant 0 : i32
    %c0_i32_0 = arith.constant 0 : i32
    %c0_i32_1 = arith.constant 0 : i32
    return %arg0, %c0_i32, %c0_i32_0 : i32, i32, i32
  }
  func.func @transform_19(%arg0: i32) -> (i32, i32, i32) {
    %c0_i32 = arith.constant 0 : i32
    %c0_i32_0 = arith.constant 0 : i32
    %c0_i32_1 = arith.constant 0 : i32
    return %arg0, %c0_i32, %c0_i32_0 : i32, i32, i32
  }
}

</mosaic_0001>

<llo_original>
// kernel: r2o_forward.1
$region0: #{r2o_forward.1}
  #allocation0 [shape = 'u32[]', space=smem, size = 0x4, offset = 0x4, fixed_abs, tag = 'smem constant byte address 0x4 - core index']
  #allocation1 [shape = 'u32[72,128]{1,0:T(1,128)}', space=vmem, size = 0x9000, scoped, tag = 'internal scratch']
  %s0 = inlined_call_operand.vmem [shape: bf16[4,64,3072], index: 0, kind: input, shape index: {}]
  %s1 = inlined_call_operand.vmem [shape: bf16[4,16,64], index: 1, kind: input, shape index: {}]
  %s2 = inlined_call_operand.vmem [shape: bf16[3072,128], index: 2, kind: input, shape index: {}]
  %s3 = inlined_call_operand.vmem [shape: f32[1,128], index: 3, kind: input, shape index: {}]
  %s4 = inlined_call_operand.vmem [shape: bf16[3072,128], index: 4, kind: input, shape index: {}]
  %s5 = inlined_call_operand.vmem [shape: f32[1,128], index: 5, kind: input, shape index: {}]
  %s6 = inlined_call_operand.vmem [shape: bf16[128,128], index: 6, kind: input, shape index: {}]
  %s7 = inlined_call_operand.vmem [shape: f32[1,128], index: 7, kind: input, shape index: {}]
  %s8 = inlined_call_operand.vmem [shape: bf16[128,128], index: 8, kind: input, shape index: {}]
  %s9 = inlined_call_operand.vmem [shape: f32[1,128], index: 9, kind: input, shape index: {}]
  %s10 = inlined_call_operand.vmem [shape: bf16[128,128], index: 10, kind: input, shape index: {}]
  %s11 = inlined_call_operand.vmem [shape: f32[1,128], index: 11, kind: input, shape index: {}]
  %s12 = inlined_call_operand.vmem [shape: bf16[128,128], index: 12, kind: input, shape index: {}]
  %s13 = inlined_call_operand.vmem [shape: f32[1,128], index: 13, kind: input, shape index: {}]
  %s14 = inlined_call_operand.vmem [shape: bf16[128,128], index: 14, kind: input, shape index: {}]
  %s15 = inlined_call_operand.vmem [shape: f32[1,128], index: 15, kind: input, shape index: {}]
  %s16 = inlined_call_operand.vmem [shape: bf16[128,128], index: 16, kind: input, shape index: {}]
  %s17 = inlined_call_operand.vmem [shape: f32[1,128], index: 17, kind: input, shape index: {}]
  %s18 = inlined_call_operand.vmem [shape: f32[4,16,128], index: 18, kind: output, shape index: {0}]
  %s19 = inlined_call_operand.vmem [shape: f32[4,16,128], index: 19, kind: output, shape index: {1}]
  %20 = xla_tuple %s18, %s19
  %s21 = sld [smem:[#allocation0]]
  $region113: #{r2o_forward.1} parent=0
    _
  %s23 = ssub.s32 1, %s21
  %s24 = scalar_select 0, %s23, %s21
  loop: start=0, step=1, limit=6
  $region2: #{r2o_forward.1} parent=0 // loop_pre_header
    _
  $region3: #{r2o_forward.1} parent=0 // loop_header
    %s26 = sphi 0, %s30
    %p27 = scmp.ge.s32.totalorder %s26, 6
    %s36 = sphi 0, %s38
    %s39 = sphi 0, %s36
    %s40 = sphi 0, %s39
    %s56 = sphi 0, %s40
    %s62 = sphi 0, %s64
    %s65 = sphi 0, %s62
    %s66 = sphi 0, %s65
    %s82 = sphi 0, %s66
    %s86 = sphi 0, %s86
    %s88 = sphi 0, %s86
    %s89 = sphi 0, %s88
    %s103 = sphi 0, %s89
    %s107 = sphi 0, %s107
    %s109 = sphi 0, %s107
    %s110 = sphi 0, %s109
    %s124 = sphi 0, %s110
    %s128 = sphi 0, %s128
    %s130 = sphi 0, %s128
    %s131 = sphi 0, %s130
    %s145 = sphi 0, %s131
    %s149 = sphi 0, %s149
    %s151 = sphi 0, %s149
    %s152 = sphi 0, %s151
    %s166 = sphi 0, %s152
    %s170 = sphi 0, %s170
    %s172 = sphi 0, %s170
    %s173 = sphi 0, %s172
    %s187 = sphi 0, %s173
    %s191 = sphi 0, %s191
    %s193 = sphi 0, %s191
    %s194 = sphi 0, %s193
    %s208 = sphi 0, %s194
    %s212 = sphi 0, %s212
    %s214 = sphi 0, %s212
    %s215 = sphi 0, %s214
    %s229 = sphi 0, %s215
    %s233 = sphi 0, %s233
    %s235 = sphi 0, %s233
    %s236 = sphi 0, %s235
    %s250 = sphi 0, %s236
    %s254 = sphi 0, %s254
    %s256 = sphi 0, %s254
    %s257 = sphi 0, %s256
    %s271 = sphi 0, %s257
    %s275 = sphi 0, %s275
    %s277 = sphi 0, %s275
    %s278 = sphi 0, %s277
    %s292 = sphi 0, %s278
    %s296 = sphi 0, %s296
    %s298 = sphi 0, %s296
    %s299 = sphi 0, %s298
    %s313 = sphi 0, %s299
    %s317 = sphi 0, %s317
    %s319 = sphi 0, %s317
    %s320 = sphi 0, %s319
    %s334 = sphi 0, %s320
    %s338 = sphi 0, %s338
    %s340 = sphi 0, %s338
    %s341 = sphi 0, %s340
    %s355 = sphi 0, %s341
    %s359 = sphi 0, %s359
    %s361 = sphi 0, %s359
    %s362 = sphi 0, %s361
    %s376 = sphi 0, %s362
    %s380 = sphi 0, %s380
    %s382 = sphi 0, %s380
    %s383 = sphi 0, %s382
    %s397 = sphi 0, %s383
    %s401 = sphi 0, %s401
    %s403 = sphi 0, %s401
    %s404 = sphi 0, %s403
    %s418 = sphi 0, %s404
    %s424 = sphi 0, %s426
    %s427 = sphi 0, %s424
    %s428 = sphi 0, %s427
    %s444 = sphi 0, %s428
    %s450 = sphi 0, %s452
    %s453 = sphi 0, %s450
    %s454 = sphi 0, %s453
    %s470 = sphi 0, %s454
  $region4: #{r2o_forward.1} parent=0 // loop_header_branch
    %29 = sbr.rel (%p27) target = $region8
  $region5: #{r2o_forward.1} parent=0 // loop_body
    %s31 = ssub.s32 %s26, 1
    %s32 = ssub.s32 %s26, 2
    %s33 = sadd.s32 %s26, 1
    %s34 = ssub.s32 %s26, %s33
    %p35 = scmp.eq.s32.totalorder %s34, 0
    %s37 = sadd.s32 %s36, 1
    %s38 = scalar_select %p35, %s36, %s37
    %p41 = pneg %p35
    %p42 = scmp.eq.s32.totalorder %s26, 3
    %p43 = por %p41, %p42
    %p44 = scmp.ne.s32.totalorder %s36, %s39
    %p45 = scmp.eq.s32.totalorder %s26, 0
    %p46 = por %p44, %p45
    %p47 = scmp.ne.s32.totalorder %s36, %s39
    %p48 = scmp.eq.s32.totalorder %s31, 3
    %p49 = por %p47, %p48
    %p50 = scmp.ne.s32.totalorder %s39, %s40
    %p51 = scmp.eq.s32.totalorder %s31, 0
    %p52 = por %p50, %p51
    %p53 = scmp.ne.s32.totalorder %s39, %s40
    %p54 = scmp.eq.s32.totalorder %s32, 3
    %p55 = por %p53, %p54
    %p57 = scmp.ne.s32.totalorder %s40, %s56
    %p58 = scmp.eq.s32.totalorder %s32, 0
    %p59 = por %p57, %p58
    %s60 = ssub.s32 %s26, %s33
    %p61 = scmp.eq.s32.totalorder %s60, 0
    %s63 = sadd.s32 %s62, 1
    %s64 = scalar_select %p61, %s62, %s63
    %p67 = pneg %p61
    %p68 = scmp.eq.s32.totalorder %s26, 3
    %p69 = por %p67, %p68
    %p70 = scmp.ne.s32.totalorder %s62, %s65
    %p71 = scmp.eq.s32.totalorder %s26, 0
    %p72 = por %p70, %p71
    %p73 = scmp.ne.s32.totalorder %s62, %s65
    %p74 = scmp.eq.s32.totalorder %s31, 3
    %p75 = por %p73, %p74
    %p76 = scmp.ne.s32.totalorder %s65, %s66
    %p77 = scmp.eq.s32.totalorder %s31, 0
    %p78 = por %p76, %p77
    %p79 = scmp.ne.s32.totalorder %s65, %s66
    %p80 = scmp.eq.s32.totalorder %s32, 3
    %p81 = por %p79, %p80
    %p83 = scmp.ne.s32.totalorder %s66, %s82
    %p84 = scmp.eq.s32.totalorder %s32, 0
    %p85 = por %p83, %p84
    %s87 = sadd.s32 %s86, 1
    %p90 = scmp.eq.s32.totalorder %s26, 3
    %p91 = scmp.ne.s32.totalorder %s86, %s88
    %p92 = scmp.eq.s32.totalorder %s26, 0
    %p93 = por %p91, %p92
    %p94 = scmp.ne.s32.totalorder %s86, %s88
    %p95 = scmp.eq.s32.totalorder %s31, 3
    %p96 = por %p94, %p95
    %p97 = scmp.ne.s32.totalorder %s88, %s89
    %p98 = scmp.eq.s32.totalorder %s31, 0
    %p99 = por %p97, %p98
    %p100 = scmp.ne.s32.totalorder %s88, %s89
    %p101 = scmp.eq.s32.totalorder %s32, 3
    %p102 = por %p100, %p101
    %p104 = scmp.ne.s32.totalorder %s89, %s103
    %p105 = scmp.eq.s32.totalorder %s32, 0
    %p106 = por %p104, %p105
    %s108 = sadd.s32 %s107, 1
    %p111 = scmp.eq.s32.totalorder %s26, 3
    %p112 = scmp.ne.s32.totalorder %s107, %s109
    %p113 = scmp.eq.s32.totalorder %s26, 0
    %p114 = por %p112, %p113
    %p115 = scmp.ne.s32.totalorder %s107, %s109
    %p116 = scmp.eq.s32.totalorder %s31, 3
    %p117 = por %p115, %p116
    %p118 = scmp.ne.s32.totalorder %s109, %s110
    %p119 = scmp.eq.s32.totalorder %s31, 0
    %p120 = por %p118, %p119
    %p121 = scmp.ne.s32.totalorder %s109, %s110
    %p122 = scmp.eq.s32.totalorder %s32, 3
    %p123 = por %p121, %p122
    %p125 = scmp.ne.s32.totalorder %s110, %s124
    %p126 = scmp.eq.s32.totalorder %s32, 0
    %p127 = por %p125, %p126
    %s129 = sadd.s32 %s128, 1
    %p132 = scmp.eq.s32.totalorder %s26, 3
    %p133 = scmp.ne.s32.totalorder %s128, %s130
    %p134 = scmp.eq.s32.totalorder %s26, 0
    %p135 = por %p133, %p134
    %p136 = scmp.ne.s32.totalorder %s128, %s130
    %p137 = scmp.eq.s32.totalorder %s31, 3
    %p138 = por %p136, %p137
    %p139 = scmp.ne.s32.totalorder %s130, %s131
    %p140 = scmp.eq.s32.totalorder %s31, 0
    %p141 = por %p139, %p140
    %p142 = scmp.ne.s32.totalorder %s130, %s131
    %p143 = scmp.eq.s32.totalorder %s32, 3
    %p144 = por %p142, %p143
    %p146 = scmp.ne.s32.totalorder %s131, %s145
    %p147 = scmp.eq.s32.totalorder %s32, 0
    %p148 = por %p146, %p147
    %s150 = sadd.s32 %s149, 1
    %p153 = scmp.eq.s32.totalorder %s26, 3
    %p154 = scmp.ne.s32.totalorder %s149, %s151
    %p155 = scmp.eq.s32.totalorder %s26, 0
    %p156 = por %p154, %p155
    %p157 = scmp.ne.s32.totalorder %s149, %s151
    %p158 = scmp.eq.s32.totalorder %s31, 3
    %p159 = por %p157, %p158
    %p160 = scmp.ne.s32.totalorder %s151, %s152
    %p161 = scmp.eq.s32.totalorder %s31, 0
    %p162 = por %p160, %p161
    %p163 = scmp.ne.s32.totalorder %s151, %s152
    %p164 = scmp.eq.s32.totalorder %s32, 3
    %p165 = por %p163, %p164
    %p167 = scmp.ne.s32.totalorder %s152, %s166
    %p168 = scmp.eq.s32.totalorder %s32, 0
    %p169 = por %p167, %p168
    %s171 = sadd.s32 %s170, 1
    %p174 = scmp.eq.s32.totalorder %s26, 3
    %p175 = scmp.ne.s32.totalorder %s170, %s172
    %p176 = scmp.eq.s32.totalorder %s26, 0
    %p177 = por %p175, %p176
    %p178 = scmp.ne.s32.totalorder %s170, %s172
    %p179 = scmp.eq.s32.totalorder %s31, 3
    %p180 = por %p178, %p179
    %p181 = scmp.ne.s32.totalorder %s172, %s173
    %p182 = scmp.eq.s32.totalorder %s31, 0
    %p183 = por %p181, %p182
    %p184 = scmp.ne.s32.totalorder %s172, %s173
    %p185 = scmp.eq.s32.totalorder %s32, 3
    %p186 = por %p184, %p185
    %p188 = scmp.ne.s32.totalorder %s173, %s187
    %p189 = scmp.eq.s32.totalorder %s32, 0
    %p190 = por %p188, %p189
    %s192 = sadd.s32 %s191, 1
    %p195 = scmp.eq.s32.totalorder %s26, 3
    %p196 = scmp.ne.s32.totalorder %s191, %s193
    %p197 = scmp.eq.s32.totalorder %s26, 0
    %p198 = por %p196, %p197
    %p199 = scmp.ne.s32.totalorder %s191, %s193
    %p200 = scmp.eq.s32.totalorder %s31, 3
    %p201 = por %p199, %p200
    %p202 = scmp.ne.s32.totalorder %s193, %s194
    %p203 = scmp.eq.s32.totalorder %s31, 0
    %p204 = por %p202, %p203
    %p205 = scmp.ne.s32.totalorder %s193, %s194
    %p206 = scmp.eq.s32.totalorder %s32, 3
    %p207 = por %p205, %p206
    %p209 = scmp.ne.s32.totalorder %s194, %s208
    %p210 = scmp.eq.s32.totalorder %s32, 0
    %p211 = por %p209, %p210
    %s213 = sadd.s32 %s212, 1
    %p216 = scmp.eq.s32.totalorder %s26, 3
    %p217 = scmp.ne.s32.totalorder %s212, %s214
    %p218 = scmp.eq.s32.totalorder %s26, 0
    %p219 = por %p217, %p218
    %p220 = scmp.ne.s32.totalorder %s212, %s214
    %p221 = scmp.eq.s32.totalorder %s31, 3
    %p222 = por %p220, %p221
    %p223 = scmp.ne.s32.totalorder %s214, %s215
    %p224 = scmp.eq.s32.totalorder %s31, 0
    %p225 = por %p223, %p224
    %p226 = scmp.ne.s32.totalorder %s214, %s215
    %p227 = scmp.eq.s32.totalorder %s32, 3
    %p228 = por %p226, %p227
    %p230 = scmp.ne.s32.totalorder %s215, %s229
    %p231 = scmp.eq.s32.totalorder %s32, 0
    %p232 = por %p230, %p231
    %s234 = sadd.s32 %s233, 1
    %p237 = scmp.eq.s32.totalorder %s26, 3
    %p238 = scmp.ne.s32.totalorder %s233, %s235
    %p239 = scmp.eq.s32.totalorder %s26, 0
    %p240 = por %p238, %p239
    %p241 = scmp.ne.s32.totalorder %s233, %s235
    %p242 = scmp.eq.s32.totalorder %s31, 3
    %p243 = por %p241, %p242
    %p244 = scmp.ne.s32.totalorder %s235, %s236
    %p245 = scmp.eq.s32.totalorder %s31, 0
    %p246 = por %p244, %p245
    %p247 = scmp.ne.s32.totalorder %s235, %s236
    %p248 = scmp.eq.s32.totalorder %s32, 3
    %p249 = por %p247, %p248
    %p251 = scmp.ne.s32.totalorder %s236, %s250
    %p252 = scmp.eq.s32.totalorder %s32, 0
    %p253 = por %p251, %p252
    %s255 = sadd.s32 %s254, 1
    %p258 = scmp.eq.s32.totalorder %s26, 3
    %p259 = scmp.ne.s32.totalorder %s254, %s256
    %p260 = scmp.eq.s32.totalorder %s26, 0
    %p261 = por %p259, %p260
    %p262 = scmp.ne.s32.totalorder %s254, %s256
    %p263 = scmp.eq.s32.totalorder %s31, 3
    %p264 = por %p262, %p263
    %p265 = scmp.ne.s32.totalorder %s256, %s257
    %p266 = scmp.eq.s32.totalorder %s31, 0
    %p267 = por %p265, %p266
    %p268 = scmp.ne.s32.totalorder %s256, %s257
    %p269 = scmp.eq.s32.totalorder %s32, 3
    %p270 = por %p268, %p269
    %p272 = scmp.ne.s32.totalorder %s257, %s271
    %p273 = scmp.eq.s32.totalorder %s32, 0
    %p274 = por %p272, %p273
    %s276 = sadd.s32 %s275, 1
    %p279 = scmp.eq.s32.totalorder %s26, 3
    %p280 = scmp.ne.s32.totalorder %s275, %s277
    %p281 = scmp.eq.s32.totalorder %s26, 0
    %p282 = por %p280, %p281
    %p283 = scmp.ne.s32.totalorder %s275, %s277
    %p284 = scmp.eq.s32.totalorder %s31, 3
    %p285 = por %p283, %p284
    %p286 = scmp.ne.s32.totalorder %s277, %s278
    %p287 = scmp.eq.s32.totalorder %s31, 0
    %p288 = por %p286, %p287
    %p289 = scmp.ne.s32.totalorder %s277, %s278
    %p290 = scmp.eq.s32.totalorder %s32, 3
    %p291 = por %p289, %p290
    %p293 = scmp.ne.s32.totalorder %s278, %s292
    %p294 = scmp.eq.s32.totalorder %s32, 0
    %p295 = por %p293, %p294
    %s297 = sadd.s32 %s296, 1
    %p300 = scmp.eq.s32.totalorder %s26, 3
    %p301 = scmp.ne.s32.totalorder %s296, %s298
    %p302 = scmp.eq.s32.totalorder %s26, 0
    %p303 = por %p301, %p302
    %p304 = scmp.ne.s32.totalorder %s296, %s298
    %p305 = scmp.eq.s32.totalorder %s31, 3
    %p306 = por %p304, %p305
    %p307 = scmp.ne.s32.totalorder %s298, %s299
    %p308 = scmp.eq.s32.totalorder %s31, 0
    %p309 = por %p307, %p308
    %p310 = scmp.ne.s32.totalorder %s298, %s299
    %p311 = scmp.eq.s32.totalorder %s32, 3
    %p312 = por %p310, %p311
    %p314 = scmp.ne.s32.totalorder %s299, %s313
    %p315 = scmp.eq.s32.totalorder %s32, 0
    %p316 = por %p314, %p315
    %s318 = sadd.s32 %s317, 1
    %p321 = scmp.eq.s32.totalorder %s26, 3
    %p322 = scmp.ne.s32.totalorder %s317, %s319
    %p323 = scmp.eq.s32.totalorder %s26, 0
    %p324 = por %p322, %p323
    %p325 = scmp.ne.s32.totalorder %s317, %s319
    %p326 = scmp.eq.s32.totalorder %s31, 3
    %p327 = por %p325, %p326
    %p328 = scmp.ne.s32.totalorder %s319, %s320
    %p329 = scmp.eq.s32.totalorder %s31, 0
    %p330 = por %p328, %p329
    %p331 = scmp.ne.s32.totalorder %s319, %s320
    %p332 = scmp.eq.s32.totalorder %s32, 3
    %p333 = por %p331, %p332
    %p335 = scmp.ne.s32.totalorder %s320, %s334
    %p336 = scmp.eq.s32.totalorder %s32, 0
    %p337 = por %p335, %p336
    %s339 = sadd.s32 %s338, 1
    %p342 = scmp.eq.s32.totalorder %s26, 3
    %p343 = scmp.ne.s32.totalorder %s338, %s340
    %p344 = scmp.eq.s32.totalorder %s26, 0
    %p345 = por %p343, %p344
    %p346 = scmp.ne.s32.totalorder %s338, %s340
    %p347 = scmp.eq.s32.totalorder %s31, 3
    %p348 = por %p346, %p347
    %p349 = scmp.ne.s32.totalorder %s340, %s341
    %p350 = scmp.eq.s32.totalorder %s31, 0
    %p351 = por %p349, %p350
    %p352 = scmp.ne.s32.totalorder %s340, %s341
    %p353 = scmp.eq.s32.totalorder %s32, 3
    %p354 = por %p352, %p353
    %p356 = scmp.ne.s32.totalorder %s341, %s355
    %p357 = scmp.eq.s32.totalorder %s32, 0
    %p358 = por %p356, %p357
    %s360 = sadd.s32 %s359, 1
    %p363 = scmp.eq.s32.totalorder %s26, 3
    %p364 = scmp.ne.s32.totalorder %s359, %s361
    %p365 = scmp.eq.s32.totalorder %s26, 0
    %p366 = por %p364, %p365
    %p367 = scmp.ne.s32.totalorder %s359, %s361
    %p368 = scmp.eq.s32.totalorder %s31, 3
    %p369 = por %p367, %p368
    %p370 = scmp.ne.s32.totalorder %s361, %s362
    %p371 = scmp.eq.s32.totalorder %s31, 0
    %p372 = por %p370, %p371
    %p373 = scmp.ne.s32.totalorder %s361, %s362
    %p374 = scmp.eq.s32.totalorder %s32, 3
    %p375 = por %p373, %p374
    %p377 = scmp.ne.s32.totalorder %s362, %s376
    %p378 = scmp.eq.s32.totalorder %s32, 0
    %p379 = por %p377, %p378
    %s381 = sadd.s32 %s380, 1
    %p384 = scmp.eq.s32.totalorder %s26, 3
    %p385 = scmp.ne.s32.totalorder %s380, %s382
    %p386 = scmp.eq.s32.totalorder %s26, 0
    %p387 = por %p385, %p386
    %p388 = scmp.ne.s32.totalorder %s380, %s382
    %p389 = scmp.eq.s32.totalorder %s31, 3
    %p390 = por %p388, %p389
    %p391 = scmp.ne.s32.totalorder %s382, %s383
    %p392 = scmp.eq.s32.totalorder %s31, 0
    %p393 = por %p391, %p392
    %p394 = scmp.ne.s32.totalorder %s382, %s383
    %p395 = scmp.eq.s32.totalorder %s32, 3
    %p396 = por %p394, %p395
    %p398 = scmp.ne.s32.totalorder %s383, %s397
    %p399 = scmp.eq.s32.totalorder %s32, 0
    %p400 = por %p398, %p399
    %s402 = sadd.s32 %s401, 1
    %p405 = scmp.eq.s32.totalorder %s26, 3
    %p406 = scmp.ne.s32.totalorder %s401, %s403
    %p407 = scmp.eq.s32.totalorder %s26, 0
    %p408 = por %p406, %p407
    %p409 = scmp.ne.s32.totalorder %s401, %s403
    %p410 = scmp.eq.s32.totalorder %s31, 3
    %p411 = por %p409, %p410
    %p412 = scmp.ne.s32.totalorder %s403, %s404
    %p413 = scmp.eq.s32.totalorder %s31, 0
    %p414 = por %p412, %p413
    %p415 = scmp.ne.s32.totalorder %s403, %s404
    %p416 = scmp.eq.s32.totalorder %s32, 3
    %p417 = por %p415, %p416
    %p419 = scmp.ne.s32.totalorder %s404, %s418
    %p420 = scmp.eq.s32.totalorder %s32, 0
    %p421 = por %p419, %p420
    %s422 = ssub.s32 %s26, %s33
    %p423 = scmp.eq.s32.totalorder %s422, 0
    %s425 = sadd.s32 %s424, 1
    %s426 = scalar_select %p423, %s424, %s425
    %p429 = pneg %p423
    %p430 = scmp.eq.s32.totalorder %s26, 3
    %p431 = por %p429, %p430
    %p432 = scmp.ne.s32.totalorder %s424, %s427
    %p433 = scmp.eq.s32.totalorder %s26, 0
    %p434 = por %p432, %p433
    %p435 = scmp.ne.s32.totalorder %s424, %s427
    %p436 = scmp.eq.s32.totalorder %s31, 3
    %p437 = por %p435, %p436
    %p438 = scmp.ne.s32.totalorder %s427, %s428
    %p439 = scmp.eq.s32.totalorder %s31, 0
    %p440 = por %p438, %p439
    %p441 = scmp.ne.s32.totalorder %s427, %s428
    %p442 = scmp.eq.s32.totalorder %s32, 3
    %p443 = por %p441, %p442
    %p445 = scmp.ne.s32.totalorder %s428, %s444
    %p446 = scmp.eq.s32.totalorder %s32, 0
    %p447 = por %p445, %p446
    %s448 = ssub.s32 %s26, %s33
    %p449 = scmp.eq.s32.totalorder %s448, 0
    %s451 = sadd.s32 %s450, 1
    %s452 = scalar_select %p449, %s450, %s451
    %p455 = pneg %p449
    %p456 = scmp.eq.s32.totalorder %s26, 3
    %p457 = por %p455, %p456
    %p458 = scmp.ne.s32.totalorder %s450, %s453
    %p459 = scmp.eq.s32.totalorder %s26, 0
    %p460 = por %p458, %p459
    %p461 = scmp.ne.s32.totalorder %s450, %s453
    %p462 = scmp.eq.s32.totalorder %s31, 3
    %p463 = por %p461, %p462
    %p464 = scmp.ne.s32.totalorder %s453, %s454
    %p465 = scmp.eq.s32.totalorder %s31, 0
    %p466 = por %p464, %p465
    %p467 = scmp.ne.s32.totalorder %s453, %s454
    %p468 = scmp.eq.s32.totalorder %s32, 3
    %p469 = por %p467, %p468
    %p471 = scmp.ne.s32.totalorder %s454, %s470
    %p472 = scmp.eq.s32.totalorder %s32, 0
    %p473 = por %p471, %p472
    %p474 = scmp.le.s32.totalorder 1, %s26
    %p475 = scmp.lt.s32.totalorder %s26, 5
    %p476 = pnand %p474, %p475
    %p477 = pneg %p476
    // Predicated region
    $region9: #{r2o_forward.1} parent=5 // pred_check
      _
    $region10: #{r2o_forward.1} parent=5 // pred_check_branch
      %479 = sbr.rel (%p476) target = $region12
    $region11: #{r2o_forward.1} parent=5 // pred_region
      %s480 = ssub.s32 %s26, 1
      // Predicated region
      $region13: #{r2o_forward.1} parent=11 // pred_check
        %p481 = pneg %p99
      $region14: #{r2o_forward.1} parent=11 // pred_check_branch
        %483 = sbr.rel (%p481) target = $region16
      $region15: #{r2o_forward.1} parent=11 // pred_region
        _
      $region16: #{r2o_forward.1} parent=11 // pred_fallthru
        _
      // Predicated region
      $region17: #{r2o_forward.1} parent=11 // pred_check
        %p484 = pneg %p120
      $region18: #{r2o_forward.1} parent=11 // pred_check_branch
        %486 = sbr.rel (%p484) target = $region20
      $region19: #{r2o_forward.1} parent=11 // pred_region
        _
      $region20: #{r2o_forward.1} parent=11 // pred_fallthru
        _
      // Predicated region
      $region21: #{r2o_forward.1} parent=11 // pred_check
        %p487 = pneg %p141
      $region22: #{r2o_forward.1} parent=11 // pred_check_branch
        %489 = sbr.rel (%p487) target = $region24
      $region23: #{r2o_forward.1} parent=11 // pred_region
        _
      $region24: #{r2o_forward.1} parent=11 // pred_fallthru
        _
      // Predicated region
      $region25: #{r2o_forward.1} parent=11 // pred_check
        %p490 = pneg %p162
      $region26: #{r2o_forward.1} parent=11 // pred_check_branch
        %492 = sbr.rel (%p490) target = $region28
      $region27: #{r2o_forward.1} parent=11 // pred_region
        _
      $region28: #{r2o_forward.1} parent=11 // pred_fallthru
        _
      // Predicated region
      $region29: #{r2o_forward.1} parent=11 // pred_check
        %p493 = pneg %p183
      $region30: #{r2o_forward.1} parent=11 // pred_check_branch
        %495 = sbr.rel (%p493) target = $region32
      $region31: #{r2o_forward.1} parent=11 // pred_region
        _
      $region32: #{r2o_forward.1} parent=11 // pred_fallthru
        _
      // Predicated region
      $region33: #{r2o_forward.1} parent=11 // pred_check
        %p496 = pneg %p204
      $region34: #{r2o_forward.1} parent=11 // pred_check_branch
        %498 = sbr.rel (%p496) target = $region36
      $region35: #{r2o_forward.1} parent=11 // pred_region
        _
      $region36: #{r2o_forward.1} parent=11 // pred_fallthru
        _
      // Predicated region
      $region37: #{r2o_forward.1} parent=11 // pred_check
        %p499 = pneg %p225
      $region38: #{r2o_forward.1} parent=11 // pred_check_branch
        %501 = sbr.rel (%p499) target = $region40
      $region39: #{r2o_forward.1} parent=11 // pred_region
        _
      $region40: #{r2o_forward.1} parent=11 // pred_fallthru
        _
      // Predicated region
      $region41: #{r2o_forward.1} parent=11 // pred_check
        %p502 = pneg %p246
      $region42: #{r2o_forward.1} parent=11 // pred_check_branch
        %504 = sbr.rel (%p502) target = $region44
      $region43: #{r2o_forward.1} parent=11 // pred_region
        _
      $region44: #{r2o_forward.1} parent=11 // pred_fallthru
        _
      // Predicated region
      $region45: #{r2o_forward.1} parent=11 // pred_check
        %p505 = pneg %p267
      $region46: #{r2o_forward.1} parent=11 // pred_check_branch
        %507 = sbr.rel (%p505) target = $region48
      $region47: #{r2o_forward.1} parent=11 // pred_region
        _
      $region48: #{r2o_forward.1} parent=11 // pred_fallthru
        _
      // Predicated region
      $region49: #{r2o_forward.1} parent=11 // pred_check
        %p508 = pneg %p288
      $region50: #{r2o_forward.1} parent=11 // pred_check_branch
        %510 = sbr.rel (%p508) target = $region52
      $region51: #{r2o_forward.1} parent=11 // pred_region
        _
      $region52: #{r2o_forward.1} parent=11 // pred_fallthru
        _
      // Predicated region
      $region53: #{r2o_forward.1} parent=11 // pred_check
        %p511 = pneg %p309
      $region54: #{r2o_forward.1} parent=11 // pred_check_branch
        %513 = sbr.rel (%p511) target = $region56
      $region55: #{r2o_forward.1} parent=11 // pred_region
        _
      $region56: #{r2o_forward.1} parent=11 // pred_fallthru
        _
      // Predicated region
      $region57: #{r2o_forward.1} parent=11 // pred_check
        %p514 = pneg %p330
      $region58: #{r2o_forward.1} parent=11 // pred_check_branch
        %516 = sbr.rel (%p514) target = $region60
      $region59: #{r2o_forward.1} parent=11 // pred_region
        _
      $region60: #{r2o_forward.1} parent=11 // pred_fallthru
        _
      // Predicated region
      $region61: #{r2o_forward.1} parent=11 // pred_check
        %p517 = pneg %p351
      $region62: #{r2o_forward.1} parent=11 // pred_check_branch
        %519 = sbr.rel (%p517) target = $region64
      $region63: #{r2o_forward.1} parent=11 // pred_region
        _
      $region64: #{r2o_forward.1} parent=11 // pred_fallthru
        _
      // Predicated region
      $region65: #{r2o_forward.1} parent=11 // pred_check
        %p520 = pneg %p372
      $region66: #{r2o_forward.1} parent=11 // pred_check_branch
        %522 = sbr.rel (%p520) target = $region68
      $region67: #{r2o_forward.1} parent=11 // pred_region
        _
      $region68: #{r2o_forward.1} parent=11 // pred_fallthru
        _
      // Predicated region
      $region69: #{r2o_forward.1} parent=11 // pred_check
        %p523 = pneg %p393
      $region70: #{r2o_forward.1} parent=11 // pred_check_branch
        %525 = sbr.rel (%p523) target = $region72
      $region71: #{r2o_forward.1} parent=11 // pred_region
        _
      $region72: #{r2o_forward.1} parent=11 // pred_fallthru
        _
      // Predicated region
      $region73: #{r2o_forward.1} parent=11 // pred_check
        %p526 = pneg %p414
      $region74: #{r2o_forward.1} parent=11 // pred_check_branch
        %528 = sbr.rel (%p526) target = $region76
      $region75: #{r2o_forward.1} parent=11 // pred_region
        _
      $region76: #{r2o_forward.1} parent=11 // pred_fallthru
        _
    $region12: #{r2o_forward.1} parent=5 // pred_fallthru
      _
    %p529 = scmp.lt.s32.totalorder %s26, 4
    // Predicated region
    $region77: #{r2o_forward.1} parent=5 // pred_check
      %p530 = pneg %p529
    $region78: #{r2o_forward.1} parent=5 // pred_check_branch
      %532 = sbr.rel (%p530) target = $region80
    $region79: #{r2o_forward.1} parent=5 // pred_region
      // Predicated region
      $region81: #{r2o_forward.1} parent=79 // pred_check
        %p533 = pneg %p46
      $region82: #{r2o_forward.1} parent=79 // pred_check_branch
        %535 = sbr.rel (%p533) target = $region84
      $region83: #{r2o_forward.1} parent=79 // pred_region
        %p536 = scmp.lt.s32.totalorder %s26, 3
        %s537 = scalar_select %p536, %s26, 3
        %s538 = smul.addr %s537, 192
        %s539 = smul.addr %s538, 4
        %s540 = scalar_lea.vmem %s0, %s539
      $region84: #{r2o_forward.1} parent=79 // pred_fallthru
        _
      // Predicated region
      $region85: #{r2o_forward.1} parent=79 // pred_check
        %p541 = pneg %p72
      $region86: #{r2o_forward.1} parent=79 // pred_check_branch
        %543 = sbr.rel (%p541) target = $region88
      $region87: #{r2o_forward.1} parent=79 // pred_region
        %p544 = scmp.lt.s32.totalorder %s26, 3
        %s545 = scalar_select %p544, %s26, 3
        %s546 = smul.addr %s545, 2
        %s547 = smul.addr %s546, 4
        %s548 = scalar_lea.vmem %s1, %s547
      $region88: #{r2o_forward.1} parent=79 // pred_fallthru
        _
    $region80: #{r2o_forward.1} parent=5 // pred_fallthru
      _
    %p549 = scmp.le.s32.totalorder 1, %s26
    %p550 = scmp.lt.s32.totalorder %s26, 5
    %p551 = pnand %p549, %p550
    %p552 = pneg %p551
    // Predicated region
    $region89: #{r2o_forward.1} parent=5 // pred_check
      _
    $region90: #{r2o_forward.1} parent=5 // pred_check_branch
      %554 = sbr.rel (%p551) target = $region92
    $region91: #{r2o_forward.1} parent=5 // pred_region
      %s555 = ssub.s32 %s26, 1
      %p556 = scmp.lt.s32.totalorder %s31, 3
      %s557 = scalar_select %p556, %s31, 3
      %s558 = smul.addr %s557, 192
      %s559 = smul.addr %s558, 4
      %s560 = scalar_lea.vmem %s0, %s559
      %p561 = pneg %p52
      %p562 = pneg %p49
      %p563 = scmp.lt.s32.totalorder %s31, 3
      %s564 = scalar_select %p563, %s31, 3
      %s565 = smul.addr %s564, 2
      %s566 = smul.addr %s565, 4
      %s567 = scalar_lea.vmem %s1, %s566
      %p568 = pneg %p78
      %p569 = pneg %p75
      %p570 = pneg %p99
      %p571 = pneg %p96
      %p572 = pneg %p120
      %p573 = pneg %p117
      %p574 = pneg %p141
      %p575 = pneg %p138
      %p576 = pneg %p162
      %p577 = pneg %p159
      %p578 = pneg %p183
      %p579 = pneg %p180
      %p580 = pneg %p204
      %p581 = pneg %p201
      %p582 = pneg %p225
      %p583 = pneg %p222
      %p584 = pneg %p246
      %p585 = pneg %p243
      %p586 = pneg %p267
      %p587 = pneg %p264
      %p588 = pneg %p288
      %p589 = pneg %p285
      %p590 = pneg %p309
      %p591 = pneg %p306
      %p592 = pneg %p330
      %p593 = pneg %p327
      %p594 = pneg %p351
      %p595 = pneg %p348
      %p596 = pneg %p372
      %p597 = pneg %p369
      %p598 = pneg %p393
      %p599 = pneg %p390
      %p600 = pneg %p414
      %p601 = pneg %p411
      %p602 = pneg %p440
      %p603 = pneg %p437
      %p604 = scmp.lt.s32.totalorder %s31, 3
      %s605 = scalar_select %p604, %s31, 3
      %s606 = smul.addr %s605, 2
      %s607 = smul.addr %s606, 8
      %s608 = scalar_lea.vmem %s18, %s607
      %p609 = pneg %p466
      %p610 = pneg %p463
      %p611 = scmp.lt.s32.totalorder %s31, 3
      %s612 = scalar_select %p611, %s31, 3
      %s613 = smul.addr %s612, 2
      %s614 = smul.addr %s613, 8
      %s615 = scalar_lea.vmem %s19, %s614
      %p616 = scmp.lt.s32.totalorder %s31, 3
      %s617 = scalar_select %p616, %s31, 3
      %s618 = smul.addr %s617, 192
      %s619 = smul.addr %s618, 4
      %s620 = scalar_lea.vmem %s0, %s619
      %p621 = scmp.lt.s32.totalorder %s31, 3
      %s622 = scalar_select %p621, %s31, 3
      %s623 = smul.addr %s622, 2
      %s624 = smul.addr %s623, 4
      %s625 = scalar_lea.vmem %s1, %s624
      %p626 = scmp.lt.s32.totalorder %s31, 3
      %s627 = scalar_select %p626, %s31, 3
      %s628 = smul.addr %s627, 2
      %s629 = smul.addr %s628, 8
      %s630 = scalar_lea.vmem %s18, %s629
      %p631 = scmp.lt.s32.totalorder %s31, 3
      %s632 = scalar_select %p631, %s31, 3
      %s633 = smul.addr %s632, 2
      %s634 = smul.addr %s633, 8
      %s635 = scalar_lea.vmem %s19, %s634
      %v637 = vld [vmem:[%s620] sm:$0xff]
      %v638 = vld [vmem:[%s620 + $0x8] sm:$0xff]
      %v639 = vld [vmem:[%s620 + $0x10] sm:$0xff]
      %v640 = vld [vmem:[%s620 + $0x18] sm:$0xff]
      %v641 = vld [vmem:[%s620 + $0x20] sm:$0xff]
      %v642 = vld [vmem:[%s620 + $0x28] sm:$0xff]
      %v643 = vld [vmem:[%s620 + $0x30] sm:$0xff]
      %v644 = vld [vmem:[%s620 + $0x38] sm:$0xff]
      %v645 = vld [vmem:[%s620 + $0x40] sm:$0xff]
      %v646 = vld [vmem:[%s620 + $0x48] sm:$0xff]
      %v647 = vld [vmem:[%s620 + $0x50] sm:$0xff]
      %v648 = vld [vmem:[%s620 + $0x58] sm:$0xff]
      %v649 = vld [vmem:[%s620 + $0x60] sm:$0xff]
      %v650 = vld [vmem:[%s620 + $0x68] sm:$0xff]
      %v651 = vld [vmem:[%s620 + $0x70] sm:$0xff]
      %v652 = vld [vmem:[%s620 + $0x78] sm:$0xff]
      %v653 = vld [vmem:[%s620 + $0x80] sm:$0xff]
      %v654 = vld [vmem:[%s620 + $0x88] sm:$0xff]
      %v655 = vld [vmem:[%s620 + $0x90] sm:$0xff]
      %v656 = vld [vmem:[%s620 + $0x98] sm:$0xff]
      %v657 = vld [vmem:[%s620 + $0xa0] sm:$0xff]
      %v658 = vld [vmem:[%s620 + $0xa8] sm:$0xff]
      %v659 = vld [vmem:[%s620 + $0xb0] sm:$0xff]
      %v660 = vld [vmem:[%s620 + $0xb8] sm:$0xff]
      %v661 = vld [vmem:[%s620 + $0xc0] sm:$0xff]
      %v662 = vld [vmem:[%s620 + $0xc8] sm:$0xff]
      %v663 = vld [vmem:[%s620 + $0xd0] sm:$0xff]
      %v664 = vld [vmem:[%s620 + $0xd8] sm:$0xff]
      %v665 = vld [vmem:[%s620 + $0xe0] sm:$0xff]
      %v666 = vld [vmem:[%s620 + $0xe8] sm:$0xff]
      %v667 = vld [vmem:[%s620 + $0xf0] sm:$0xff]
      %v668 = vld [vmem:[%s620 + $0xf8] sm:$0xff]
      %v669 = vld [vmem:[%s620 + $0x100] sm:$0xff]
      %v670 = vld [vmem:[%s620 + $0x108] sm:$0xff]
      %v671 = vld [vmem:[%s620 + $0x110] sm:$0xff]
      %v672 = vld [vmem:[%s620 + $0x118] sm:$0xff]
      %v673 = vld [vmem:[%s620 + $0x120] sm:$0xff]
      %v674 = vld [vmem:[%s620 + $0x128] sm:$0xff]
      %v675 = vld [vmem:[%s620 + $0x130] sm:$0xff]
      %v676 = vld [vmem:[%s620 + $0x138] sm:$0xff]
      %v677 = vld [vmem:[%s620 + $0x140] sm:$0xff]
      %v678 = vld [vmem:[%s620 + $0x148] sm:$0xff]
      %v679 = vld [vmem:[%s620 + $0x150] sm:$0xff]
      %v680 = vld [vmem:[%s620 + $0x158] sm:$0xff]
      %v681 = vld [vmem:[%s620 + $0x160] sm:$0xff]
      %v682 = vld [vmem:[%s620 + $0x168] sm:$0xff]
      %v683 = vld [vmem:[%s620 + $0x170] sm:$0xff]
      %v684 = vld [vmem:[%s620 + $0x178] sm:$0xff]
      %v685 = vld [vmem:[%s620 + $0x180] sm:$0xff]
      %v686 = vld [vmem:[%s620 + $0x188] sm:$0xff]
      %v687 = vld [vmem:[%s620 + $0x190] sm:$0xff]
      %v688 = vld [vmem:[%s620 + $0x198] sm:$0xff]
      %v689 = vld [vmem:[%s620 + $0x1a0] sm:$0xff]
      %v690 = vld [vmem:[%s620 + $0x1a8] sm:$0xff]
      %v691 = vld [vmem:[%s620 + $0x1b0] sm:$0xff]
      %v692 = vld [vmem:[%s620 + $0x1b8] sm:$0xff]
      %v693 = vld [vmem:[%s620 + $0x1c0] sm:$0xff]
      %v694 = vld [vmem:[%s620 + $0x1c8] sm:$0xff]
      %v695 = vld [vmem:[%s620 + $0x1d0] sm:$0xff]
      %v696 = vld [vmem:[%s620 + $0x1d8] sm:$0xff]
      %v697 = vld [vmem:[%s620 + $0x1e0] sm:$0xff]
      %v698 = vld [vmem:[%s620 + $0x1e8] sm:$0xff]
      %v699 = vld [vmem:[%s620 + $0x1f0] sm:$0xff]
      %v700 = vld [vmem:[%s620 + $0x1f8] sm:$0xff]
      %v701 = vld [vmem:[%s620 + $0x200] sm:$0xff]
      %v702 = vld [vmem:[%s620 + $0x208] sm:$0xff]
      %v703 = vld [vmem:[%s620 + $0x210] sm:$0xff]
      %v704 = vld [vmem:[%s620 + $0x218] sm:$0xff]
      %v705 = vld [vmem:[%s620 + $0x220] sm:$0xff]
      %v706 = vld [vmem:[%s620 + $0x228] sm:$0xff]
      %v707 = vld [vmem:[%s620 + $0x230] sm:$0xff]
      %v708 = vld [vmem:[%s620 + $0x238] sm:$0xff]
      %v709 = vld [vmem:[%s620 + $0x240] sm:$0xff]
      %v710 = vld [vmem:[%s620 + $0x248] sm:$0xff]
      %v711 = vld [vmem:[%s620 + $0x250] sm:$0xff]
      %v712 = vld [vmem:[%s620 + $0x258] sm:$0xff]
      %v713 = vld [vmem:[%s620 + $0x260] sm:$0xff]
      %v714 = vld [vmem:[%s620 + $0x268] sm:$0xff]
      %v715 = vld [vmem:[%s620 + $0x270] sm:$0xff]
      %v716 = vld [vmem:[%s620 + $0x278] sm:$0xff]
      %v717 = vld [vmem:[%s620 + $0x280] sm:$0xff]
      %v718 = vld [vmem:[%s620 + $0x288] sm:$0xff]
      %v719 = vld [vmem:[%s620 + $0x290] sm:$0xff]
      %v720 = vld [vmem:[%s620 + $0x298] sm:$0xff]
      %v721 = vld [vmem:[%s620 + $0x2a0] sm:$0xff]
      %v722 = vld [vmem:[%s620 + $0x2a8] sm:$0xff]
      %v723 = vld [vmem:[%s620 + $0x2b0] sm:$0xff]
      %v724 = vld [vmem:[%s620 + $0x2b8] sm:$0xff]
      %v725 = vld [vmem:[%s620 + $0x2c0] sm:$0xff]
      %v726 = vld [vmem:[%s620 + $0x2c8] sm:$0xff]
      %v727 = vld [vmem:[%s620 + $0x2d0] sm:$0xff]
      %v728 = vld [vmem:[%s620 + $0x2d8] sm:$0xff]
      %v729 = vld [vmem:[%s620 + $0x2e0] sm:$0xff]
      %v730 = vld [vmem:[%s620 + $0x2e8] sm:$0xff]
      %v731 = vld [vmem:[%s620 + $0x2f0] sm:$0xff]
      %v732 = vld [vmem:[%s620 + $0x2f8] sm:$0xff]
      %v733 = vld [vmem:[%s625] sm:$0xf]
      %v734 = vld [vmem:[%s625 + $0x4] sm:$0xf]
      %v735 = vunpack.c.l.bf16 %v733
      %v736 = vunpack.c.l.bf16 %v734
      %vm737 = vcmask 523264
      %v738 = vsel %vm737, %v735, 0.0
      %739 = vadd.xlane.f32.xlu0 %v738
      %v740 = vpop.xlane.xlu0 %739
      %v741 = vsel %vm737, %v736, 0.0
      %742 = vadd.xlane.f32.xlu0 %v741
      %v743 = vpop.xlane.xlu0 %742
      %v744 = vadd.f32 %v740, 1e-06
      %v745 = vadd.f32 %v743, 1e-06
      %v746 = vrcp.pop %v744
      %v747 = vmul.f32 %v744, %v746
      %v748 = vsub.f32 1.0, %v747
      %v749 = vmul.f32 %v746, %v748
      %v750 = vadd.f32 %v746, %v749
      %vm751 = vweird.f32 %v744
      %vm752 = vweird.f32 %v746
      %vm753 = vmor %vm751, %vm752
      %v754 = vsel %vm753, %v746, %v750
      %v755 = vand.u32 2147483647, %v744
      %vm756 = vcmp.eq.f32.partialorder %v755, 8.507059e+37
      %v757 = vand.u32 %v744, 2147483648
      %v758 = vor.u32 1.1754944e-38, %v757
      %v759 = vsel %vm756, %v758, %v754
      %v760 = vmul.f32 1.0, %v759
      %v761 = vrcp.pop %v745
      %v762 = vmul.f32 %v745, %v761
      %v763 = vsub.f32 1.0, %v762
      %v764 = vmul.f32 %v761, %v763
      %v765 = vadd.f32 %v761, %v764
      %vm766 = vweird.f32 %v745
      %vm767 = vweird.f32 %v761
      %vm768 = vmor %vm766, %vm767
      %v769 = vsel %vm768, %v761, %v765
      %v770 = vand.u32 2147483647, %v745
      %vm771 = vcmp.eq.f32.partialorder %v770, 8.507059e+37
      %v772 = vand.u32 %v745, 2147483648
      %v773 = vor.u32 1.1754944e-38, %v772
      %v774 = vsel %vm771, %v773, %v769
      %v775 = vmul.f32 1.0, %v774
      %v776 = vld [vmem:[%s2] sm:$0xf]
      %v777 = vld [vmem:[%s2 + $0x4] sm:$0xf]
      %v778 = vld [vmem:[%s2 + $0x8] sm:$0xf]
      %v779 = vld [vmem:[%s2 + $0xc] sm:$0xf]
      %v780 = vld [vmem:[%s2 + $0x10] sm:$0xf]
      %v781 = vld [vmem:[%s2 + $0x14] sm:$0xf]
      %v782 = vld [vmem:[%s2 + $0x18] sm:$0xf]
      %v783 = vld [vmem:[%s2 + $0x1c] sm:$0xf]
      %v784 = vld [vmem:[%s2 + $0x20] sm:$0xf]
      %v785 = vld [vmem:[%s2 + $0x24] sm:$0xf]
      %v786 = vld [vmem:[%s2 + $0x28] sm:$0xf]
      %v787 = vld [vmem:[%s2 + $0x2c] sm:$0xf]
      %v788 = vld [vmem:[%s2 + $0x30] sm:$0xf]
      %v789 = vld [vmem:[%s2 + $0x34] sm:$0xf]
      %v790 = vld [vmem:[%s2 + $0x38] sm:$0xf]
      %v791 = vld [vmem:[%s2 + $0x3c] sm:$0xf]
      %v792 = vld [vmem:[%s2 + $0x40] sm:$0xf]
      %v793 = vld [vmem:[%s2 + $0x44] sm:$0xf]
      %v794 = vld [vmem:[%s2 + $0x48] sm:$0xf]
      %v795 = vld [vmem:[%s2 + $0x4c] sm:$0xf]
      %v796 = vld [vmem:[%s2 + $0x50] sm:$0xf]
      %v797 = vld [vmem:[%s2 + $0x54] sm:$0xf]
      %v798 = vld [vmem:[%s2 + $0x58] sm:$0xf]
      %v799 = vld [vmem:[%s2 + $0x5c] sm:$0xf]
      %v800 = vld [vmem:[%s2 + $0x60] sm:$0xf]
      %v801 = vld [vmem:[%s2 + $0x64] sm:$0xf]
      %v802 = vld [vmem:[%s2 + $0x68] sm:$0xf]
      %v803 = vld [vmem:[%s2 + $0x6c] sm:$0xf]
      %v804 = vld [vmem:[%s2 + $0x70] sm:$0xf]
      %v805 = vld [vmem:[%s2 + $0x74] sm:$0xf]
      %v806 = vld [vmem:[%s2 + $0x78] sm:$0xf]
      %v807 = vld [vmem:[%s2 + $0x7c] sm:$0xf]
      %v808 = vld [vmem:[%s2 + $0x80] sm:$0xf]
      %v809 = vld [vmem:[%s2 + $0x84] sm:$0xf]
      %v810 = vld [vmem:[%s2 + $0x88] sm:$0xf]
      %v811 = vld [vmem:[%s2 + $0x8c] sm:$0xf]
      %v812 = vld [vmem:[%s2 + $0x90] sm:$0xf]
      %v813 = vld [vmem:[%s2 + $0x94] sm:$0xf]
      %v814 = vld [vmem:[%s2 + $0x98] sm:$0xf]
      %v815 = vld [vmem:[%s2 + $0x9c] sm:$0xf]
      %v816 = vld [vmem:[%s2 + $0xa0] sm:$0xf]
      %v817 = vld [vmem:[%s2 + $0xa4] sm:$0xf]
      %v818 = vld [vmem:[%s2 + $0xa8] sm:$0xf]
      %v819 = vld [vmem:[%s2 + $0xac] sm:$0xf]
      %v820 = vld [vmem:[%s2 + $0xb0] sm:$0xf]
      %v821 = vld [vmem:[%s2 + $0xb4] sm:$0xf]
      %v822 = vld [vmem:[%s2 + $0xb8] sm:$0xf]
      %v823 = vld [vmem:[%s2 + $0xbc] sm:$0xf]
      %v824 = vld [vmem:[%s2 + $0xc0] sm:$0xf]
      %v825 = vld [vmem:[%s2 + $0xc4] sm:$0xf]
      %v826 = vld [vmem:[%s2 + $0xc8] sm:$0xf]
      %v827 = vld [vmem:[%s2 + $0xcc] sm:$0xf]
      %v828 = vld [vmem:[%s2 + $0xd0] sm:$0xf]
      %v829 = vld [vmem:[%s2 + $0xd4] sm:$0xf]
      %v830 = vld [vmem:[%s2 + $0xd8] sm:$0xf]
      %v831 = vld [vmem:[%s2 + $0xdc] sm:$0xf]
      %v832 = vld [vmem:[%s2 + $0xe0] sm:$0xf]
      %v833 = vld [vmem:[%s2 + $0xe4] sm:$0xf]
      %v834 = vld [vmem:[%s2 + $0xe8] sm:$0xf]
      %v835 = vld [vmem:[%s2 + $0xec] sm:$0xf]
      %v836 = vld [vmem:[%s2 + $0xf0] sm:$0xf]
      %v837 = vld [vmem:[%s2 + $0xf4] sm:$0xf]
      %v838 = vld [vmem:[%s2 + $0xf8] sm:$0xf]
      %v839 = vld [vmem:[%s2 + $0xfc] sm:$0xf]
      %v840 = vld [vmem:[%s2 + $0x100] sm:$0xf]
      %v841 = vld [vmem:[%s2 + $0x104] sm:$0xf]
      %v842 = vld [vmem:[%s2 + $0x108] sm:$0xf]
      %v843 = vld [vmem:[%s2 + $0x10c] sm:$0xf]
      %v844 = vld [vmem:[%s2 + $0x110] sm:$0xf]
      %v845 = vld [vmem:[%s2 + $0x114] sm:$0xf]
      %v846 = vld [vmem:[%s2 + $0x118] sm:$0xf]
      %v847 = vld [vmem:[%s2 + $0x11c] sm:$0xf]
      %v848 = vld [vmem:[%s2 + $0x120] sm:$0xf]
      %v849 = vld [vmem:[%s2 + $0x124] sm:$0xf]
      %v850 = vld [vmem:[%s2 + $0x128] sm:$0xf]
      %v851 = vld [vmem:[%s2 + $0x12c] sm:$0xf]
      %v852 = vld [vmem:[%s2 + $0x130] sm:$0xf]
      %v853 = vld [vmem:[%s2 + $0x134] sm:$0xf]
      %v854 = vld [vmem:[%s2 + $0x138] sm:$0xf]
      %v855 = vld [vmem:[%s2 + $0x13c] sm:$0xf]
      %v856 = vld [vmem:[%s2 + $0x140] sm:$0xf]
      %v857 = vld [vmem:[%s2 + $0x144] sm:$0xf]
      %v858 = vld [vmem:[%s2 + $0x148] sm:$0xf]
      %v859 = vld [vmem:[%s2 + $0x14c] sm:$0xf]
      %v860 = vld [vmem:[%s2 + $0x150] sm:$0xf]
      %v861 = vld [vmem:[%s2 + $0x154] sm:$0xf]
      %v862 = vld [vmem:[%s2 + $0x158] sm:$0xf]
      %v863 = vld [vmem:[%s2 + $0x15c] sm:$0xf]
      %v864 = vld [vmem:[%s2 + $0x160] sm:$0xf]
      %v865 = vld [vmem:[%s2 + $0x164] sm:$0xf]
      %v866 = vld [vmem:[%s2 + $0x168] sm:$0xf]
      %v867 = vld [vmem:[%s2 + $0x16c] sm:$0xf]
      %v868 = vld [vmem:[%s2 + $0x170] sm:$0xf]
      %v869 = vld [vmem:[%s2 + $0x174] sm:$0xf]
      %v870 = vld [vmem:[%s2 + $0x178] sm:$0xf]
      %v871 = vld [vmem:[%s2 + $0x17c] sm:$0xf]
      %v872 = vld [vmem:[%s2 + $0x180] sm:$0xf]
      %v873 = vld [vmem:[%s2 + $0x184] sm:$0xf]
      %v874 = vld [vmem:[%s2 + $0x188] sm:$0xf]
      %v875 = vld [vmem:[%s2 + $0x18c] sm:$0xf]
      %v876 = vld [vmem:[%s2 + $0x190] sm:$0xf]
      %v877 = vld [vmem:[%s2 + $0x194] sm:$0xf]
      %v878 = vld [vmem:[%s2 + $0x198] sm:$0xf]
      %v879 = vld [vmem:[%s2 + $0x19c] sm:$0xf]
      %v880 = vld [vmem:[%s2 + $0x1a0] sm:$0xf]
      %v881 = vld [vmem:[%s2 + $0x1a4] sm:$0xf]
      %v882 = vld [vmem:[%s2 + $0x1a8] sm:$0xf]
      %v883 = vld [vmem:[%s2 + $0x1ac] sm:$0xf]
      %v884 = vld [vmem:[%s2 + $0x1b0] sm:$0xf]
      %v885 = vld [vmem:[%s2 + $0x1b4] sm:$0xf]
      %v886 = vld [vmem:[%s2 + $0x1b8] sm:$0xf]
      %v887 = vld [vmem:[%s2 + $0x1bc] sm:$0xf]
      %v888 = vld [vmem:[%s2 + $0x1c0] sm:$0xf]
      %v889 = vld [vmem:[%s2 + $0x1c4] sm:$0xf]
      %v890 = vld [vmem:[%s2 + $0x1c8] sm:$0xf]
      %v891 = vld [vmem:[%s2 + $0x1cc] sm:$0xf]
      %v892 = vld [vmem:[%s2 + $0x1d0] sm:$0xf]
      %v893 = vld [vmem:[%s2 + $0x1d4] sm:$0xf]
      %v894 = vld [vmem:[%s2 + $0x1d8] sm:$0xf]
      %v895 = vld [vmem:[%s2 + $0x1dc] sm:$0xf]
      %v896 = vld [vmem:[%s2 + $0x1e0] sm:$0xf]
      %v897 = vld [vmem:[%s2 + $0x1e4] sm:$0xf]
      %v898 = vld [vmem:[%s2 + $0x1e8] sm:$0xf]
      %v899 = vld [vmem:[%s2 + $0x1ec] sm:$0xf]
      %v900 = vld [vmem:[%s2 + $0x1f0] sm:$0xf]
      %v901 = vld [vmem:[%s2 + $0x1f4] sm:$0xf]
      %v902 = vld [vmem:[%s2 + $0x1f8] sm:$0xf]
      %v903 = vld [vmem:[%s2 + $0x1fc] sm:$0xf]
      %v904 = vld [vmem:[%s2 + $0x200] sm:$0xf]
      %v905 = vld [vmem:[%s2 + $0x204] sm:$0xf]
      %v906 = vld [vmem:[%s2 + $0x208] sm:$0xf]
      %v907 = vld [vmem:[%s2 + $0x20c] sm:$0xf]
      %v908 = vld [vmem:[%s2 + $0x210] sm:$0xf]
      %v909 = vld [vmem:[%s2 + $0x214] sm:$0xf]
      %v910 = vld [vmem:[%s2 + $0x218] sm:$0xf]
      %v911 = vld [vmem:[%s2 + $0x21c] sm:$0xf]
      %v912 = vld [vmem:[%s2 + $0x220] sm:$0xf]
      %v913 = vld [vmem:[%s2 + $0x224] sm:$0xf]
      %v914 = vld [vmem:[%s2 + $0x228] sm:$0xf]
      %v915 = vld [vmem:[%s2 + $0x22c] sm:$0xf]
      %v916 = vld [vmem:[%s2 + $0x230] sm:$0xf]
      %v917 = vld [vmem:[%s2 + $0x234] sm:$0xf]
      %v918 = vld [vmem:[%s2 + $0x238] sm:$0xf]
      %v919 = vld [vmem:[%s2 + $0x23c] sm:$0xf]
      %v920 = vld [vmem:[%s2 + $0x240] sm:$0xf]
      %v921 = vld [vmem:[%s2 + $0x244] sm:$0xf]
      %v922 = vld [vmem:[%s2 + $0x248] sm:$0xf]
      %v923 = vld [vmem:[%s2 + $0x24c] sm:$0xf]
      %v924 = vld [vmem:[%s2 + $0x250] sm:$0xf]
      %v925 = vld [vmem:[%s2 + $0x254] sm:$0xf]
      %v926 = vld [vmem:[%s2 + $0x258] sm:$0xf]
      %v927 = vld [vmem:[%s2 + $0x25c] sm:$0xf]
      %v928 = vld [vmem:[%s2 + $0x260] sm:$0xf]
      %v929 = vld [vmem:[%s2 + $0x264] sm:$0xf]
      %v930 = vld [vmem:[%s2 + $0x268] sm:$0xf]
      %v931 = vld [vmem:[%s2 + $0x26c] sm:$0xf]
      %v932 = vld [vmem:[%s2 + $0x270] sm:$0xf]
      %v933 = vld [vmem:[%s2 + $0x274] sm:$0xf]
      %v934 = vld [vmem:[%s2 + $0x278] sm:$0xf]
      %v935 = vld [vmem:[%s2 + $0x27c] sm:$0xf]
      %v936 = vld [vmem:[%s2 + $0x280] sm:$0xf]
      %v937 = vld [vmem:[%s2 + $0x284] sm:$0xf]
      %v938 = vld [vmem:[%s2 + $0x288] sm:$0xf]
      %v939 = vld [vmem:[%s2 + $0x28c] sm:$0xf]
      %v940 = vld [vmem:[%s2 + $0x290] sm:$0xf]
      %v941 = vld [vmem:[%s2 + $0x294] sm:$0xf]
      %v942 = vld [vmem:[%s2 + $0x298] sm:$0xf]
      %v943 = vld [vmem:[%s2 + $0x29c] sm:$0xf]
      %v944 = vld [vmem:[%s2 + $0x2a0] sm:$0xf]
      %v945 = vld [vmem:[%s2 + $0x2a4] sm:$0xf]
      %v946 = vld [vmem:[%s2 + $0x2a8] sm:$0xf]
      %v947 = vld [vmem:[%s2 + $0x2ac] sm:$0xf]
      %v948 = vld [vmem:[%s2 + $0x2b0] sm:$0xf]
      %v949 = vld [vmem:[%s2 + $0x2b4] sm:$0xf]
      %v950 = vld [vmem:[%s2 + $0x2b8] sm:$0xf]
      %v951 = vld [vmem:[%s2 + $0x2bc] sm:$0xf]
      %v952 = vld [vmem:[%s2 + $0x2c0] sm:$0xf]
      %v953 = vld [vmem:[%s2 + $0x2c4] sm:$0xf]
      %v954 = vld [vmem:[%s2 + $0x2c8] sm:$0xf]
      %v955 = vld [vmem:[%s2 + $0x2cc] sm:$0xf]
      %v956 = vld [vmem:[%s2 + $0x2d0] sm:$0xf]
      %v957 = vld [vmem:[%s2 + $0x2d4] sm:$0xf]
      %v958 = vld [vmem:[%s2 + $0x2d8] sm:$0xf]
      %v959 = vld [vmem:[%s2 + $0x2dc] sm:$0xf]
      %v960 = vld [vmem:[%s2 + $0x2e0] sm:$0xf]
      %v961 = vld [vmem:[%s2 + $0x2e4] sm:$0xf]
      %v962 = vld [vmem:[%s2 + $0x2e8] sm:$0xf]
      %v963 = vld [vmem:[%s2 + $0x2ec] sm:$0xf]
      %v964 = vld [vmem:[%s2 + $0x2f0] sm:$0xf]
      %v965 = vld [vmem:[%s2 + $0x2f4] sm:$0xf]
      %v966 = vld [vmem:[%s2 + $0x2f8] sm:$0xf]
      %v967 = vld [vmem:[%s2 + $0x2fc] sm:$0xf]
      %v968 = vld [vmem:[%s2 + $0x300] sm:$0xf]
      %v969 = vld [vmem:[%s2 + $0x304] sm:$0xf]
      %v970 = vld [vmem:[%s2 + $0x308] sm:$0xf]
      %v971 = vld [vmem:[%s2 + $0x30c] sm:$0xf]
      %v972 = vld [vmem:[%s2 + $0x310] sm:$0xf]
      %v973 = vld [vmem:[%s2 + $0x314] sm:$0xf]
      %v974 = vld [vmem:[%s2 + $0x318] sm:$0xf]
      %v975 = vld [vmem:[%s2 + $0x31c] sm:$0xf]
      %v976 = vld [vmem:[%s2 + $0x320] sm:$0xf]
      %v977 = vld [vmem:[%s2 + $0x324] sm:$0xf]
      %v978 = vld [vmem:[%s2 + $0x328] sm:$0xf]
      %v979 = vld [vmem:[%s2 + $0x32c] sm:$0xf]
      %v980 = vld [vmem:[%s2 + $0x330] sm:$0xf]
      %v981 = vld [vmem:[%s2 + $0x334] sm:$0xf]
      %v982 = vld [vmem:[%s2 + $0x338] sm:$0xf]
      %v983 = vld [vmem:[%s2 + $0x33c] sm:$0xf]
      %v984 = vld [vmem:[%s2 + $0x340] sm:$0xf]
      %v985 = vld [vmem:[%s2 + $0x344] sm:$0xf]
      %v986 = vld [vmem:[%s2 + $0x348] sm:$0xf]
      %v987 = vld [vmem:[%s2 + $0x34c] sm:$0xf]
      %v988 = vld [vmem:[%s2 + $0x350] sm:$0xf]
      %v989 = vld [vmem:[%s2 + $0x354] sm:$0xf]
      %v990 = vld [vmem:[%s2 + $0x358] sm:$0xf]
      %v991 = vld [vmem:[%s2 + $0x35c] sm:$0xf]
      %v992 = vld [vmem:[%s2 + $0x360] sm:$0xf]
      %v993 = vld [vmem:[%s2 + $0x364] sm:$0xf]
      %v994 = vld [vmem:[%s2 + $0x368] sm:$0xf]
      %v995 = vld [vmem:[%s2 + $0x36c] sm:$0xf]
      %v996 = vld [vmem:[%s2 + $0x370] sm:$0xf]
      %v997 = vld [vmem:[%s2 + $0x374] sm:$0xf]
      %v998 = vld [vmem:[%s2 + $0x378] sm:$0xf]
      %v999 = vld [vmem:[%s2 + $0x37c] sm:$0xf]
      %v1000 = vld [vmem:[%s2 + $0x380] sm:$0xf]
      %v1001 = vld [vmem:[%s2 + $0x384] sm:$0xf]
      %v1002 = vld [vmem:[%s2 + $0x388] sm:$0xf]
      %v1003 = vld [vmem:[%s2 + $0x38c] sm:$0xf]
      %v1004 = vld [vmem:[%s2 + $0x390] sm:$0xf]
      %v1005 = vld [vmem:[%s2 + $0x394] sm:$0xf]
      %v1006 = vld [vmem:[%s2 + $0x398] sm:$0xf]
      %v1007 = vld [vmem:[%s2 + $0x39c] sm:$0xf]
      %v1008 = vld [vmem:[%s2 + $0x3a0] sm:$0xf]
      %v1009 = vld [vmem:[%s2 + $0x3a4] sm:$0xf]
      %v1010 = vld [vmem:[%s2 + $0x3a8] sm:$0xf]
      %v1011 = vld [vmem:[%s2 + $0x3ac] sm:$0xf]
      %v1012 = vld [vmem:[%s2 + $0x3b0] sm:$0xf]
      %v1013 = vld [vmem:[%s2 + $0x3b4] sm:$0xf]
      %v1014 = vld [vmem:[%s2 + $0x3b8] sm:$0xf]
      %v1015 = vld [vmem:[%s2 + $0x3bc] sm:$0xf]
      %v1016 = vld [vmem:[%s2 + $0x3c0] sm:$0xf]
      %v1017 = vld [vmem:[%s2 + $0x3c4] sm:$0xf]
      %v1018 = vld [vmem:[%s2 + $0x3c8] sm:$0xf]
      %v1019 = vld [vmem:[%s2 + $0x3cc] sm:$0xf]
      %v1020 = vld [vmem:[%s2 + $0x3d0] sm:$0xf]
      %v1021 = vld [vmem:[%s2 + $0x3d4] sm:$0xf]
      %v1022 = vld [vmem:[%s2 + $0x3d8] sm:$0xf]
      %v1023 = vld [vmem:[%s2 + $0x3dc] sm:$0xf]
      %v1024 = vld [vmem:[%s2 + $0x3e0] sm:$0xf]
      %v1025 = vld [vmem:[%s2 + $0x3e4] sm:$0xf]
      %v1026 = vld [vmem:[%s2 + $0x3e8] sm:$0xf]
      %v1027 = vld [vmem:[%s2 + $0x3ec] sm:$0xf]
      %v1028 = vld [vmem:[%s2 + $0x3f0] sm:$0xf]
      %v1029 = vld [vmem:[%s2 + $0x3f4] sm:$0xf]
      %v1030 = vld [vmem:[%s2 + $0x3f8] sm:$0xf]
      %v1031 = vld [vmem:[%s2 + $0x3fc] sm:$0xf]
      %v1032 = vld [vmem:[%s2 + $0x400] sm:$0xf]
      %v1033 = vld [vmem:[%s2 + $0x404] sm:$0xf]
      %v1034 = vld [vmem:[%s2 + $0x408] sm:$0xf]
      %v1035 = vld [vmem:[%s2 + $0x40c] sm:$0xf]
      %v1036 = vld [vmem:[%s2 + $0x410] sm:$0xf]
      %v1037 = vld [vmem:[%s2 + $0x414] sm:$0xf]
      %v1038 = vld [vmem:[%s2 + $0x418] sm:$0xf]
      %v1039 = vld [vmem:[%s2 + $0x41c] sm:$0xf]
      %v1040 = vld [vmem:[%s2 + $0x420] sm:$0xf]
      %v1041 = vld [vmem:[%s2 + $0x424] sm:$0xf]
      %v1042 = vld [vmem:[%s2 + $0x428] sm:$0xf]
      %v1043 = vld [vmem:[%s2 + $0x42c] sm:$0xf]
      %v1044 = vld [vmem:[%s2 + $0x430] sm:$0xf]
      %v1045 = vld [vmem:[%s2 + $0x434] sm:$0xf]
      %v1046 = vld [vmem:[%s2 + $0x438] sm:$0xf]
      %v1047 = vld [vmem:[%s2 + $0x43c] sm:$0xf]
      %v1048 = vld [vmem:[%s2 + $0x440] sm:$0xf]
      %v1049 = vld [vmem:[%s2 + $0x444] sm:$0xf]
      %v1050 = vld [vmem:[%s2 + $0x448] sm:$0xf]
      %v1051 = vld [vmem:[%s2 + $0x44c] sm:$0xf]
      %v1052 = vld [vmem:[%s2 + $0x450] sm:$0xf]
      %v1053 = vld [vmem:[%s2 + $0x454] sm:$0xf]
      %v1054 = vld [vmem:[%s2 + $0x458] sm:$0xf]
      %v1055 = vld [vmem:[%s2 + $0x45c] sm:$0xf]
      %v1056 = vld [vmem:[%s2 + $0x460] sm:$0xf]
      %v1057 = vld [vmem:[%s2 + $0x464] sm:$0xf]
      %v1058 = vld [vmem:[%s2 + $0x468] sm:$0xf]
      %v1059 = vld [vmem:[%s2 + $0x46c] sm:$0xf]
      %v1060 = vld [vmem:[%s2 + $0x470] sm:$0xf]
      %v1061 = vld [vmem:[%s2 + $0x474] sm:$0xf]
      %v1062 = vld [vmem:[%s2 + $0x478] sm:$0xf]
      %v1063 = vld [vmem:[%s2 + $0x47c] sm:$0xf]
      %v1064 = vld [vmem:[%s2 + $0x480] sm:$0xf]
      %v1065 = vld [vmem:[%s2 + $0x484] sm:$0xf]
      %v1066 = vld [vmem:[%s2 + $0x488] sm:$0xf]
      %v1067 = vld [vmem:[%s2 + $0x48c] sm:$0xf]
      %v1068 = vld [vmem:[%s2 + $0x490] sm:$0xf]
      %v1069 = vld [vmem:[%s2 + $0x494] sm:$0xf]
      %v1070 = vld [vmem:[%s2 + $0x498] sm:$0xf]
      %v1071 = vld [vmem:[%s2 + $0x49c] sm:$0xf]
      %v1072 = vld [vmem:[%s2 + $0x4a0] sm:$0xf]
      %v1073 = vld [vmem:[%s2 + $0x4a4] sm:$0xf]
      %v1074 = vld [vmem:[%s2 + $0x4a8] sm:$0xf]
      %v1075 = vld [vmem:[%s2 + $0x4ac] sm:$0xf]
      %v1076 = vld [vmem:[%s2 + $0x4b0] sm:$0xf]
      %v1077 = vld [vmem:[%s2 + $0x4b4] sm:$0xf]
      %v1078 = vld [vmem:[%s2 + $0x4b8] sm:$0xf]
      %v1079 = vld [vmem:[%s2 + $0x4bc] sm:$0xf]
      %v1080 = vld [vmem:[%s2 + $0x4c0] sm:$0xf]
      %v1081 = vld [vmem:[%s2 + $0x4c4] sm:$0xf]
      %v1082 = vld [vmem:[%s2 + $0x4c8] sm:$0xf]
      %v1083 = vld [vmem:[%s2 + $0x4cc] sm:$0xf]
      %v1084 = vld [vmem:[%s2 + $0x4d0] sm:$0xf]
      %v1085 = vld [vmem:[%s2 + $0x4d4] sm:$0xf]
      %v1086 = vld [vmem:[%s2 + $0x4d8] sm:$0xf]
      %v1087 = vld [vmem:[%s2 + $0x4dc] sm:$0xf]
      %v1088 = vld [vmem:[%s2 + $0x4e0] sm:$0xf]
      %v1089 = vld [vmem:[%s2 + $0x4e4] sm:$0xf]
      %v1090 = vld [vmem:[%s2 + $0x4e8] sm:$0xf]
      %v1091 = vld [vmem:[%s2 + $0x4ec] sm:$0xf]
      %v1092 = vld [vmem:[%s2 + $0x4f0] sm:$0xf]
      %v1093 = vld [vmem:[%s2 + $0x4f4] sm:$0xf]
      %v1094 = vld [vmem:[%s2 + $0x4f8] sm:$0xf]
      %v1095 = vld [vmem:[%s2 + $0x4fc] sm:$0xf]
      %v1096 = vld [vmem:[%s2 + $0x500] sm:$0xf]
      %v1097 = vld [vmem:[%s2 + $0x504] sm:$0xf]
      %v1098 = vld [vmem:[%s2 + $0x508] sm:$0xf]
      %v1099 = vld [vmem:[%s2 + $0x50c] sm:$0xf]
      %v1100 = vld [vmem:[%s2 + $0x510] sm:$0xf]
      %v1101 = vld [vmem:[%s2 + $0x514] sm:$0xf]
      %v1102 = vld [vmem:[%s2 + $0x518] sm:$0xf]
      %v1103 = vld [vmem:[%s2 + $0x51c] sm:$0xf]
      %v1104 = vld [vmem:[%s2 + $0x520] sm:$0xf]
      %v1105 = vld [vmem:[%s2 + $0x524] sm:$0xf]
      %v1106 = vld [vmem:[%s2 + $0x528] sm:$0xf]
      %v1107 = vld [vmem:[%s2 + $0x52c] sm:$0xf]
      %v1108 = vld [vmem:[%s2 + $0x530] sm:$0xf]
      %v1109 = vld [vmem:[%s2 + $0x534] sm:$0xf]
      %v1110 = vld [vmem:[%s2 + $0x538] sm:$0xf]
      %v1111 = vld [vmem:[%s2 + $0x53c] sm:$0xf]
      %v1112 = vld [vmem:[%s2 + $0x540] sm:$0xf]
      %v1113 = vld [vmem:[%s2 + $0x544] sm:$0xf]
      %v1114 = vld [vmem:[%s2 + $0x548] sm:$0xf]
      %v1115 = vld [vmem:[%s2 + $0x54c] sm:$0xf]
      %v1116 = vld [vmem:[%s2 + $0x550] sm:$0xf]
      %v1117 = vld [vmem:[%s2 + $0x554] sm:$0xf]
      %v1118 = vld [vmem:[%s2 + $0x558] sm:$0xf]
      %v1119 = vld [vmem:[%s2 + $0x55c] sm:$0xf]
      %v1120 = vld [vmem:[%s2 + $0x560] sm:$0xf]
      %v1121 = vld [vmem:[%s2 + $0x564] sm:$0xf]
      %v1122 = vld [vmem:[%s2 + $0x568] sm:$0xf]
      %v1123 = vld [vmem:[%s2 + $0x56c] sm:$0xf]
      %v1124 = vld [vmem:[%s2 + $0x570] sm:$0xf]
      %v1125 = vld [vmem:[%s2 + $0x574] sm:$0xf]
      %v1126 = vld [vmem:[%s2 + $0x578] sm:$0xf]
      %v1127 = vld [vmem:[%s2 + $0x57c] sm:$0xf]
      %v1128 = vld [vmem:[%s2 + $0x580] sm:$0xf]
      %v1129 = vld [vmem:[%s2 + $0x584] sm:$0xf]
      %v1130 = vld [vmem:[%s2 + $0x588] sm:$0xf]
      %v1131 = vld [vmem:[%s2 + $0x58c] sm:$0xf]
      %v1132 = vld [vmem:[%s2 + $0x590] sm:$0xf]
      %v1133 = vld [vmem:[%s2 + $0x594] sm:$0xf]
      %v1134 = vld [vmem:[%s2 + $0x598] sm:$0xf]
      %v1135 = vld [vmem:[%s2 + $0x59c] sm:$0xf]
      %v1136 = vld [vmem:[%s2 + $0x5a0] sm:$0xf]
      %v1137 = vld [vmem:[%s2 + $0x5a4] sm:$0xf]
      %v1138 = vld [vmem:[%s2 + $0x5a8] sm:$0xf]
      %v1139 = vld [vmem:[%s2 + $0x5ac] sm:$0xf]
      %v1140 = vld [vmem:[%s2 + $0x5b0] sm:$0xf]
      %v1141 = vld [vmem:[%s2 + $0x5b4] sm:$0xf]
      %v1142 = vld [vmem:[%s2 + $0x5b8] sm:$0xf]
      %v1143 = vld [vmem:[%s2 + $0x5bc] sm:$0xf]
      %v1144 = vld [vmem:[%s2 + $0x5c0] sm:$0xf]
      %v1145 = vld [vmem:[%s2 + $0x5c4] sm:$0xf]
      %v1146 = vld [vmem:[%s2 + $0x5c8] sm:$0xf]
      %v1147 = vld [vmem:[%s2 + $0x5cc] sm:$0xf]
      %v1148 = vld [vmem:[%s2 + $0x5d0] sm:$0xf]
      %v1149 = vld [vmem:[%s2 + $0x5d4] sm:$0xf]
      %v1150 = vld [vmem:[%s2 + $0x5d8] sm:$0xf]
      %v1151 = vld [vmem:[%s2 + $0x5dc] sm:$0xf]
      %v1152 = vld [vmem:[%s2 + $0x5e0] sm:$0xf]
      %v1153 = vld [vmem:[%s2 + $0x5e4] sm:$0xf]
      %v1154 = vld [vmem:[%s2 + $0x5e8] sm:$0xf]
      %v1155 = vld [vmem:[%s2 + $0x5ec] sm:$0xf]
      %v1156 = vld [vmem:[%s2 + $0x5f0] sm:$0xf]
      %v1157 = vld [vmem:[%s2 + $0x5f4] sm:$0xf]
      %v1158 = vld [vmem:[%s2 + $0x5f8] sm:$0xf]
      %v1159 = vld [vmem:[%s2 + $0x5fc] sm:$0xf]
      %v1160 = vld [vmem:[%s3] sm:$0x1]
      %v1162 = vperm.slane %v1160, 0
      %v1260 = vunpack.c.l.b16 %v637
      %v1261 = vunpack.c.h.b16 %v637
      %v1262 = vunpack.c.l.b16 %v638
      %v1263 = vunpack.c.h.b16 %v638
      %v1264 = vunpack.c.l.b16 %v639
      %v1265 = vunpack.c.h.b16 %v639
      %v1266 = vunpack.c.l.b16 %v640
      %v1267 = vunpack.c.h.b16 %v640
      %v1268 = vunpack.c.l.b16 %v641
      %v1269 = vunpack.c.h.b16 %v641
      %v1270 = vunpack.c.l.b16 %v642
      %v1271 = vunpack.c.h.b16 %v642
      %v1272 = vunpack.c.l.b16 %v643
      %v1273 = vunpack.c.h.b16 %v643
      %v1274 = vunpack.c.l.b16 %v644
      %v1275 = vunpack.c.h.b16 %v644
      %v1276 = vunpack.c.l.b16 %v645
      %v1277 = vunpack.c.h.b16 %v645
      %v1278 = vunpack.c.l.b16 %v646
      %v1279 = vunpack.c.h.b16 %v646
      %v1280 = vunpack.c.l.b16 %v647
      %v1281 = vunpack.c.h.b16 %v647
      %v1282 = vunpack.c.l.b16 %v648
      %v1283 = vunpack.c.h.b16 %v648
      %v1284 = vunpack.c.l.b16 %v649
      %v1285 = vunpack.c.h.b16 %v649
      %v1286 = vunpack.c.l.b16 %v650
      %v1287 = vunpack.c.h.b16 %v650
      %v1288 = vunpack.c.l.b16 %v651
      %v1289 = vunpack.c.h.b16 %v651
      %v1290 = vunpack.c.l.b16 %v652
      %v1291 = vunpack.c.h.b16 %v652
      %v1292 = vunpack.c.l.b16 %v653
      %v1293 = vunpack.c.h.b16 %v653
      %v1294 = vunpack.c.l.b16 %v654
      %v1295 = vunpack.c.h.b16 %v654
      %v1296 = vunpack.c.l.b16 %v655
      %v1297 = vunpack.c.h.b16 %v655
      %v1298 = vunpack.c.l.b16 %v656
      %v1299 = vunpack.c.h.b16 %v656
      %v1300 = vunpack.c.l.b16 %v657
      %v1301 = vunpack.c.h.b16 %v657
      %v1302 = vunpack.c.l.b16 %v658
      %v1303 = vunpack.c.h.b16 %v658
      %v1304 = vunpack.c.l.b16 %v659
      %v1305 = vunpack.c.h.b16 %v659
      %v1306 = vunpack.c.l.b16 %v660
      %v1307 = vunpack.c.h.b16 %v660
      %v1308 = vunpack.c.l.b16 %v661
      %v1309 = vunpack.c.h.b16 %v661
      %v1310 = vunpack.c.l.b16 %v662
      %v1311 = vunpack.c.h.b16 %v662
      %v1312 = vunpack.c.l.b16 %v663
      %v1313 = vunpack.c.h.b16 %v663
      %v1314 = vunpack.c.l.b16 %v664
      %v1315 = vunpack.c.h.b16 %v664
      %v1316 = vunpack.c.l.b16 %v665
      %v1317 = vunpack.c.h.b16 %v665
      %v1318 = vunpack.c.l.b16 %v666
      %v1319 = vunpack.c.h.b16 %v666
      %v1320 = vunpack.c.l.b16 %v667
      %v1321 = vunpack.c.h.b16 %v667
      %v1322 = vunpack.c.l.b16 %v668
      %v1323 = vunpack.c.h.b16 %v668
      %v1324 = vunpack.c.l.b16 %v669
      %v1325 = vunpack.c.h.b16 %v669
      %v1326 = vunpack.c.l.b16 %v670
      %v1327 = vunpack.c.h.b16 %v670
      %v1328 = vunpack.c.l.b16 %v671
      %v1329 = vunpack.c.h.b16 %v671
      %v1330 = vunpack.c.l.b16 %v672
      %v1331 = vunpack.c.h.b16 %v672
      %v1332 = vunpack.c.l.b16 %v673
      %v1333 = vunpack.c.h.b16 %v673
      %v1334 = vunpack.c.l.b16 %v674
      %v1335 = vunpack.c.h.b16 %v674
      %v1336 = vunpack.c.l.b16 %v675
      %v1337 = vunpack.c.h.b16 %v675
      %v1338 = vunpack.c.l.b16 %v676
      %v1339 = vunpack.c.h.b16 %v676
      %v1340 = vunpack.c.l.b16 %v677
      %v1341 = vunpack.c.h.b16 %v677
      %v1342 = vunpack.c.l.b16 %v678
      %v1343 = vunpack.c.h.b16 %v678
      %v1344 = vunpack.c.l.b16 %v679
      %v1345 = vunpack.c.h.b16 %v679
      %v1346 = vunpack.c.l.b16 %v680
      %v1347 = vunpack.c.h.b16 %v680
      %v1348 = vunpack.c.l.b16 %v681
      %v1349 = vunpack.c.h.b16 %v681
      %v1350 = vunpack.c.l.b16 %v682
      %v1351 = vunpack.c.h.b16 %v682
      %v1352 = vunpack.c.l.b16 %v683
      %v1353 = vunpack.c.h.b16 %v683
      %v1354 = vunpack.c.l.b16 %v684
      %v1355 = vunpack.c.h.b16 %v684
      %v1356 = vunpack.c.l.b16 %v685
      %v1357 = vunpack.c.h.b16 %v685
      %v1358 = vunpack.c.l.b16 %v686
      %v1359 = vunpack.c.h.b16 %v686
      %v1360 = vunpack.c.l.b16 %v687
      %v1361 = vunpack.c.h.b16 %v687
      %v1362 = vunpack.c.l.b16 %v688
      %v1363 = vunpack.c.h.b16 %v688
      %v1364 = vunpack.c.l.b16 %v689
      %v1365 = vunpack.c.h.b16 %v689
      %v1366 = vunpack.c.l.b16 %v690
      %v1367 = vunpack.c.h.b16 %v690
      %v1368 = vunpack.c.l.b16 %v691
      %v1369 = vunpack.c.h.b16 %v691
      %v1370 = vunpack.c.l.b16 %v692
      %v1371 = vunpack.c.h.b16 %v692
      %v1372 = vunpack.c.l.b16 %v693
      %v1373 = vunpack.c.h.b16 %v693
      %v1374 = vunpack.c.l.b16 %v694
      %v1375 = vunpack.c.h.b16 %v694
      %v1376 = vunpack.c.l.b16 %v695
      %v1377 = vunpack.c.h.b16 %v695
      %v1378 = vunpack.c.l.b16 %v696
      %v1379 = vunpack.c.h.b16 %v696
      %v1380 = vunpack.c.l.b16 %v697
      %v1381 = vunpack.c.h.b16 %v697
      %v1382 = vunpack.c.l.b16 %v698
      %v1383 = vunpack.c.h.b16 %v698
      %v1384 = vunpack.c.l.b16 %v699
      %v1385 = vunpack.c.h.b16 %v699
      %v1386 = vunpack.c.l.b16 %v700
      %v1387 = vunpack.c.h.b16 %v700
      %v1388 = vunpack.c.l.b16 %v701
      %v1389 = vunpack.c.h.b16 %v701
      %v1390 = vunpack.c.l.b16 %v702
      %v1391 = vunpack.c.h.b16 %v702
      %v1392 = vunpack.c.l.b16 %v703
      %v1393 = vunpack.c.h.b16 %v703
      %v1394 = vunpack.c.l.b16 %v704
      %v1395 = vunpack.c.h.b16 %v704
      %v1396 = vunpack.c.l.b16 %v705
      %v1397 = vunpack.c.h.b16 %v705
      %v1398 = vunpack.c.l.b16 %v706
      %v1399 = vunpack.c.h.b16 %v706
      %v1400 = vunpack.c.l.b16 %v707
      %v1401 = vunpack.c.h.b16 %v707
      %v1402 = vunpack.c.l.b16 %v708
      %v1403 = vunpack.c.h.b16 %v708
      %v1404 = vunpack.c.l.b16 %v709
      %v1405 = vunpack.c.h.b16 %v709
      %v1406 = vunpack.c.l.b16 %v710
      %v1407 = vunpack.c.h.b16 %v710
      %v1408 = vunpack.c.l.b16 %v711
      %v1409 = vunpack.c.h.b16 %v711
      %v1410 = vunpack.c.l.b16 %v712
      %v1411 = vunpack.c.h.b16 %v712
      %v1412 = vunpack.c.l.b16 %v713
      %v1413 = vunpack.c.h.b16 %v713
      %v1414 = vunpack.c.l.b16 %v714
      %v1415 = vunpack.c.h.b16 %v714
      %v1416 = vunpack.c.l.b16 %v715
      %v1417 = vunpack.c.h.b16 %v715
      %v1418 = vunpack.c.l.b16 %v716
      %v1419 = vunpack.c.h.b16 %v716
      %v1420 = vunpack.c.l.b16 %v717
      %v1421 = vunpack.c.h.b16 %v717
      %v1422 = vunpack.c.l.b16 %v718
      %v1423 = vunpack.c.h.b16 %v718
      %v1424 = vunpack.c.l.b16 %v719
      %v1425 = vunpack.c.h.b16 %v719
      %v1426 = vunpack.c.l.b16 %v720
      %v1427 = vunpack.c.h.b16 %v720
      %v1428 = vunpack.c.l.b16 %v721
      %v1429 = vunpack.c.h.b16 %v721
      %v1430 = vunpack.c.l.b16 %v722
      %v1431 = vunpack.c.h.b16 %v722
      %v1432 = vunpack.c.l.b16 %v723
      %v1433 = vunpack.c.h.b16 %v723
      %v1434 = vunpack.c.l.b16 %v724
      %v1435 = vunpack.c.h.b16 %v724
      %v1436 = vunpack.c.l.b16 %v725
      %v1437 = vunpack.c.h.b16 %v725
      %v1438 = vunpack.c.l.b16 %v726
      %v1439 = vunpack.c.h.b16 %v726
      %v1440 = vunpack.c.l.b16 %v727
      %v1441 = vunpack.c.h.b16 %v727
      %v1442 = vunpack.c.l.b16 %v728
      %v1443 = vunpack.c.h.b16 %v728
      %v1444 = vunpack.c.l.b16 %v729
      %v1445 = vunpack.c.h.b16 %v729
      %v1446 = vunpack.c.l.b16 %v730
      %v1447 = vunpack.c.h.b16 %v730
      %v1448 = vunpack.c.l.b16 %v731
      %v1449 = vunpack.c.h.b16 %v731
      %v1450 = vunpack.c.l.b16 %v732
      %v1451 = vunpack.c.h.b16 %v732
      %v1452 = vpack.c.b16 %v1284, %v1260
      %v1453 = vpack.c.b16 %v1285, %v1261
      %v1454 = vpack.c.b16 %v1286, %v1262
      %v1455 = vpack.c.b16 %v1287, %v1263
      %v1456 = vpack.c.b16 %v1288, %v1264
      %v1457 = vpack.c.b16 %v1289, %v1265
      %v1458 = vpack.c.b16 %v1290, %v1266
      %v1459 = vpack.c.b16 %v1291, %v1267
      %v1460 = vpack.c.b16 %v1292, %v1268
      %v1461 = vpack.c.b16 %v1293, %v1269
      %v1462 = vpack.c.b16 %v1294, %v1270
      %v1463 = vpack.c.b16 %v1295, %v1271
      %v1464 = vpack.c.b16 %v1296, %v1272
      %v1465 = vpack.c.b16 %v1297, %v1273
      %v1466 = vpack.c.b16 %v1298, %v1274
      %v1467 = vpack.c.b16 %v1299, %v1275
      %v1468 = vpack.c.b16 %v1300, %v1276
      %v1469 = vpack.c.b16 %v1301, %v1277
      %v1470 = vpack.c.b16 %v1302, %v1278
      %v1471 = vpack.c.b16 %v1303, %v1279
      %v1472 = vpack.c.b16 %v1304, %v1280
      %v1473 = vpack.c.b16 %v1305, %v1281
      %v1474 = vpack.c.b16 %v1306, %v1282
      %v1475 = vpack.c.b16 %v1307, %v1283
      %v1476 = vpack.c.b16 %v1332, %v1308
      %v1477 = vpack.c.b16 %v1333, %v1309
      %v1478 = vpack.c.b16 %v1334, %v1310
      %v1479 = vpack.c.b16 %v1335, %v1311
      %v1480 = vpack.c.b16 %v1336, %v1312
      %v1481 = vpack.c.b16 %v1337, %v1313
      %v1482 = vpack.c.b16 %v1338, %v1314
      %v1483 = vpack.c.b16 %v1339, %v1315
      %v1484 = vpack.c.b16 %v1340, %v1316
      %v1485 = vpack.c.b16 %v1341, %v1317
      %v1486 = vpack.c.b16 %v1342, %v1318
      %v1487 = vpack.c.b16 %v1343, %v1319
      %v1488 = vpack.c.b16 %v1344, %v1320
      %v1489 = vpack.c.b16 %v1345, %v1321
      %v1490 = vpack.c.b16 %v1346, %v1322
      %v1491 = vpack.c.b16 %v1347, %v1323
      %v1492 = vpack.c.b16 %v1348, %v1324
      %v1493 = vpack.c.b16 %v1349, %v1325
      %v1494 = vpack.c.b16 %v1350, %v1326
      %v1495 = vpack.c.b16 %v1351, %v1327
      %v1496 = vpack.c.b16 %v1352, %v1328
      %v1497 = vpack.c.b16 %v1353, %v1329
      %v1498 = vpack.c.b16 %v1354, %v1330
      %v1499 = vpack.c.b16 %v1355, %v1331
      %v1500 = vpack.c.b16 %v1380, %v1356
      %v1501 = vpack.c.b16 %v1381, %v1357
      %v1502 = vpack.c.b16 %v1382, %v1358
      %v1503 = vpack.c.b16 %v1383, %v1359
      %v1504 = vpack.c.b16 %v1384, %v1360
      %v1505 = vpack.c.b16 %v1385, %v1361
      %v1506 = vpack.c.b16 %v1386, %v1362
      %v1507 = vpack.c.b16 %v1387, %v1363
      %v1508 = vpack.c.b16 %v1388, %v1364
      %v1509 = vpack.c.b16 %v1389, %v1365
      %v1510 = vpack.c.b16 %v1390, %v1366
      %v1511 = vpack.c.b16 %v1391, %v1367
      %v1512 = vpack.c.b16 %v1392, %v1368
      %v1513 = vpack.c.b16 %v1393, %v1369
      %v1514 = vpack.c.b16 %v1394, %v1370
      %v1515 = vpack.c.b16 %v1395, %v1371
      %v1516 = vpack.c.b16 %v1396, %v1372
      %v1517 = vpack.c.b16 %v1397, %v1373
      %v1518 = vpack.c.b16 %v1398, %v1374
      %v1519 = vpack.c.b16 %v1399, %v1375
      %v1520 = vpack.c.b16 %v1400, %v1376
      %v1521 = vpack.c.b16 %v1401, %v1377
      %v1522 = vpack.c.b16 %v1402, %v1378
      %v1523 = vpack.c.b16 %v1403, %v1379
      %v1524 = vpack.c.b16 %v1428, %v1404
      %v1525 = vpack.c.b16 %v1429, %v1405
      %v1526 = vpack.c.b16 %v1430, %v1406
      %v1527 = vpack.c.b16 %v1431, %v1407
      %v1528 = vpack.c.b16 %v1432, %v1408
      %v1529 = vpack.c.b16 %v1433, %v1409
      %v1530 = vpack.c.b16 %v1434, %v1410
      %v1531 = vpack.c.b16 %v1435, %v1411
      %v1532 = vpack.c.b16 %v1436, %v1412
      %v1533 = vpack.c.b16 %v1437, %v1413
      %v1534 = vpack.c.b16 %v1438, %v1414
      %v1535 = vpack.c.b16 %v1439, %v1415
      %v1536 = vpack.c.b16 %v1440, %v1416
      %v1537 = vpack.c.b16 %v1441, %v1417
      %v1538 = vpack.c.b16 %v1442, %v1418
      %v1539 = vpack.c.b16 %v1443, %v1419
      %v1540 = vpack.c.b16 %v1444, %v1420
      %v1541 = vpack.c.b16 %v1445, %v1421
      %v1542 = vpack.c.b16 %v1446, %v1422
      %v1543 = vpack.c.b16 %v1447, %v1423
      %v1544 = vpack.c.b16 %v1448, %v1424
      %v1545 = vpack.c.b16 %v1449, %v1425
      %v1546 = vpack.c.b16 %v1450, %v1426
      %v1547 = vpack.c.b16 %v1451, %v1427
      %v2028 = vunpack.c.l.b16 %v776
      %v2029 = vunpack.c.l.b16 %v777
      %v2030 = vunpack.c.l.b16 %v778
      %v2031 = vunpack.c.l.b16 %v779
      %v2032 = vunpack.c.l.b16 %v780
      %v2033 = vunpack.c.l.b16 %v781
      %v2034 = vunpack.c.l.b16 %v782
      %v2035 = vunpack.c.l.b16 %v783
      %v2036 = vunpack.c.l.b16 %v784
      %v2037 = vunpack.c.l.b16 %v785
      %v2038 = vunpack.c.l.b16 %v786
      %v2039 = vunpack.c.l.b16 %v787
      %v2040 = vunpack.c.l.b16 %v788
      %v2041 = vunpack.c.l.b16 %v789
      %v2042 = vunpack.c.l.b16 %v790
      %v2043 = vunpack.c.l.b16 %v791
      %v2044 = vunpack.c.l.b16 %v792
      %v2045 = vunpack.c.l.b16 %v793
      %v2046 = vunpack.c.l.b16 %v794
      %v2047 = vunpack.c.l.b16 %v795
      %v2048 = vunpack.c.l.b16 %v796
      %v2049 = vunpack.c.l.b16 %v797
      %v2050 = vunpack.c.l.b16 %v798
      %v2051 = vunpack.c.l.b16 %v799
      %v2052 = vunpack.c.l.b16 %v800
      %v2053 = vunpack.c.l.b16 %v801
      %v2054 = vunpack.c.l.b16 %v802
      %v2055 = vunpack.c.l.b16 %v803
      %v2056 = vunpack.c.l.b16 %v804
      %v2057 = vunpack.c.l.b16 %v805
      %v2058 = vunpack.c.l.b16 %v806
      %v2059 = vunpack.c.l.b16 %v807
      %v2060 = vunpack.c.l.b16 %v808
      %v2061 = vunpack.c.l.b16 %v809
      %v2062 = vunpack.c.l.b16 %v810
      %v2063 = vunpack.c.l.b16 %v811
      %v2064 = vunpack.c.l.b16 %v812
      %v2065 = vunpack.c.l.b16 %v813
      %v2066 = vunpack.c.l.b16 %v814
      %v2067 = vunpack.c.l.b16 %v815
      %v2068 = vunpack.c.l.b16 %v816
      %v2069 = vunpack.c.l.b16 %v817
      %v2070 = vunpack.c.l.b16 %v818
      %v2071 = vunpack.c.l.b16 %v819
      %v2072 = vunpack.c.l.b16 %v820
      %v2073 = vunpack.c.l.b16 %v821
      %v2074 = vunpack.c.l.b16 %v822
      %v2075 = vunpack.c.l.b16 %v823
      %v2076 = vunpack.c.l.b16 %v824
      %v2077 = vunpack.c.l.b16 %v825
      %v2078 = vunpack.c.l.b16 %v826
      %v2079 = vunpack.c.l.b16 %v827
      %v2080 = vunpack.c.l.b16 %v828
      %v2081 = vunpack.c.l.b16 %v829
      %v2082 = vunpack.c.l.b16 %v830
      %v2083 = vunpack.c.l.b16 %v831
      %v2084 = vunpack.c.l.b16 %v832
      %v2085 = vunpack.c.l.b16 %v833
      %v2086 = vunpack.c.l.b16 %v834
      %v2087 = vunpack.c.l.b16 %v835
      %v2088 = vunpack.c.l.b16 %v836
      %v2089 = vunpack.c.l.b16 %v837
      %v2090 = vunpack.c.l.b16 %v838
      %v2091 = vunpack.c.l.b16 %v839
      %v2092 = vunpack.c.l.b16 %v840
      %v2093 = vunpack.c.l.b16 %v841
      %v2094 = vunpack.c.l.b16 %v842
      %v2095 = vunpack.c.l.b16 %v843
      %v2096 = vunpack.c.l.b16 %v844
      %v2097 = vunpack.c.l.b16 %v845
      %v2098 = vunpack.c.l.b16 %v846
      %v2099 = vunpack.c.l.b16 %v847
      %v2100 = vunpack.c.l.b16 %v848
      %v2101 = vunpack.c.l.b16 %v849
      %v2102 = vunpack.c.l.b16 %v850
      %v2103 = vunpack.c.l.b16 %v851
      %v2104 = vunpack.c.l.b16 %v852
      %v2105 = vunpack.c.l.b16 %v853
      %v2106 = vunpack.c.l.b16 %v854
      %v2107 = vunpack.c.l.b16 %v855
      %v2108 = vunpack.c.l.b16 %v856
      %v2109 = vunpack.c.l.b16 %v857
      %v2110 = vunpack.c.l.b16 %v858
      %v2111 = vunpack.c.l.b16 %v859
      %v2112 = vunpack.c.l.b16 %v860
      %v2113 = vunpack.c.l.b16 %v861
      %v2114 = vunpack.c.l.b16 %v862
      %v2115 = vunpack.c.l.b16 %v863
      %v2116 = vunpack.c.l.b16 %v864
      %v2117 = vunpack.c.l.b16 %v865
      %v2118 = vunpack.c.l.b16 %v866
      %v2119 = vunpack.c.l.b16 %v867
      %v2120 = vunpack.c.l.b16 %v868
      %v2121 = vunpack.c.l.b16 %v869
      %v2122 = vunpack.c.l.b16 %v870
      %v2123 = vunpack.c.l.b16 %v871
      %v2124 = vunpack.c.l.b16 %v872
      %v2125 = vunpack.c.l.b16 %v873
      %v2126 = vunpack.c.l.b16 %v874
      %v2127 = vunpack.c.l.b16 %v875
      %v2128 = vunpack.c.l.b16 %v876
      %v2129 = vunpack.c.l.b16 %v877
      %v2130 = vunpack.c.l.b16 %v878
      %v2131 = vunpack.c.l.b16 %v879
      %v2132 = vunpack.c.l.b16 %v880
      %v2133 = vunpack.c.l.b16 %v881
      %v2134 = vunpack.c.l.b16 %v882
      %v2135 = vunpack.c.l.b16 %v883
      %v2136 = vunpack.c.l.b16 %v884
      %v2137 = vunpack.c.l.b16 %v885
      %v2138 = vunpack.c.l.b16 %v886
      %v2139 = vunpack.c.l.b16 %v887
      %v2140 = vunpack.c.l.b16 %v888
      %v2141 = vunpack.c.l.b16 %v889
      %v2142 = vunpack.c.l.b16 %v890
      %v2143 = vunpack.c.l.b16 %v891
      %v2144 = vunpack.c.l.b16 %v892
      %v2145 = vunpack.c.l.b16 %v893
      %v2146 = vunpack.c.l.b16 %v894
      %v2147 = vunpack.c.l.b16 %v895
      %v2148 = vunpack.c.l.b16 %v896
      %v2149 = vunpack.c.l.b16 %v897
      %v2150 = vunpack.c.l.b16 %v898
      %v2151 = vunpack.c.l.b16 %v899
      %v2152 = vunpack.c.l.b16 %v900
      %v2153 = vunpack.c.l.b16 %v901
      %v2154 = vunpack.c.l.b16 %v902
      %v2155 = vunpack.c.l.b16 %v903
      %v2156 = vunpack.c.l.b16 %v904
      %v2157 = vunpack.c.l.b16 %v905
      %v2158 = vunpack.c.l.b16 %v906
      %v2159 = vunpack.c.l.b16 %v907
      %v2160 = vunpack.c.l.b16 %v908
      %v2161 = vunpack.c.l.b16 %v909
      %v2162 = vunpack.c.l.b16 %v910
      %v2163 = vunpack.c.l.b16 %v911
      %v2164 = vunpack.c.l.b16 %v912
      %v2165 = vunpack.c.l.b16 %v913
      %v2166 = vunpack.c.l.b16 %v914
      %v2167 = vunpack.c.l.b16 %v915
      %v2168 = vunpack.c.l.b16 %v916
      %v2169 = vunpack.c.l.b16 %v917
      %v2170 = vunpack.c.l.b16 %v918
      %v2171 = vunpack.c.l.b16 %v919
      %v2172 = vunpack.c.l.b16 %v920
      %v2173 = vunpack.c.l.b16 %v921
      %v2174 = vunpack.c.l.b16 %v922
      %v2175 = vunpack.c.l.b16 %v923
      %v2176 = vunpack.c.l.b16 %v924
      %v2177 = vunpack.c.l.b16 %v925
      %v2178 = vunpack.c.l.b16 %v926
      %v2179 = vunpack.c.l.b16 %v927
      %v2180 = vunpack.c.l.b16 %v928
      %v2181 = vunpack.c.l.b16 %v929
      %v2182 = vunpack.c.l.b16 %v930
      %v2183 = vunpack.c.l.b16 %v931
      %v2184 = vunpack.c.l.b16 %v932
      %v2185 = vunpack.c.l.b16 %v933
      %v2186 = vunpack.c.l.b16 %v934
      %v2187 = vunpack.c.l.b16 %v935
      %v2188 = vunpack.c.l.b16 %v936
      %v2189 = vunpack.c.l.b16 %v937
      %v2190 = vunpack.c.l.b16 %v938
      %v2191 = vunpack.c.l.b16 %v939
      %v2192 = vunpack.c.l.b16 %v940
      %v2193 = vunpack.c.l.b16 %v941
      %v2194 = vunpack.c.l.b16 %v942
      %v2195 = vunpack.c.l.b16 %v943
      %v2196 = vunpack.c.l.b16 %v944
      %v2197 = vunpack.c.l.b16 %v945
      %v2198 = vunpack.c.l.b16 %v946
      %v2199 = vunpack.c.l.b16 %v947
      %v2200 = vunpack.c.l.b16 %v948
      %v2201 = vunpack.c.l.b16 %v949
      %v2202 = vunpack.c.l.b16 %v950
      %v2203 = vunpack.c.l.b16 %v951
      %v2204 = vunpack.c.l.b16 %v952
      %v2205 = vunpack.c.l.b16 %v953
      %v2206 = vunpack.c.l.b16 %v954
      %v2207 = vunpack.c.l.b16 %v955
      %v2208 = vunpack.c.l.b16 %v956
      %v2209 = vunpack.c.l.b16 %v957
      %v2210 = vunpack.c.l.b16 %v958
      %v2211 = vunpack.c.l.b16 %v959
      %v2212 = vunpack.c.l.b16 %v960
      %v2213 = vunpack.c.l.b16 %v961
      %v2214 = vunpack.c.l.b16 %v962
      %v2215 = vunpack.c.l.b16 %v963
      %v2216 = vunpack.c.l.b16 %v964
      %v2217 = vunpack.c.l.b16 %v965
      %v2218 = vunpack.c.l.b16 %v966
      %v2219 = vunpack.c.l.b16 %v967
      %v2220 = vunpack.c.l.b16 %v968
      %v2221 = vunpack.c.l.b16 %v969
      %v2222 = vunpack.c.l.b16 %v970
      %v2223 = vunpack.c.l.b16 %v971
      %v2224 = vunpack.c.l.b16 %v972
      %v2225 = vunpack.c.l.b16 %v973
      %v2226 = vunpack.c.l.b16 %v974
      %v2227 = vunpack.c.l.b16 %v975
      %v2228 = vunpack.c.l.b16 %v976
      %v2229 = vunpack.c.l.b16 %v977
      %v2230 = vunpack.c.l.b16 %v978
      %v2231 = vunpack.c.l.b16 %v979
      %v2232 = vunpack.c.l.b16 %v980
      %v2233 = vunpack.c.l.b16 %v981
      %v2234 = vunpack.c.l.b16 %v982
      %v2235 = vunpack.c.l.b16 %v983
      %v2236 = vunpack.c.l.b16 %v984
      %v2237 = vunpack.c.l.b16 %v985
      %v2238 = vunpack.c.l.b16 %v986
      %v2239 = vunpack.c.l.b16 %v987
      %v2240 = vunpack.c.l.b16 %v988
      %v2241 = vunpack.c.l.b16 %v989
      %v2242 = vunpack.c.l.b16 %v990
      %v2243 = vunpack.c.l.b16 %v991
      %v2244 = vunpack.c.l.b16 %v992
      %v2245 = vunpack.c.l.b16 %v993
      %v2246 = vunpack.c.l.b16 %v994
      %v2247 = vunpack.c.l.b16 %v995
      %v2248 = vunpack.c.l.b16 %v996
      %v2249 = vunpack.c.l.b16 %v997
      %v2250 = vunpack.c.l.b16 %v998
      %v2251 = vunpack.c.l.b16 %v999
      %v2252 = vunpack.c.l.b16 %v1000
      %v2253 = vunpack.c.l.b16 %v1001
      %v2254 = vunpack.c.l.b16 %v1002
      %v2255 = vunpack.c.l.b16 %v1003
      %v2256 = vunpack.c.l.b16 %v1004
      %v2257 = vunpack.c.l.b16 %v1005
      %v2258 = vunpack.c.l.b16 %v1006
      %v2259 = vunpack.c.l.b16 %v1007
      %v2260 = vunpack.c.l.b16 %v1008
      %v2261 = vunpack.c.l.b16 %v1009
      %v2262 = vunpack.c.l.b16 %v1010
      %v2263 = vunpack.c.l.b16 %v1011
      %v2264 = vunpack.c.l.b16 %v1012
      %v2265 = vunpack.c.l.b16 %v1013
      %v2266 = vunpack.c.l.b16 %v1014
      %v2267 = vunpack.c.l.b16 %v1015
      %v2268 = vunpack.c.l.b16 %v1016
      %v2269 = vunpack.c.l.b16 %v1017
      %v2270 = vunpack.c.l.b16 %v1018
      %v2271 = vunpack.c.l.b16 %v1019
      %v2272 = vunpack.c.l.b16 %v1020
      %v2273 = vunpack.c.l.b16 %v1021
      %v2274 = vunpack.c.l.b16 %v1022
      %v2275 = vunpack.c.l.b16 %v1023
      %v2276 = vunpack.c.l.b16 %v1024
      %v2277 = vunpack.c.l.b16 %v1025
      %v2278 = vunpack.c.l.b16 %v1026
      %v2279 = vunpack.c.l.b16 %v1027
      %v2280 = vunpack.c.l.b16 %v1028
      %v2281 = vunpack.c.l.b16 %v1029
      %v2282 = vunpack.c.l.b16 %v1030
      %v2283 = vunpack.c.l.b16 %v1031
      %v2284 = vunpack.c.l.b16 %v1032
      %v2285 = vunpack.c.l.b16 %v1033
      %v2286 = vunpack.c.l.b16 %v1034
      %v2287 = vunpack.c.l.b16 %v1035
      %v2288 = vunpack.c.l.b16 %v1036
      %v2289 = vunpack.c.l.b16 %v1037
      %v2290 = vunpack.c.l.b16 %v1038
      %v2291 = vunpack.c.l.b16 %v1039
      %v2292 = vunpack.c.l.b16 %v1040
      %v2293 = vunpack.c.l.b16 %v1041
      %v2294 = vunpack.c.l.b16 %v1042
      %v2295 = vunpack.c.l.b16 %v1043
      %v2296 = vunpack.c.l.b16 %v1044
      %v2297 = vunpack.c.l.b16 %v1045
      %v2298 = vunpack.c.l.b16 %v1046
      %v2299 = vunpack.c.l.b16 %v1047
      %v2300 = vunpack.c.l.b16 %v1048
      %v2301 = vunpack.c.l.b16 %v1049
      %v2302 = vunpack.c.l.b16 %v1050
      %v2303 = vunpack.c.l.b16 %v1051
      %v2304 = vunpack.c.l.b16 %v1052
      %v2305 = vunpack.c.l.b16 %v1053
      %v2306 = vunpack.c.l.b16 %v1054
      %v2307 = vunpack.c.l.b16 %v1055
      %v2308 = vunpack.c.l.b16 %v1056
      %v2309 = vunpack.c.l.b16 %v1057
      %v2310 = vunpack.c.l.b16 %v1058
      %v2311 = vunpack.c.l.b16 %v1059
      %v2312 = vunpack.c.l.b16 %v1060
      %v2313 = vunpack.c.l.b16 %v1061
      %v2314 = vunpack.c.l.b16 %v1062
      %v2315 = vunpack.c.l.b16 %v1063
      %v2316 = vunpack.c.l.b16 %v1064
      %v2317 = vunpack.c.l.b16 %v1065
      %v2318 = vunpack.c.l.b16 %v1066
      %v2319 = vunpack.c.l.b16 %v1067
      %v2320 = vunpack.c.l.b16 %v1068
      %v2321 = vunpack.c.l.b16 %v1069
      %v2322 = vunpack.c.l.b16 %v1070
      %v2323 = vunpack.c.l.b16 %v1071
      %v2324 = vunpack.c.l.b16 %v1072
      %v2325 = vunpack.c.l.b16 %v1073
      %v2326 = vunpack.c.l.b16 %v1074
      %v2327 = vunpack.c.l.b16 %v1075
      %v2328 = vunpack.c.l.b16 %v1076
      %v2329 = vunpack.c.l.b16 %v1077
      %v2330 = vunpack.c.l.b16 %v1078
      %v2331 = vunpack.c.l.b16 %v1079
      %v2332 = vunpack.c.l.b16 %v1080
      %v2333 = vunpack.c.l.b16 %v1081
      %v2334 = vunpack.c.l.b16 %v1082
      %v2335 = vunpack.c.l.b16 %v1083
      %v2336 = vunpack.c.l.b16 %v1084
      %v2337 = vunpack.c.l.b16 %v1085
      %v2338 = vunpack.c.l.b16 %v1086
      %v2339 = vunpack.c.l.b16 %v1087
      %v2340 = vunpack.c.l.b16 %v1088
      %v2341 = vunpack.c.l.b16 %v1089
      %v2342 = vunpack.c.l.b16 %v1090
      %v2343 = vunpack.c.l.b16 %v1091
      %v2344 = vunpack.c.l.b16 %v1092
      %v2345 = vunpack.c.l.b16 %v1093
      %v2346 = vunpack.c.l.b16 %v1094
      %v2347 = vunpack.c.l.b16 %v1095
      %v2348 = vunpack.c.l.b16 %v1096
      %v2349 = vunpack.c.l.b16 %v1097
      %v2350 = vunpack.c.l.b16 %v1098
      %v2351 = vunpack.c.l.b16 %v1099
      %v2352 = vunpack.c.l.b16 %v1100
      %v2353 = vunpack.c.l.b16 %v1101
      %v2354 = vunpack.c.l.b16 %v1102
      %v2355 = vunpack.c.l.b16 %v1103
      %v2356 = vunpack.c.l.b16 %v1104
      %v2357 = vunpack.c.l.b16 %v1105
      %v2358 = vunpack.c.l.b16 %v1106
      %v2359 = vunpack.c.l.b16 %v1107
      %v2360 = vunpack.c.l.b16 %v1108
      %v2361 = vunpack.c.l.b16 %v1109
      %v2362 = vunpack.c.l.b16 %v1110
      %v2363 = vunpack.c.l.b16 %v1111
      %v2364 = vunpack.c.l.b16 %v1112
      %v2365 = vunpack.c.l.b16 %v1113
      %v2366 = vunpack.c.l.b16 %v1114
      %v2367 = vunpack.c.l.b16 %v1115
      %v2368 = vunpack.c.l.b16 %v1116
      %v2369 = vunpack.c.l.b16 %v1117
      %v2370 = vunpack.c.l.b16 %v1118
      %v2371 = vunpack.c.l.b16 %v1119
      %v2372 = vunpack.c.l.b16 %v1120
      %v2373 = vunpack.c.l.b16 %v1121
      %v2374 = vunpack.c.l.b16 %v1122
      %v2375 = vunpack.c.l.b16 %v1123
      %v2376 = vunpack.c.l.b16 %v1124
      %v2377 = vunpack.c.l.b16 %v1125
      %v2378 = vunpack.c.l.b16 %v1126
      %v2379 = vunpack.c.l.b16 %v1127
      %v2380 = vunpack.c.l.b16 %v1128
      %v2381 = vunpack.c.l.b16 %v1129
      %v2382 = vunpack.c.l.b16 %v1130
      %v2383 = vunpack.c.l.b16 %v1131
      %v2384 = vunpack.c.l.b16 %v1132
      %v2385 = vunpack.c.l.b16 %v1133
      %v2386 = vunpack.c.l.b16 %v1134
      %v2387 = vunpack.c.l.b16 %v1135
      %v2388 = vunpack.c.l.b16 %v1136
      %v2389 = vunpack.c.l.b16 %v1137
      %v2390 = vunpack.c.l.b16 %v1138
      %v2391 = vunpack.c.l.b16 %v1139
      %v2392 = vunpack.c.l.b16 %v1140
      %v2393 = vunpack.c.l.b16 %v1141
      %v2394 = vunpack.c.l.b16 %v1142
      %v2395 = vunpack.c.l.b16 %v1143
      %v2396 = vunpack.c.l.b16 %v1144
      %v2397 = vunpack.c.l.b16 %v1145
      %v2398 = vunpack.c.l.b16 %v1146
      %v2399 = vunpack.c.l.b16 %v1147
      %v2400 = vunpack.c.l.b16 %v1148
      %v2401 = vunpack.c.l.b16 %v1149
      %v2402 = vunpack.c.l.b16 %v1150
      %v2403 = vunpack.c.l.b16 %v1151
      %v2404 = vunpack.c.l.b16 %v1152
      %v2405 = vunpack.c.l.b16 %v1153
      %v2406 = vunpack.c.l.b16 %v1154
      %v2407 = vunpack.c.l.b16 %v1155
      %v2408 = vunpack.c.l.b16 %v1156
      %v2409 = vunpack.c.l.b16 %v1157
      %v2410 = vunpack.c.l.b16 %v1158
      %v2411 = vunpack.c.l.b16 %v1159
      %v2412 = vpack.c.b16 %v2029, %v2028
      %v2413 = vpack.c.b16 %v2031, %v2030
      %v2414 = vpack.c.b16 %v2033, %v2032
      %v2415 = vpack.c.b16 %v2035, %v2034
      %v2416 = vpack.c.b16 %v2037, %v2036
      %v2417 = vpack.c.b16 %v2039, %v2038
      %v2418 = vpack.c.b16 %v2041, %v2040
      %v2419 = vpack.c.b16 %v2043, %v2042
      %v2420 = vpack.c.b16 %v2045, %v2044
      %v2421 = vpack.c.b16 %v2047, %v2046
      %v2422 = vpack.c.b16 %v2049, %v2048
      %v2423 = vpack.c.b16 %v2051, %v2050
      %v2424 = vpack.c.b16 %v2053, %v2052
      %v2425 = vpack.c.b16 %v2055, %v2054
      %v2426 = vpack.c.b16 %v2057, %v2056
      %v2427 = vpack.c.b16 %v2059, %v2058
      %v2428 = vpack.c.b16 %v2061, %v2060
      %v2429 = vpack.c.b16 %v2063, %v2062
      %v2430 = vpack.c.b16 %v2065, %v2064
      %v2431 = vpack.c.b16 %v2067, %v2066
      %v2432 = vpack.c.b16 %v2069, %v2068
      %v2433 = vpack.c.b16 %v2071, %v2070
      %v2434 = vpack.c.b16 %v2073, %v2072
      %v2435 = vpack.c.b16 %v2075, %v2074
      %v2436 = vpack.c.b16 %v2077, %v2076
      %v2437 = vpack.c.b16 %v2079, %v2078
      %v2438 = vpack.c.b16 %v2081, %v2080
      %v2439 = vpack.c.b16 %v2083, %v2082
      %v2440 = vpack.c.b16 %v2085, %v2084
      %v2441 = vpack.c.b16 %v2087, %v2086
      %v2442 = vpack.c.b16 %v2089, %v2088
      %v2443 = vpack.c.b16 %v2091, %v2090
      %v2444 = vpack.c.b16 %v2093, %v2092
      %v2445 = vpack.c.b16 %v2095, %v2094
      %v2446 = vpack.c.b16 %v2097, %v2096
      %v2447 = vpack.c.b16 %v2099, %v2098
      %v2448 = vpack.c.b16 %v2101, %v2100
      %v2449 = vpack.c.b16 %v2103, %v2102
      %v2450 = vpack.c.b16 %v2105, %v2104
      %v2451 = vpack.c.b16 %v2107, %v2106
      %v2452 = vpack.c.b16 %v2109, %v2108
      %v2453 = vpack.c.b16 %v2111, %v2110
      %v2454 = vpack.c.b16 %v2113, %v2112
      %v2455 = vpack.c.b16 %v2115, %v2114
      %v2456 = vpack.c.b16 %v2117, %v2116
      %v2457 = vpack.c.b16 %v2119, %v2118
      %v2458 = vpack.c.b16 %v2121, %v2120
      %v2459 = vpack.c.b16 %v2123, %v2122
      %v2460 = vpack.c.b16 %v2125, %v2124
      %v2461 = vpack.c.b16 %v2127, %v2126
      %v2462 = vpack.c.b16 %v2129, %v2128
      %v2463 = vpack.c.b16 %v2131, %v2130
      %v2464 = vpack.c.b16 %v2133, %v2132
      %v2465 = vpack.c.b16 %v2135, %v2134
      %v2466 = vpack.c.b16 %v2137, %v2136
      %v2467 = vpack.c.b16 %v2139, %v2138
      %v2468 = vpack.c.b16 %v2141, %v2140
      %v2469 = vpack.c.b16 %v2143, %v2142
      %v2470 = vpack.c.b16 %v2145, %v2144
      %v2471 = vpack.c.b16 %v2147, %v2146
      %v2472 = vpack.c.b16 %v2149, %v2148
      %v2473 = vpack.c.b16 %v2151, %v2150
      %v2474 = vpack.c.b16 %v2153, %v2152
      %v2475 = vpack.c.b16 %v2155, %v2154
      %v2476 = vpack.c.b16 %v2157, %v2156
      %v2477 = vpack.c.b16 %v2159, %v2158
      %v2478 = vpack.c.b16 %v2161, %v2160
      %v2479 = vpack.c.b16 %v2163, %v2162
      %v2480 = vpack.c.b16 %v2165, %v2164
      %v2481 = vpack.c.b16 %v2167, %v2166
      %v2482 = vpack.c.b16 %v2169, %v2168
      %v2483 = vpack.c.b16 %v2171, %v2170
      %v2484 = vpack.c.b16 %v2173, %v2172
      %v2485 = vpack.c.b16 %v2175, %v2174
      %v2486 = vpack.c.b16 %v2177, %v2176
      %v2487 = vpack.c.b16 %v2179, %v2178
      %v2488 = vpack.c.b16 %v2181, %v2180
      %v2489 = vpack.c.b16 %v2183, %v2182
      %v2490 = vpack.c.b16 %v2185, %v2184
      %v2491 = vpack.c.b16 %v2187, %v2186
      %v2492 = vpack.c.b16 %v2189, %v2188
      %v2493 = vpack.c.b16 %v2191, %v2190
      %v2494 = vpack.c.b16 %v2193, %v2192
      %v2495 = vpack.c.b16 %v2195, %v2194
      %v2496 = vpack.c.b16 %v2197, %v2196
      %v2497 = vpack.c.b16 %v2199, %v2198
      %v2498 = vpack.c.b16 %v2201, %v2200
      %v2499 = vpack.c.b16 %v2203, %v2202
      %v2500 = vpack.c.b16 %v2205, %v2204
      %v2501 = vpack.c.b16 %v2207, %v2206
      %v2502 = vpack.c.b16 %v2209, %v2208
      %v2503 = vpack.c.b16 %v2211, %v2210
      %v2504 = vpack.c.b16 %v2213, %v2212
      %v2505 = vpack.c.b16 %v2215, %v2214
      %v2506 = vpack.c.b16 %v2217, %v2216
      %v2507 = vpack.c.b16 %v2219, %v2218
      %v2508 = vpack.c.b16 %v2221, %v2220
      %v2509 = vpack.c.b16 %v2223, %v2222
      %v2510 = vpack.c.b16 %v2225, %v2224
      %v2511 = vpack.c.b16 %v2227, %v2226
      %v2512 = vpack.c.b16 %v2229, %v2228
      %v2513 = vpack.c.b16 %v2231, %v2230
      %v2514 = vpack.c.b16 %v2233, %v2232
      %v2515 = vpack.c.b16 %v2235, %v2234
      %v2516 = vpack.c.b16 %v2237, %v2236
      %v2517 = vpack.c.b16 %v2239, %v2238
      %v2518 = vpack.c.b16 %v2241, %v2240
      %v2519 = vpack.c.b16 %v2243, %v2242
      %v2520 = vpack.c.b16 %v2245, %v2244
      %v2521 = vpack.c.b16 %v2247, %v2246
      %v2522 = vpack.c.b16 %v2249, %v2248
      %v2523 = vpack.c.b16 %v2251, %v2250
      %v2524 = vpack.c.b16 %v2253, %v2252
      %v2525 = vpack.c.b16 %v2255, %v2254
      %v2526 = vpack.c.b16 %v2257, %v2256
      %v2527 = vpack.c.b16 %v2259, %v2258
      %v2528 = vpack.c.b16 %v2261, %v2260
      %v2529 = vpack.c.b16 %v2263, %v2262
      %v2530 = vpack.c.b16 %v2265, %v2264
      %v2531 = vpack.c.b16 %v2267, %v2266
      %v2532 = vpack.c.b16 %v2269, %v2268
      %v2533 = vpack.c.b16 %v2271, %v2270
      %v2534 = vpack.c.b16 %v2273, %v2272
      %v2535 = vpack.c.b16 %v2275, %v2274
      %v2536 = vpack.c.b16 %v2277, %v2276
      %v2537 = vpack.c.b16 %v2279, %v2278
      %v2538 = vpack.c.b16 %v2281, %v2280
      %v2539 = vpack.c.b16 %v2283, %v2282
      %v2540 = vpack.c.b16 %v2285, %v2284
      %v2541 = vpack.c.b16 %v2287, %v2286
      %v2542 = vpack.c.b16 %v2289, %v2288
      %v2543 = vpack.c.b16 %v2291, %v2290
      %v2544 = vpack.c.b16 %v2293, %v2292
      %v2545 = vpack.c.b16 %v2295, %v2294
      %v2546 = vpack.c.b16 %v2297, %v2296
      %v2547 = vpack.c.b16 %v2299, %v2298
      %v2548 = vpack.c.b16 %v2301, %v2300
      %v2549 = vpack.c.b16 %v2303, %v2302
      %v2550 = vpack.c.b16 %v2305, %v2304
      %v2551 = vpack.c.b16 %v2307, %v2306
      %v2552 = vpack.c.b16 %v2309, %v2308
      %v2553 = vpack.c.b16 %v2311, %v2310
      %v2554 = vpack.c.b16 %v2313, %v2312
      %v2555 = vpack.c.b16 %v2315, %v2314
      %v2556 = vpack.c.b16 %v2317, %v2316
      %v2557 = vpack.c.b16 %v2319, %v2318
      %v2558 = vpack.c.b16 %v2321, %v2320
      %v2559 = vpack.c.b16 %v2323, %v2322
      %v2560 = vpack.c.b16 %v2325, %v2324
      %v2561 = vpack.c.b16 %v2327, %v2326
      %v2562 = vpack.c.b16 %v2329, %v2328
      %v2563 = vpack.c.b16 %v2331, %v2330
      %v2564 = vpack.c.b16 %v2333, %v2332
      %v2565 = vpack.c.b16 %v2335, %v2334
      %v2566 = vpack.c.b16 %v2337, %v2336
      %v2567 = vpack.c.b16 %v2339, %v2338
      %v2568 = vpack.c.b16 %v2341, %v2340
      %v2569 = vpack.c.b16 %v2343, %v2342
      %v2570 = vpack.c.b16 %v2345, %v2344
      %v2571 = vpack.c.b16 %v2347, %v2346
      %v2572 = vpack.c.b16 %v2349, %v2348
      %v2573 = vpack.c.b16 %v2351, %v2350
      %v2574 = vpack.c.b16 %v2353, %v2352
      %v2575 = vpack.c.b16 %v2355, %v2354
      %v2576 = vpack.c.b16 %v2357, %v2356
      %v2577 = vpack.c.b16 %v2359, %v2358
      %v2578 = vpack.c.b16 %v2361, %v2360
      %v2579 = vpack.c.b16 %v2363, %v2362
      %v2580 = vpack.c.b16 %v2365, %v2364
      %v2581 = vpack.c.b16 %v2367, %v2366
      %v2582 = vpack.c.b16 %v2369, %v2368
      %v2583 = vpack.c.b16 %v2371, %v2370
      %v2584 = vpack.c.b16 %v2373, %v2372
      %v2585 = vpack.c.b16 %v2375, %v2374
      %v2586 = vpack.c.b16 %v2377, %v2376
      %v2587 = vpack.c.b16 %v2379, %v2378
      %v2588 = vpack.c.b16 %v2381, %v2380
      %v2589 = vpack.c.b16 %v2383, %v2382
      %v2590 = vpack.c.b16 %v2385, %v2384
      %v2591 = vpack.c.b16 %v2387, %v2386
      %v2592 = vpack.c.b16 %v2389, %v2388
      %v2593 = vpack.c.b16 %v2391, %v2390
      %v2594 = vpack.c.b16 %v2393, %v2392
      %v2595 = vpack.c.b16 %v2395, %v2394
      %v2596 = vpack.c.b16 %v2397, %v2396
      %v2597 = vpack.c.b16 %v2399, %v2398
      %v2598 = vpack.c.b16 %v2401, %v2400
      %v2599 = vpack.c.b16 %v2403, %v2402
      %v2600 = vpack.c.b16 %v2405, %v2404
      %v2601 = vpack.c.b16 %v2407, %v2406
      %v2602 = vpack.c.b16 %v2409, %v2408
      %v2603 = vpack.c.b16 %v2411, %v2410
      %2796 = vmatpush.bf16.msra.mxu0 %v2419
      %2797 = vmatpush.bf16.msra.mxu0 %v2418
      %2798 = vmatpush.bf16.msra.mxu0 %v2417
      %2799 = vmatpush.bf16.msra.mxu0 %v2416
      %2800 = vmatpush.bf16.msra.mxu0 %v2415
      %2801 = vmatpush.bf16.msra.mxu0 %v2414
      %2802 = vmatpush.bf16.msra.mxu0 %v2413
      %2803 = vmatpush.bf16.msra.mxu0 %v2412
      %2804 = vmatmul.bf16.gmra.mxu0 %v1452
      %v2805 = vpop.f32.mrf.mxu0
      %v2806 = vadd.f32 %v1162, %v2805
      %v2807 = vpop.f32.mrf.mxu0
      %v2808 = vadd.f32 %v1162, %v2807
      %2809 = vmatmul.bf16.gmra.mxu0 %v1476
      %v2810 = vpop.f32.mrf.mxu0
      %v2811 = vadd.f32 %v1162, %v2810
      %v2812 = vpop.f32.mrf.mxu0
      %v2813 = vadd.f32 %v1162, %v2812
      %2814 = vmatmul.bf16.gmra.mxu0 %v1500
      %v2815 = vpop.f32.mrf.mxu0
      %v2816 = vadd.f32 %v1162, %v2815
      %v2817 = vpop.f32.mrf.mxu0
      %v2818 = vadd.f32 %v1162, %v2817
      %2819 = vmatmul.bf16.gmra.mxu0 %v1524
      %v2820 = vpop.f32.mrf.mxu0
      %v2821 = vadd.f32 %v1162, %v2820
      %v2822 = vpop.f32.mrf.mxu0
      %v2823 = vadd.f32 %v1162, %v2822
      %2824 = vdwg.mxu0
      %2825 = vmatpush.bf16.msra.mxu0 %v2427
      %2826 = vmatpush.bf16.msra.mxu0 %v2426
      %2827 = vmatpush.bf16.msra.mxu0 %v2425
      %2828 = vmatpush.bf16.msra.mxu0 %v2424
      %2829 = vmatpush.bf16.msra.mxu0 %v2423
      %2830 = vmatpush.bf16.msra.mxu0 %v2422
      %2831 = vmatpush.bf16.msra.mxu0 %v2421
      %2832 = vmatpush.bf16.msra.mxu0 %v2420
      %2833 = vmatmul.bf16.gmra.mxu0 %v1453
      %v2834 = vpop.f32.mrf.mxu0
      %v2835 = vadd.f32 %v2806, %v2834
      %v2836 = vpop.f32.mrf.mxu0
      %v2837 = vadd.f32 %v2808, %v2836
      %2838 = vmatmul.bf16.gmra.mxu0 %v1477
      %v2839 = vpop.f32.mrf.mxu0
      %v2840 = vadd.f32 %v2811, %v2839
      %v2841 = vpop.f32.mrf.mxu0
      %v2842 = vadd.f32 %v2813, %v2841
      %2843 = vmatmul.bf16.gmra.mxu0 %v1501
      %v2844 = vpop.f32.mrf.mxu0
      %v2845 = vadd.f32 %v2816, %v2844
      %v2846 = vpop.f32.mrf.mxu0
      %v2847 = vadd.f32 %v2818, %v2846
      %2848 = vmatmul.bf16.gmra.mxu0 %v1525
      %v2849 = vpop.f32.mrf.mxu0
      %v2850 = vadd.f32 %v2821, %v2849
      %v2851 = vpop.f32.mrf.mxu0
      %v2852 = vadd.f32 %v2823, %v2851
      %2853 = vdwg.mxu0
      %2854 = vmatpush.bf16.msra.mxu0 %v2435
      %2855 = vmatpush.bf16.msra.mxu0 %v2434
      %2856 = vmatpush.bf16.msra.mxu0 %v2433
      %2857 = vmatpush.bf16.msra.mxu0 %v2432
      %2858 = vmatpush.bf16.msra.mxu0 %v2431
      %2859 = vmatpush.bf16.msra.mxu0 %v2430
      %2860 = vmatpush.bf16.msra.mxu0 %v2429
      %2861 = vmatpush.bf16.msra.mxu0 %v2428
      %2862 = vmatmul.bf16.gmra.mxu0 %v1454
      %v2863 = vpop.f32.mrf.mxu0
      %v2864 = vadd.f32 %v2835, %v2863
      %v2865 = vpop.f32.mrf.mxu0
      %v2866 = vadd.f32 %v2837, %v2865
      %2867 = vmatmul.bf16.gmra.mxu0 %v1478
      %v2868 = vpop.f32.mrf.mxu0
      %v2869 = vadd.f32 %v2840, %v2868
      %v2870 = vpop.f32.mrf.mxu0
      %v2871 = vadd.f32 %v2842, %v2870
      %2872 = vmatmul.bf16.gmra.mxu0 %v1502
      %v2873 = vpop.f32.mrf.mxu0
      %v2874 = vadd.f32 %v2845, %v2873
      %v2875 = vpop.f32.mrf.mxu0
      %v2876 = vadd.f32 %v2847, %v2875
      %2877 = vmatmul.bf16.gmra.mxu0 %v1526
      %v2878 = vpop.f32.mrf.mxu0
      %v2879 = vadd.f32 %v2850, %v2878
      %v2880 = vpop.f32.mrf.mxu0
      %v2881 = vadd.f32 %v2852, %v2880
      %2882 = vdwg.mxu0
      %2883 = vmatpush.bf16.msra.mxu0 %v2443
      %2884 = vmatpush.bf16.msra.mxu0 %v2442
      %2885 = vmatpush.bf16.msra.mxu0 %v2441
      %2886 = vmatpush.bf16.msra.mxu0 %v2440
      %2887 = vmatpush.bf16.msra.mxu0 %v2439
      %2888 = vmatpush.bf16.msra.mxu0 %v2438
      %2889 = vmatpush.bf16.msra.mxu0 %v2437
      %2890 = vmatpush.bf16.msra.mxu0 %v2436
      %2891 = vmatmul.bf16.gmra.mxu0 %v1455
      %v2892 = vpop.f32.mrf.mxu0
      %v2893 = vadd.f32 %v2864, %v2892
      %v2894 = vpop.f32.mrf.mxu0
      %v2895 = vadd.f32 %v2866, %v2894
      %2896 = vmatmul.bf16.gmra.mxu0 %v1479
      %v2897 = vpop.f32.mrf.mxu0
      %v2898 = vadd.f32 %v2869, %v2897
      %v2899 = vpop.f32.mrf.mxu0
      %v2900 = vadd.f32 %v2871, %v2899
      %2901 = vmatmul.bf16.gmra.mxu0 %v1503
      %v2902 = vpop.f32.mrf.mxu0
      %v2903 = vadd.f32 %v2874, %v2902
      %v2904 = vpop.f32.mrf.mxu0
      %v2905 = vadd.f32 %v2876, %v2904
      %2906 = vmatmul.bf16.gmra.mxu0 %v1527
      %v2907 = vpop.f32.mrf.mxu0
      %v2908 = vadd.f32 %v2879, %v2907
      %v2909 = vpop.f32.mrf.mxu0
      %v2910 = vadd.f32 %v2881, %v2909
      %2911 = vdwg.mxu0
      %2912 = vmatpush.bf16.msra.mxu0 %v2451
      %2913 = vmatpush.bf16.msra.mxu0 %v2450
      %2914 = vmatpush.bf16.msra.mxu0 %v2449
      %2915 = vmatpush.bf16.msra.mxu0 %v2448
      %2916 = vmatpush.bf16.msra.mxu0 %v2447
      %2917 = vmatpush.bf16.msra.mxu0 %v2446
      %2918 = vmatpush.bf16.msra.mxu0 %v2445
      %2919 = vmatpush.bf16.msra.mxu0 %v2444
      %2920 = vmatmul.bf16.gmra.mxu0 %v1456
      %v2921 = vpop.f32.mrf.mxu0
      %v2922 = vadd.f32 %v2893, %v2921
      %v2923 = vpop.f32.mrf.mxu0
      %v2924 = vadd.f32 %v2895, %v2923
      %2925 = vmatmul.bf16.gmra.mxu0 %v1480
      %v2926 = vpop.f32.mrf.mxu0
      %v2927 = vadd.f32 %v2898, %v2926
      %v2928 = vpop.f32.mrf.mxu0
      %v2929 = vadd.f32 %v2900, %v2928
      %2930 = vmatmul.bf16.gmra.mxu0 %v1504
      %v2931 = vpop.f32.mrf.mxu0
      %v2932 = vadd.f32 %v2903, %v2931
      %v2933 = vpop.f32.mrf.mxu0
      %v2934 = vadd.f32 %v2905, %v2933
      %2935 = vmatmul.bf16.gmra.mxu0 %v1528
      %v2936 = vpop.f32.mrf.mxu0
      %v2937 = vadd.f32 %v2908, %v2936
      %v2938 = vpop.f32.mrf.mxu0
      %v2939 = vadd.f32 %v2910, %v2938
      %2940 = vdwg.mxu0
      %2941 = vmatpush.bf16.msra.mxu0 %v2459
      %2942 = vmatpush.bf16.msra.mxu0 %v2458
      %2943 = vmatpush.bf16.msra.mxu0 %v2457
      %2944 = vmatpush.bf16.msra.mxu0 %v2456
      %2945 = vmatpush.bf16.msra.mxu0 %v2455
      %2946 = vmatpush.bf16.msra.mxu0 %v2454
      %2947 = vmatpush.bf16.msra.mxu0 %v2453
      %2948 = vmatpush.bf16.msra.mxu0 %v2452
      %2949 = vmatmul.bf16.gmra.mxu0 %v1457
      %v2950 = vpop.f32.mrf.mxu0
      %v2951 = vadd.f32 %v2922, %v2950
      %v2952 = vpop.f32.mrf.mxu0
      %v2953 = vadd.f32 %v2924, %v2952
      %2954 = vmatmul.bf16.gmra.mxu0 %v1481
      %v2955 = vpop.f32.mrf.mxu0
      %v2956 = vadd.f32 %v2927, %v2955
      %v2957 = vpop.f32.mrf.mxu0
      %v2958 = vadd.f32 %v2929, %v2957
      %2959 = vmatmul.bf16.gmra.mxu0 %v1505
      %v2960 = vpop.f32.mrf.mxu0
      %v2961 = vadd.f32 %v2932, %v2960
      %v2962 = vpop.f32.mrf.mxu0
      %v2963 = vadd.f32 %v2934, %v2962
      %2964 = vmatmul.bf16.gmra.mxu0 %v1529
      %v2965 = vpop.f32.mrf.mxu0
      %v2966 = vadd.f32 %v2937, %v2965
      %v2967 = vpop.f32.mrf.mxu0
      %v2968 = vadd.f32 %v2939, %v2967
      %2969 = vdwg.mxu0
      %2970 = vmatpush.bf16.msra.mxu0 %v2467
      %2971 = vmatpush.bf16.msra.mxu0 %v2466
      %2972 = vmatpush.bf16.msra.mxu0 %v2465
      %2973 = vmatpush.bf16.msra.mxu0 %v2464
      %2974 = vmatpush.bf16.msra.mxu0 %v2463
      %2975 = vmatpush.bf16.msra.mxu0 %v2462
      %2976 = vmatpush.bf16.msra.mxu0 %v2461
      %2977 = vmatpush.bf16.msra.mxu0 %v2460
      %2978 = vmatmul.bf16.gmra.mxu0 %v1458
      %v2979 = vpop.f32.mrf.mxu0
      %v2980 = vadd.f32 %v2951, %v2979
      %v2981 = vpop.f32.mrf.mxu0
      %v2982 = vadd.f32 %v2953, %v2981
      %2983 = vmatmul.bf16.gmra.mxu0 %v1482
      %v2984 = vpop.f32.mrf.mxu0
      %v2985 = vadd.f32 %v2956, %v2984
      %v2986 = vpop.f32.mrf.mxu0
      %v2987 = vadd.f32 %v2958, %v2986
      %2988 = vmatmul.bf16.gmra.mxu0 %v1506
      %v2989 = vpop.f32.mrf.mxu0
      %v2990 = vadd.f32 %v2961, %v2989
      %v2991 = vpop.f32.mrf.mxu0
      %v2992 = vadd.f32 %v2963, %v2991
      %2993 = vmatmul.bf16.gmra.mxu0 %v1530
      %v2994 = vpop.f32.mrf.mxu0
      %v2995 = vadd.f32 %v2966, %v2994
      %v2996 = vpop.f32.mrf.mxu0
      %v2997 = vadd.f32 %v2968, %v2996
      %2998 = vdwg.mxu0
      %2999 = vmatpush.bf16.msra.mxu0 %v2475
      %3000 = vmatpush.bf16.msra.mxu0 %v2474
      %3001 = vmatpush.bf16.msra.mxu0 %v2473
      %3002 = vmatpush.bf16.msra.mxu0 %v2472
      %3003 = vmatpush.bf16.msra.mxu0 %v2471
      %3004 = vmatpush.bf16.msra.mxu0 %v2470
      %3005 = vmatpush.bf16.msra.mxu0 %v2469
      %3006 = vmatpush.bf16.msra.mxu0 %v2468
      %3007 = vmatmul.bf16.gmra.mxu0 %v1459
      %v3008 = vpop.f32.mrf.mxu0
      %v3009 = vadd.f32 %v2980, %v3008
      %v3010 = vpop.f32.mrf.mxu0
      %v3011 = vadd.f32 %v2982, %v3010
      %3012 = vmatmul.bf16.gmra.mxu0 %v1483
      %v3013 = vpop.f32.mrf.mxu0
      %v3014 = vadd.f32 %v2985, %v3013
      %v3015 = vpop.f32.mrf.mxu0
      %v3016 = vadd.f32 %v2987, %v3015
      %3017 = vmatmul.bf16.gmra.mxu0 %v1507
      %v3018 = vpop.f32.mrf.mxu0
      %v3019 = vadd.f32 %v2990, %v3018
      %v3020 = vpop.f32.mrf.mxu0
      %v3021 = vadd.f32 %v2992, %v3020
      %3022 = vmatmul.bf16.gmra.mxu0 %v1531
      %v3023 = vpop.f32.mrf.mxu0
      %v3024 = vadd.f32 %v2995, %v3023
      %v3025 = vpop.f32.mrf.mxu0
      %v3026 = vadd.f32 %v2997, %v3025
      %3027 = vdwg.mxu0
      %3028 = vmatpush.bf16.msra.mxu0 %v2483
      %3029 = vmatpush.bf16.msra.mxu0 %v2482
      %3030 = vmatpush.bf16.msra.mxu0 %v2481
      %3031 = vmatpush.bf16.msra.mxu0 %v2480
      %3032 = vmatpush.bf16.msra.mxu0 %v2479
      %3033 = vmatpush.bf16.msra.mxu0 %v2478
      %3034 = vmatpush.bf16.msra.mxu0 %v2477
      %3035 = vmatpush.bf16.msra.mxu0 %v2476
      %3036 = vmatmul.bf16.gmra.mxu0 %v1460
      %v3037 = vpop.f32.mrf.mxu0
      %v3038 = vadd.f32 %v3009, %v3037
      %v3039 = vpop.f32.mrf.mxu0
      %v3040 = vadd.f32 %v3011, %v3039
      %3041 = vmatmul.bf16.gmra.mxu0 %v1484
      %v3042 = vpop.f32.mrf.mxu0
      %v3043 = vadd.f32 %v3014, %v3042
      %v3044 = vpop.f32.mrf.mxu0
      %v3045 = vadd.f32 %v3016, %v3044
      %3046 = vmatmul.bf16.gmra.mxu0 %v1508
      %v3047 = vpop.f32.mrf.mxu0
      %v3048 = vadd.f32 %v3019, %v3047
      %v3049 = vpop.f32.mrf.mxu0
      %v3050 = vadd.f32 %v3021, %v3049
      %3051 = vmatmul.bf16.gmra.mxu0 %v1532
      %v3052 = vpop.f32.mrf.mxu0
      %v3053 = vadd.f32 %v3024, %v3052
      %v3054 = vpop.f32.mrf.mxu0
      %v3055 = vadd.f32 %v3026, %v3054
      %3056 = vdwg.mxu0
      %3057 = vmatpush.bf16.msra.mxu0 %v2491
      %3058 = vmatpush.bf16.msra.mxu0 %v2490
      %3059 = vmatpush.bf16.msra.mxu0 %v2489
      %3060 = vmatpush.bf16.msra.mxu0 %v2488
      %3061 = vmatpush.bf16.msra.mxu0 %v2487
      %3062 = vmatpush.bf16.msra.mxu0 %v2486
      %3063 = vmatpush.bf16.msra.mxu0 %v2485
      %3064 = vmatpush.bf16.msra.mxu0 %v2484
      %3065 = vmatmul.bf16.gmra.mxu0 %v1461
      %v3066 = vpop.f32.mrf.mxu0
      %v3067 = vadd.f32 %v3038, %v3066
      %v3068 = vpop.f32.mrf.mxu0
      %v3069 = vadd.f32 %v3040, %v3068
      %3070 = vmatmul.bf16.gmra.mxu0 %v1485
      %v3071 = vpop.f32.mrf.mxu0
      %v3072 = vadd.f32 %v3043, %v3071
      %v3073 = vpop.f32.mrf.mxu0
      %v3074 = vadd.f32 %v3045, %v3073
      %3075 = vmatmul.bf16.gmra.mxu0 %v1509
      %v3076 = vpop.f32.mrf.mxu0
      %v3077 = vadd.f32 %v3048, %v3076
      %v3078 = vpop.f32.mrf.mxu0
      %v3079 = vadd.f32 %v3050, %v3078
      %3080 = vmatmul.bf16.gmra.mxu0 %v1533
      %v3081 = vpop.f32.mrf.mxu0
      %v3082 = vadd.f32 %v3053, %v3081
      %v3083 = vpop.f32.mrf.mxu0
      %v3084 = vadd.f32 %v3055, %v3083
      %3085 = vdwg.mxu0
      %3086 = vmatpush.bf16.msra.mxu0 %v2499
      %3087 = vmatpush.bf16.msra.mxu0 %v2498
      %3088 = vmatpush.bf16.msra.mxu0 %v2497
      %3089 = vmatpush.bf16.msra.mxu0 %v2496
      %3090 = vmatpush.bf16.msra.mxu0 %v2495
      %3091 = vmatpush.bf16.msra.mxu0 %v2494
      %3092 = vmatpush.bf16.msra.mxu0 %v2493
      %3093 = vmatpush.bf16.msra.mxu0 %v2492
      %3094 = vmatmul.bf16.gmra.mxu0 %v1462
      %v3095 = vpop.f32.mrf.mxu0
      %v3096 = vadd.f32 %v3067, %v3095
      %v3097 = vpop.f32.mrf.mxu0
      %v3098 = vadd.f32 %v3069, %v3097
      %3099 = vmatmul.bf16.gmra.mxu0 %v1486
      %v3100 = vpop.f32.mrf.mxu0
      %v3101 = vadd.f32 %v3072, %v3100
      %v3102 = vpop.f32.mrf.mxu0
      %v3103 = vadd.f32 %v3074, %v3102
      %3104 = vmatmul.bf16.gmra.mxu0 %v1510
      %v3105 = vpop.f32.mrf.mxu0
      %v3106 = vadd.f32 %v3077, %v3105
      %v3107 = vpop.f32.mrf.mxu0
      %v3108 = vadd.f32 %v3079, %v3107
      %3109 = vmatmul.bf16.gmra.mxu0 %v1534
      %v3110 = vpop.f32.mrf.mxu0
      %v3111 = vadd.f32 %v3082, %v3110
      %v3112 = vpop.f32.mrf.mxu0
      %v3113 = vadd.f32 %v3084, %v3112
      %3114 = vdwg.mxu0
      %3115 = vmatpush.bf16.msra.mxu0 %v2507
      %3116 = vmatpush.bf16.msra.mxu0 %v2506
      %3117 = vmatpush.bf16.msra.mxu0 %v2505
      %3118 = vmatpush.bf16.msra.mxu0 %v2504
      %3119 = vmatpush.bf16.msra.mxu0 %v2503
      %3120 = vmatpush.bf16.msra.mxu0 %v2502
      %3121 = vmatpush.bf16.msra.mxu0 %v2501
      %3122 = vmatpush.bf16.msra.mxu0 %v2500
      %3123 = vmatmul.bf16.gmra.mxu0 %v1463
      %v3124 = vpop.f32.mrf.mxu0
      %v3125 = vadd.f32 %v3096, %v3124
      %v3126 = vpop.f32.mrf.mxu0
      %v3127 = vadd.f32 %v3098, %v3126
      %3128 = vmatmul.bf16.gmra.mxu0 %v1487
      %v3129 = vpop.f32.mrf.mxu0
      %v3130 = vadd.f32 %v3101, %v3129
      %v3131 = vpop.f32.mrf.mxu0
      %v3132 = vadd.f32 %v3103, %v3131
      %3133 = vmatmul.bf16.gmra.mxu0 %v1511
      %v3134 = vpop.f32.mrf.mxu0
      %v3135 = vadd.f32 %v3106, %v3134
      %v3136 = vpop.f32.mrf.mxu0
      %v3137 = vadd.f32 %v3108, %v3136
      %3138 = vmatmul.bf16.gmra.mxu0 %v1535
      %v3139 = vpop.f32.mrf.mxu0
      %v3140 = vadd.f32 %v3111, %v3139
      %v3141 = vpop.f32.mrf.mxu0
      %v3142 = vadd.f32 %v3113, %v3141
      %3143 = vdwg.mxu0
      %3144 = vmatpush.bf16.msra.mxu0 %v2515
      %3145 = vmatpush.bf16.msra.mxu0 %v2514
      %3146 = vmatpush.bf16.msra.mxu0 %v2513
      %3147 = vmatpush.bf16.msra.mxu0 %v2512
      %3148 = vmatpush.bf16.msra.mxu0 %v2511
      %3149 = vmatpush.bf16.msra.mxu0 %v2510
      %3150 = vmatpush.bf16.msra.mxu0 %v2509
      %3151 = vmatpush.bf16.msra.mxu0 %v2508
      %3152 = vmatmul.bf16.gmra.mxu0 %v1464
      %v3153 = vpop.f32.mrf.mxu0
      %v3154 = vadd.f32 %v3125, %v3153
      %v3155 = vpop.f32.mrf.mxu0
      %v3156 = vadd.f32 %v3127, %v3155
      %3157 = vmatmul.bf16.gmra.mxu0 %v1488
      %v3158 = vpop.f32.mrf.mxu0
      %v3159 = vadd.f32 %v3130, %v3158
      %v3160 = vpop.f32.mrf.mxu0
      %v3161 = vadd.f32 %v3132, %v3160
      %3162 = vmatmul.bf16.gmra.mxu0 %v1512
      %v3163 = vpop.f32.mrf.mxu0
      %v3164 = vadd.f32 %v3135, %v3163
      %v3165 = vpop.f32.mrf.mxu0
      %v3166 = vadd.f32 %v3137, %v3165
      %3167 = vmatmul.bf16.gmra.mxu0 %v1536
      %v3168 = vpop.f32.mrf.mxu0
      %v3169 = vadd.f32 %v3140, %v3168
      %v3170 = vpop.f32.mrf.mxu0
      %v3171 = vadd.f32 %v3142, %v3170
      %3172 = vdwg.mxu0
      %3173 = vmatpush.bf16.msra.mxu0 %v2523
      %3174 = vmatpush.bf16.msra.mxu0 %v2522
      %3175 = vmatpush.bf16.msra.mxu0 %v2521
      %3176 = vmatpush.bf16.msra.mxu0 %v2520
      %3177 = vmatpush.bf16.msra.mxu0 %v2519
      %3178 = vmatpush.bf16.msra.mxu0 %v2518
      %3179 = vmatpush.bf16.msra.mxu0 %v2517
      %3180 = vmatpush.bf16.msra.mxu0 %v2516
      %3181 = vmatmul.bf16.gmra.mxu0 %v1465
      %v3182 = vpop.f32.mrf.mxu0
      %v3183 = vadd.f32 %v3154, %v3182
      %v3184 = vpop.f32.mrf.mxu0
      %v3185 = vadd.f32 %v3156, %v3184
      %3186 = vmatmul.bf16.gmra.mxu0 %v1489
      %v3187 = vpop.f32.mrf.mxu0
      %v3188 = vadd.f32 %v3159, %v3187
      %v3189 = vpop.f32.mrf.mxu0
      %v3190 = vadd.f32 %v3161, %v3189
      %3191 = vmatmul.bf16.gmra.mxu0 %v1513
      %v3192 = vpop.f32.mrf.mxu0
      %v3193 = vadd.f32 %v3164, %v3192
      %v3194 = vpop.f32.mrf.mxu0
      %v3195 = vadd.f32 %v3166, %v3194
      %3196 = vmatmul.bf16.gmra.mxu0 %v1537
      %v3197 = vpop.f32.mrf.mxu0
      %v3198 = vadd.f32 %v3169, %v3197
      %v3199 = vpop.f32.mrf.mxu0
      %v3200 = vadd.f32 %v3171, %v3199
      %3201 = vdwg.mxu0
      %3202 = vmatpush.bf16.msra.mxu0 %v2531
      %3203 = vmatpush.bf16.msra.mxu0 %v2530
      %3204 = vmatpush.bf16.msra.mxu0 %v2529
      %3205 = vmatpush.bf16.msra.mxu0 %v2528
      %3206 = vmatpush.bf16.msra.mxu0 %v2527
      %3207 = vmatpush.bf16.msra.mxu0 %v2526
      %3208 = vmatpush.bf16.msra.mxu0 %v2525
      %3209 = vmatpush.bf16.msra.mxu0 %v2524
      %3210 = vmatmul.bf16.gmra.mxu0 %v1466
      %v3211 = vpop.f32.mrf.mxu0
      %v3212 = vadd.f32 %v3183, %v3211
      %v3213 = vpop.f32.mrf.mxu0
      %v3214 = vadd.f32 %v3185, %v3213
      %3215 = vmatmul.bf16.gmra.mxu0 %v1490
      %v3216 = vpop.f32.mrf.mxu0
      %v3217 = vadd.f32 %v3188, %v3216
      %v3218 = vpop.f32.mrf.mxu0
      %v3219 = vadd.f32 %v3190, %v3218
      %3220 = vmatmul.bf16.gmra.mxu0 %v1514
      %v3221 = vpop.f32.mrf.mxu0
      %v3222 = vadd.f32 %v3193, %v3221
      %v3223 = vpop.f32.mrf.mxu0
      %v3224 = vadd.f32 %v3195, %v3223
      %3225 = vmatmul.bf16.gmra.mxu0 %v1538
      %v3226 = vpop.f32.mrf.mxu0
      %v3227 = vadd.f32 %v3198, %v3226
      %v3228 = vpop.f32.mrf.mxu0
      %v3229 = vadd.f32 %v3200, %v3228
      %3230 = vdwg.mxu0
      %3231 = vmatpush.bf16.msra.mxu0 %v2539
      %3232 = vmatpush.bf16.msra.mxu0 %v2538
      %3233 = vmatpush.bf16.msra.mxu0 %v2537
      %3234 = vmatpush.bf16.msra.mxu0 %v2536
      %3235 = vmatpush.bf16.msra.mxu0 %v2535
      %3236 = vmatpush.bf16.msra.mxu0 %v2534
      %3237 = vmatpush.bf16.msra.mxu0 %v2533
      %3238 = vmatpush.bf16.msra.mxu0 %v2532
      %3239 = vmatmul.bf16.gmra.mxu0 %v1467
      %v3240 = vpop.f32.mrf.mxu0
      %v3241 = vadd.f32 %v3212, %v3240
      %v3242 = vpop.f32.mrf.mxu0
      %v3243 = vadd.f32 %v3214, %v3242
      %3244 = vmatmul.bf16.gmra.mxu0 %v1491
      %v3245 = vpop.f32.mrf.mxu0
      %v3246 = vadd.f32 %v3217, %v3245
      %v3247 = vpop.f32.mrf.mxu0
      %v3248 = vadd.f32 %v3219, %v3247
      %3249 = vmatmul.bf16.gmra.mxu0 %v1515
      %v3250 = vpop.f32.mrf.mxu0
      %v3251 = vadd.f32 %v3222, %v3250
      %v3252 = vpop.f32.mrf.mxu0
      %v3253 = vadd.f32 %v3224, %v3252
      %3254 = vmatmul.bf16.gmra.mxu0 %v1539
      %v3255 = vpop.f32.mrf.mxu0
      %v3256 = vadd.f32 %v3227, %v3255
      %v3257 = vpop.f32.mrf.mxu0
      %v3258 = vadd.f32 %v3229, %v3257
      %3259 = vdwg.mxu0
      %3260 = vmatpush.bf16.msra.mxu0 %v2547
      %3261 = vmatpush.bf16.msra.mxu0 %v2546
      %3262 = vmatpush.bf16.msra.mxu0 %v2545
      %3263 = vmatpush.bf16.msra.mxu0 %v2544
      %3264 = vmatpush.bf16.msra.mxu0 %v2543
      %3265 = vmatpush.bf16.msra.mxu0 %v2542
      %3266 = vmatpush.bf16.msra.mxu0 %v2541
      %3267 = vmatpush.bf16.msra.mxu0 %v2540
      %3268 = vmatmul.bf16.gmra.mxu0 %v1468
      %v3269 = vpop.f32.mrf.mxu0
      %v3270 = vadd.f32 %v3241, %v3269
      %v3271 = vpop.f32.mrf.mxu0
      %v3272 = vadd.f32 %v3243, %v3271
      %3273 = vmatmul.bf16.gmra.mxu0 %v1492
      %v3274 = vpop.f32.mrf.mxu0
      %v3275 = vadd.f32 %v3246, %v3274
      %v3276 = vpop.f32.mrf.mxu0
      %v3277 = vadd.f32 %v3248, %v3276
      %3278 = vmatmul.bf16.gmra.mxu0 %v1516
      %v3279 = vpop.f32.mrf.mxu0
      %v3280 = vadd.f32 %v3251, %v3279
      %v3281 = vpop.f32.mrf.mxu0
      %v3282 = vadd.f32 %v3253, %v3281
      %3283 = vmatmul.bf16.gmra.mxu0 %v1540
      %v3284 = vpop.f32.mrf.mxu0
      %v3285 = vadd.f32 %v3256, %v3284
      %v3286 = vpop.f32.mrf.mxu0
      %v3287 = vadd.f32 %v3258, %v3286
      %3288 = vdwg.mxu0
      %3289 = vmatpush.bf16.msra.mxu0 %v2555
      %3290 = vmatpush.bf16.msra.mxu0 %v2554
      %3291 = vmatpush.bf16.msra.mxu0 %v2553
      %3292 = vmatpush.bf16.msra.mxu0 %v2552
      %3293 = vmatpush.bf16.msra.mxu0 %v2551
      %3294 = vmatpush.bf16.msra.mxu0 %v2550
      %3295 = vmatpush.bf16.msra.mxu0 %v2549
      %3296 = vmatpush.bf16.msra.mxu0 %v2548
      %3297 = vmatmul.bf16.gmra.mxu0 %v1469
      %v3298 = vpop.f32.mrf.mxu0
      %v3299 = vadd.f32 %v3270, %v3298
      %v3300 = vpop.f32.mrf.mxu0
      %v3301 = vadd.f32 %v3272, %v3300
      %3302 = vmatmul.bf16.gmra.mxu0 %v1493
      %v3303 = vpop.f32.mrf.mxu0
      %v3304 = vadd.f32 %v3275, %v3303
      %v3305 = vpop.f32.mrf.mxu0
      %v3306 = vadd.f32 %v3277, %v3305
      %3307 = vmatmul.bf16.gmra.mxu0 %v1517
      %v3308 = vpop.f32.mrf.mxu0
      %v3309 = vadd.f32 %v3280, %v3308
      %v3310 = vpop.f32.mrf.mxu0
      %v3311 = vadd.f32 %v3282, %v3310
      %3312 = vmatmul.bf16.gmra.mxu0 %v1541
      %v3313 = vpop.f32.mrf.mxu0
      %v3314 = vadd.f32 %v3285, %v3313
      %v3315 = vpop.f32.mrf.mxu0
      %v3316 = vadd.f32 %v3287, %v3315
      %3317 = vdwg.mxu0
      %3318 = vmatpush.bf16.msra.mxu0 %v2563
      %3319 = vmatpush.bf16.msra.mxu0 %v2562
      %3320 = vmatpush.bf16.msra.mxu0 %v2561
      %3321 = vmatpush.bf16.msra.mxu0 %v2560
      %3322 = vmatpush.bf16.msra.mxu0 %v2559
      %3323 = vmatpush.bf16.msra.mxu0 %v2558
      %3324 = vmatpush.bf16.msra.mxu0 %v2557
      %3325 = vmatpush.bf16.msra.mxu0 %v2556
      %3326 = vmatmul.bf16.gmra.mxu0 %v1470
      %v3327 = vpop.f32.mrf.mxu0
      %v3328 = vadd.f32 %v3299, %v3327
      %v3329 = vpop.f32.mrf.mxu0
      %v3330 = vadd.f32 %v3301, %v3329
      %3331 = vmatmul.bf16.gmra.mxu0 %v1494
      %v3332 = vpop.f32.mrf.mxu0
      %v3333 = vadd.f32 %v3304, %v3332
      %v3334 = vpop.f32.mrf.mxu0
      %v3335 = vadd.f32 %v3306, %v3334
      %3336 = vmatmul.bf16.gmra.mxu0 %v1518
      %v3337 = vpop.f32.mrf.mxu0
      %v3338 = vadd.f32 %v3309, %v3337
      %v3339 = vpop.f32.mrf.mxu0
      %v3340 = vadd.f32 %v3311, %v3339
      %3341 = vmatmul.bf16.gmra.mxu0 %v1542
      %v3342 = vpop.f32.mrf.mxu0
      %v3343 = vadd.f32 %v3314, %v3342
      %v3344 = vpop.f32.mrf.mxu0
      %v3345 = vadd.f32 %v3316, %v3344
      %3346 = vdwg.mxu0
      %3347 = vmatpush.bf16.msra.mxu0 %v2571
      %3348 = vmatpush.bf16.msra.mxu0 %v2570
      %3349 = vmatpush.bf16.msra.mxu0 %v2569
      %3350 = vmatpush.bf16.msra.mxu0 %v2568
      %3351 = vmatpush.bf16.msra.mxu0 %v2567
      %3352 = vmatpush.bf16.msra.mxu0 %v2566
      %3353 = vmatpush.bf16.msra.mxu0 %v2565
      %3354 = vmatpush.bf16.msra.mxu0 %v2564
      %3355 = vmatmul.bf16.gmra.mxu0 %v1471
      %v3356 = vpop.f32.mrf.mxu0
      %v3357 = vadd.f32 %v3328, %v3356
      %v3358 = vpop.f32.mrf.mxu0
      %v3359 = vadd.f32 %v3330, %v3358
      %3360 = vmatmul.bf16.gmra.mxu0 %v1495
      %v3361 = vpop.f32.mrf.mxu0
      %v3362 = vadd.f32 %v3333, %v3361
      %v3363 = vpop.f32.mrf.mxu0
      %v3364 = vadd.f32 %v3335, %v3363
      %3365 = vmatmul.bf16.gmra.mxu0 %v1519
      %v3366 = vpop.f32.mrf.mxu0
      %v3367 = vadd.f32 %v3338, %v3366
      %v3368 = vpop.f32.mrf.mxu0
      %v3369 = vadd.f32 %v3340, %v3368
      %3370 = vmatmul.bf16.gmra.mxu0 %v1543
      %v3371 = vpop.f32.mrf.mxu0
      %v3372 = vadd.f32 %v3343, %v3371
      %v3373 = vpop.f32.mrf.mxu0
      %v3374 = vadd.f32 %v3345, %v3373
      %3375 = vdwg.mxu0
      %3376 = vmatpush.bf16.msra.mxu0 %v2579
      %3377 = vmatpush.bf16.msra.mxu0 %v2578
      %3378 = vmatpush.bf16.msra.mxu0 %v2577
      %3379 = vmatpush.bf16.msra.mxu0 %v2576
      %3380 = vmatpush.bf16.msra.mxu0 %v2575
      %3381 = vmatpush.bf16.msra.mxu0 %v2574
      %3382 = vmatpush.bf16.msra.mxu0 %v2573
      %3383 = vmatpush.bf16.msra.mxu0 %v2572
      %3384 = vmatmul.bf16.gmra.mxu0 %v1472
      %v3385 = vpop.f32.mrf.mxu0
      %v3386 = vadd.f32 %v3357, %v3385
      %v3387 = vpop.f32.mrf.mxu0
      %v3388 = vadd.f32 %v3359, %v3387
      %3389 = vmatmul.bf16.gmra.mxu0 %v1496
      %v3390 = vpop.f32.mrf.mxu0
      %v3391 = vadd.f32 %v3362, %v3390
      %v3392 = vpop.f32.mrf.mxu0
      %v3393 = vadd.f32 %v3364, %v3392
      %3394 = vmatmul.bf16.gmra.mxu0 %v1520
      %v3395 = vpop.f32.mrf.mxu0
      %v3396 = vadd.f32 %v3367, %v3395
      %v3397 = vpop.f32.mrf.mxu0
      %v3398 = vadd.f32 %v3369, %v3397
      %3399 = vmatmul.bf16.gmra.mxu0 %v1544
      %v3400 = vpop.f32.mrf.mxu0
      %v3401 = vadd.f32 %v3372, %v3400
      %v3402 = vpop.f32.mrf.mxu0
      %v3403 = vadd.f32 %v3374, %v3402
      %3404 = vdwg.mxu0
      %3405 = vmatpush.bf16.msra.mxu0 %v2587
      %3406 = vmatpush.bf16.msra.mxu0 %v2586
      %3407 = vmatpush.bf16.msra.mxu0 %v2585
      %3408 = vmatpush.bf16.msra.mxu0 %v2584
      %3409 = vmatpush.bf16.msra.mxu0 %v2583
      %3410 = vmatpush.bf16.msra.mxu0 %v2582
      %3411 = vmatpush.bf16.msra.mxu0 %v2581
      %3412 = vmatpush.bf16.msra.mxu0 %v2580
      %3413 = vmatmul.bf16.gmra.mxu0 %v1473
      %v3414 = vpop.f32.mrf.mxu0
      %v3415 = vadd.f32 %v3386, %v3414
      %v3416 = vpop.f32.mrf.mxu0
      %v3417 = vadd.f32 %v3388, %v3416
      %3418 = vmatmul.bf16.gmra.mxu0 %v1497
      %v3419 = vpop.f32.mrf.mxu0
      %v3420 = vadd.f32 %v3391, %v3419
      %v3421 = vpop.f32.mrf.mxu0
      %v3422 = vadd.f32 %v3393, %v3421
      %3423 = vmatmul.bf16.gmra.mxu0 %v1521
      %v3424 = vpop.f32.mrf.mxu0
      %v3425 = vadd.f32 %v3396, %v3424
      %v3426 = vpop.f32.mrf.mxu0
      %v3427 = vadd.f32 %v3398, %v3426
      %3428 = vmatmul.bf16.gmra.mxu0 %v1545
      %v3429 = vpop.f32.mrf.mxu0
      %v3430 = vadd.f32 %v3401, %v3429
      %v3431 = vpop.f32.mrf.mxu0
      %v3432 = vadd.f32 %v3403, %v3431
      %3433 = vdwg.mxu0
      %3434 = vmatpush.bf16.msra.mxu0 %v2595
      %3435 = vmatpush.bf16.msra.mxu0 %v2594
      %3436 = vmatpush.bf16.msra.mxu0 %v2593
      %3437 = vmatpush.bf16.msra.mxu0 %v2592
      %3438 = vmatpush.bf16.msra.mxu0 %v2591
      %3439 = vmatpush.bf16.msra.mxu0 %v2590
      %3440 = vmatpush.bf16.msra.mxu0 %v2589
      %3441 = vmatpush.bf16.msra.mxu0 %v2588
      %3442 = vmatmul.bf16.gmra.mxu0 %v1474
      %v3443 = vpop.f32.mrf.mxu0
      %v3444 = vadd.f32 %v3415, %v3443
      %v3445 = vpop.f32.mrf.mxu0
      %v3446 = vadd.f32 %v3417, %v3445
      %3447 = vmatmul.bf16.gmra.mxu0 %v1498
      %v3448 = vpop.f32.mrf.mxu0
      %v3449 = vadd.f32 %v3420, %v3448
      %v3450 = vpop.f32.mrf.mxu0
      %v3451 = vadd.f32 %v3422, %v3450
      %3452 = vmatmul.bf16.gmra.mxu0 %v1522
      %v3453 = vpop.f32.mrf.mxu0
      %v3454 = vadd.f32 %v3425, %v3453
      %v3455 = vpop.f32.mrf.mxu0
      %v3456 = vadd.f32 %v3427, %v3455
      %3457 = vmatmul.bf16.gmra.mxu0 %v1546
      %v3458 = vpop.f32.mrf.mxu0
      %v3459 = vadd.f32 %v3430, %v3458
      %v3460 = vpop.f32.mrf.mxu0
      %v3461 = vadd.f32 %v3432, %v3460
      %3462 = vdwg.mxu0
      %3463 = vmatpush.bf16.msra.mxu0 %v2603
      %3464 = vmatpush.bf16.msra.mxu0 %v2602
      %3465 = vmatpush.bf16.msra.mxu0 %v2601
      %3466 = vmatpush.bf16.msra.mxu0 %v2600
      %3467 = vmatpush.bf16.msra.mxu0 %v2599
      %3468 = vmatpush.bf16.msra.mxu0 %v2598
      %3469 = vmatpush.bf16.msra.mxu0 %v2597
      %3470 = vmatpush.bf16.msra.mxu0 %v2596
      %3471 = vmatmul.bf16.gmra.mxu0 %v1475
      %v3472 = vpop.f32.mrf.mxu0
      %v3473 = vadd.f32 %v3444, %v3472
      %v3474 = vpop.f32.mrf.mxu0
      %v3475 = vadd.f32 %v3446, %v3474
      %3476 = vmatmul.bf16.gmra.mxu0 %v1499
      %v3477 = vpop.f32.mrf.mxu0
      %v3478 = vadd.f32 %v3449, %v3477
      %v3479 = vpop.f32.mrf.mxu0
      %v3480 = vadd.f32 %v3451, %v3479
      %3481 = vmatmul.bf16.gmra.mxu0 %v1523
      %v3482 = vpop.f32.mrf.mxu0
      %v3483 = vadd.f32 %v3454, %v3482
      %v3484 = vpop.f32.mrf.mxu0
      %v3485 = vadd.f32 %v3456, %v3484
      %3486 = vmatmul.bf16.gmra.mxu0 %v1547
      %v3487 = vpop.f32.mrf.mxu0
      %v3488 = vadd.f32 %v3459, %v3487
      %v3489 = vpop.f32.mrf.mxu0
      %v3490 = vadd.f32 %v3461, %v3489
      %3491 = vdwg.mxu0
      %v3492 = vmax.f32 %v3473, 0.0
      %v3493 = vmax.f32 %v3475, 0.0
      %v3494 = vmax.f32 %v3478, 0.0
      %v3495 = vmax.f32 %v3480, 0.0
      %v3496 = vmax.f32 %v3483, 0.0
      %v3497 = vmax.f32 %v3485, 0.0
      %v3498 = vmax.f32 %v3488, 0.0
      %v3499 = vmax.f32 %v3490, 0.0
      %v3500 = vpack.c.bf16 %v3493, %v3492
      %v3501 = vpack.c.bf16 %v3495, %v3494
      %v3502 = vpack.c.bf16 %v3497, %v3496
      %v3503 = vpack.c.bf16 %v3499, %v3498
      %v3506 = vunpack.c.l.b16 %v733
      %v3507 = vunpack.c.l.b16 %v734
      %v3508 = vpack.c.b16 %v3507, %v3506
      %v3510 = vsel %vm737, %v3508, 0
      %3512 = vmatpush.bf16.msra.mxu0 0
      %3513 = vmatpush.bf16.msra.mxu0 0
      %3514 = vmatpush.bf16.msra.mxu0 0
      %3515 = vmatpush.bf16.msra.mxu0 0
      %3516 = vmatpush.bf16.msra.mxu0 %v3503
      %3517 = vmatpush.bf16.msra.mxu0 %v3502
      %3518 = vmatpush.bf16.msra.mxu0 %v3501
      %3519 = vmatpush.bf16.msra.mxu0 %v3500
      %3520 = vmatmul.bf16.gmra.mxu0 %v3510
      %v3521 = vpop.f32.mrf.mxu0
      %v3522 = vadd.f32 0.0, %v3521
      %v3523 = vpop.f32.mrf.mxu0
      %v3524 = vadd.f32 0.0, %v3523
      %3525 = vdwg.mxu0
      %v3526 = vmul.f32 %v3522, %v760
      %v3527 = vmul.f32 %v3524, %v775
      %v3528 = vpack.c.bf16 %v3527, %v3526
      %v3529 = vld [vmem:[%s6] sm:$0xf]
      %v3530 = vld [vmem:[%s6 + $0x4] sm:$0xf]
      %v3531 = vld [vmem:[%s6 + $0x8] sm:$0xf]
      %v3532 = vld [vmem:[%s6 + $0xc] sm:$0xf]
      %v3533 = vld [vmem:[%s6 + $0x10] sm:$0xf]
      %v3534 = vld [vmem:[%s6 + $0x14] sm:$0xf]
      %v3535 = vld [vmem:[%s6 + $0x18] sm:$0xf]
      %v3536 = vld [vmem:[%s6 + $0x1c] sm:$0xf]
      %v3537 = vld [vmem:[%s6 + $0x20] sm:$0xf]
      %v3538 = vld [vmem:[%s6 + $0x24] sm:$0xf]
      %v3539 = vld [vmem:[%s6 + $0x28] sm:$0xf]
      %v3540 = vld [vmem:[%s6 + $0x2c] sm:$0xf]
      %v3541 = vld [vmem:[%s6 + $0x30] sm:$0xf]
      %v3542 = vld [vmem:[%s6 + $0x34] sm:$0xf]
      %v3543 = vld [vmem:[%s6 + $0x38] sm:$0xf]
      %v3544 = vld [vmem:[%s6 + $0x3c] sm:$0xf]
      %v3545 = vld [vmem:[%s7] sm:$0x1]
      %v3547 = vperm.slane %v3545, 0
      %v3565 = vunpack.c.l.b16 %v3529
      %v3566 = vunpack.c.l.b16 %v3530
      %v3567 = vunpack.c.l.b16 %v3531
      %v3568 = vunpack.c.l.b16 %v3532
      %v3569 = vunpack.c.l.b16 %v3533
      %v3570 = vunpack.c.l.b16 %v3534
      %v3571 = vunpack.c.l.b16 %v3535
      %v3572 = vunpack.c.l.b16 %v3536
      %v3573 = vunpack.c.l.b16 %v3537
      %v3574 = vunpack.c.l.b16 %v3538
      %v3575 = vunpack.c.l.b16 %v3539
      %v3576 = vunpack.c.l.b16 %v3540
      %v3577 = vunpack.c.l.b16 %v3541
      %v3578 = vunpack.c.l.b16 %v3542
      %v3579 = vunpack.c.l.b16 %v3543
      %v3580 = vunpack.c.l.b16 %v3544
      %v3581 = vpack.c.b16 %v3566, %v3565
      %v3582 = vpack.c.b16 %v3568, %v3567
      %v3583 = vpack.c.b16 %v3570, %v3569
      %v3584 = vpack.c.b16 %v3572, %v3571
      %v3585 = vpack.c.b16 %v3574, %v3573
      %v3586 = vpack.c.b16 %v3576, %v3575
      %v3587 = vpack.c.b16 %v3578, %v3577
      %v3588 = vpack.c.b16 %v3580, %v3579
      %3597 = vmatpush.bf16.msra.mxu0 %v3588
      %3598 = vmatpush.bf16.msra.mxu0 %v3587
      %3599 = vmatpush.bf16.msra.mxu0 %v3586
      %3600 = vmatpush.bf16.msra.mxu0 %v3585
      %3601 = vmatpush.bf16.msra.mxu0 %v3584
      %3602 = vmatpush.bf16.msra.mxu0 %v3583
      %3603 = vmatpush.bf16.msra.mxu0 %v3582
      %3604 = vmatpush.bf16.msra.mxu0 %v3581
      %3605 = vmatmul.bf16.gmra.mxu0 %v3528
      %v3606 = vpop.f32.mrf.mxu0
      %v3607 = vadd.f32 %v3547, %v3606
      %v3608 = vpop.f32.mrf.mxu0
      %v3609 = vadd.f32 %v3547, %v3608
      %3610 = vdwg.mxu0
      %v3611 = vmax.f32 %v3607, 0.0
      %v3612 = vmax.f32 %v3609, 0.0
      %v3613 = vpack.c.bf16 %v3612, %v3611
      %v3614 = vld [vmem:[%s8] sm:$0xf]
      %v3615 = vld [vmem:[%s8 + $0x4] sm:$0xf]
      %v3616 = vld [vmem:[%s8 + $0x8] sm:$0xf]
      %v3617 = vld [vmem:[%s8 + $0xc] sm:$0xf]
      %v3618 = vld [vmem:[%s8 + $0x10] sm:$0xf]
      %v3619 = vld [vmem:[%s8 + $0x14] sm:$0xf]
      %v3620 = vld [vmem:[%s8 + $0x18] sm:$0xf]
      %v3621 = vld [vmem:[%s8 + $0x1c] sm:$0xf]
      %v3622 = vld [vmem:[%s8 + $0x20] sm:$0xf]
      %v3623 = vld [vmem:[%s8 + $0x24] sm:$0xf]
      %v3624 = vld [vmem:[%s8 + $0x28] sm:$0xf]
      %v3625 = vld [vmem:[%s8 + $0x2c] sm:$0xf]
      %v3626 = vld [vmem:[%s8 + $0x30] sm:$0xf]
      %v3627 = vld [vmem:[%s8 + $0x34] sm:$0xf]
      %v3628 = vld [vmem:[%s8 + $0x38] sm:$0xf]
      %v3629 = vld [vmem:[%s8 + $0x3c] sm:$0xf]
      %v3630 = vld [vmem:[%s9] sm:$0x1]
      %v3632 = vperm.slane %v3630, 0
      %v3650 = vunpack.c.l.b16 %v3614
      %v3651 = vunpack.c.l.b16 %v3615
      %v3652 = vunpack.c.l.b16 %v3616
      %v3653 = vunpack.c.l.b16 %v3617
      %v3654 = vunpack.c.l.b16 %v3618
      %v3655 = vunpack.c.l.b16 %v3619
      %v3656 = vunpack.c.l.b16 %v3620
      %v3657 = vunpack.c.l.b16 %v3621
      %v3658 = vunpack.c.l.b16 %v3622
      %v3659 = vunpack.c.l.b16 %v3623
      %v3660 = vunpack.c.l.b16 %v3624
      %v3661 = vunpack.c.l.b16 %v3625
      %v3662 = vunpack.c.l.b16 %v3626
      %v3663 = vunpack.c.l.b16 %v3627
      %v3664 = vunpack.c.l.b16 %v3628
      %v3665 = vunpack.c.l.b16 %v3629
      %v3666 = vpack.c.b16 %v3651, %v3650
      %v3667 = vpack.c.b16 %v3653, %v3652
      %v3668 = vpack.c.b16 %v3655, %v3654
      %v3669 = vpack.c.b16 %v3657, %v3656
      %v3670 = vpack.c.b16 %v3659, %v3658
      %v3671 = vpack.c.b16 %v3661, %v3660
      %v3672 = vpack.c.b16 %v3663, %v3662
      %v3673 = vpack.c.b16 %v3665, %v3664
      %3682 = vmatpush.bf16.msra.mxu0 %v3673
      %3683 = vmatpush.bf16.msra.mxu0 %v3672
      %3684 = vmatpush.bf16.msra.mxu0 %v3671
      %3685 = vmatpush.bf16.msra.mxu0 %v3670
      %3686 = vmatpush.bf16.msra.mxu0 %v3669
      %3687 = vmatpush.bf16.msra.mxu0 %v3668
      %3688 = vmatpush.bf16.msra.mxu0 %v3667
      %3689 = vmatpush.bf16.msra.mxu0 %v3666
      %3690 = vmatmul.bf16.gmra.mxu0 %v3613
      %v3691 = vpop.f32.mrf.mxu0
      %v3692 = vadd.f32 %v3632, %v3691
      %v3693 = vpop.f32.mrf.mxu0
      %v3694 = vadd.f32 %v3632, %v3693
      %3695 = vdwg.mxu0
      %v3696 = vld [vmem:[%s4] sm:$0xf]
      %v3697 = vld [vmem:[%s4 + $0x4] sm:$0xf]
      %v3698 = vld [vmem:[%s4 + $0x8] sm:$0xf]
      %v3699 = vld [vmem:[%s4 + $0xc] sm:$0xf]
      %v3700 = vld [vmem:[%s4 + $0x10] sm:$0xf]
      %v3701 = vld [vmem:[%s4 + $0x14] sm:$0xf]
      %v3702 = vld [vmem:[%s4 + $0x18] sm:$0xf]
      %v3703 = vld [vmem:[%s4 + $0x1c] sm:$0xf]
      %v3704 = vld [vmem:[%s4 + $0x20] sm:$0xf]
      %v3705 = vld [vmem:[%s4 + $0x24] sm:$0xf]
      %v3706 = vld [vmem:[%s4 + $0x28] sm:$0xf]
      %v3707 = vld [vmem:[%s4 + $0x2c] sm:$0xf]
      %v3708 = vld [vmem:[%s4 + $0x30] sm:$0xf]
      %v3709 = vld [vmem:[%s4 + $0x34] sm:$0xf]
      %v3710 = vld [vmem:[%s4 + $0x38] sm:$0xf]
      %v3711 = vld [vmem:[%s4 + $0x3c] sm:$0xf]
      %v3712 = vld [vmem:[%s4 + $0x40] sm:$0xf]
      %v3713 = vld [vmem:[%s4 + $0x44] sm:$0xf]
      %v3714 = vld [vmem:[%s4 + $0x48] sm:$0xf]
      %v3715 = vld [vmem:[%s4 + $0x4c] sm:$0xf]
      %v3716 = vld [vmem:[%s4 + $0x50] sm:$0xf]
      %v3717 = vld [vmem:[%s4 + $0x54] sm:$0xf]
      %v3718 = vld [vmem:[%s4 + $0x58] sm:$0xf]
      %v3719 = vld [vmem:[%s4 + $0x5c] sm:$0xf]
      %v3720 = vld [vmem:[%s4 + $0x60] sm:$0xf]
      %v3721 = vld [vmem:[%s4 + $0x64] sm:$0xf]
      %v3722 = vld [vmem:[%s4 + $0x68] sm:$0xf]
      %v3723 = vld [vmem:[%s4 + $0x6c] sm:$0xf]
      %v3724 = vld [vmem:[%s4 + $0x70] sm:$0xf]
      %v3725 = vld [vmem:[%s4 + $0x74] sm:$0xf]
      %v3726 = vld [vmem:[%s4 + $0x78] sm:$0xf]
      %v3727 = vld [vmem:[%s4 + $0x7c] sm:$0xf]
      %v3728 = vld [vmem:[%s4 + $0x80] sm:$0xf]
      %v3729 = vld [vmem:[%s4 + $0x84] sm:$0xf]
      %v3730 = vld [vmem:[%s4 + $0x88] sm:$0xf]
      %v3731 = vld [vmem:[%s4 + $0x8c] sm:$0xf]
      %v3732 = vld [vmem:[%s4 + $0x90] sm:$0xf]
      %v3733 = vld [vmem:[%s4 + $0x94] sm:$0xf]
      %v3734 = vld [vmem:[%s4 + $0x98] sm:$0xf]
      %v3735 = vld [vmem:[%s4 + $0x9c] sm:$0xf]
      %v3736 = vld [vmem:[%s4 + $0xa0] sm:$0xf]
      %v3737 = vld [vmem:[%s4 + $0xa4] sm:$0xf]
      %v3738 = vld [vmem:[%s4 + $0xa8] sm:$0xf]
      %v3739 = vld [vmem:[%s4 + $0xac] sm:$0xf]
      %v3740 = vld [vmem:[%s4 + $0xb0] sm:$0xf]
      %v3741 = vld [vmem:[%s4 + $0xb4] sm:$0xf]
      %v3742 = vld [vmem:[%s4 + $0xb8] sm:$0xf]
      %v3743 = vld [vmem:[%s4 + $0xbc] sm:$0xf]
      %v3744 = vld [vmem:[%s4 + $0xc0] sm:$0xf]
      %v3745 = vld [vmem:[%s4 + $0xc4] sm:$0xf]
      %v3746 = vld [vmem:[%s4 + $0xc8] sm:$0xf]
      %v3747 = vld [vmem:[%s4 + $0xcc] sm:$0xf]
      %v3748 = vld [vmem:[%s4 + $0xd0] sm:$0xf]
      %v3749 = vld [vmem:[%s4 + $0xd4] sm:$0xf]
      %v3750 = vld [vmem:[%s4 + $0xd8] sm:$0xf]
      %v3751 = vld [vmem:[%s4 + $0xdc] sm:$0xf]
      %v3752 = vld [vmem:[%s4 + $0xe0] sm:$0xf]
      %v3753 = vld [vmem:[%s4 + $0xe4] sm:$0xf]
      %v3754 = vld [vmem:[%s4 + $0xe8] sm:$0xf]
      %v3755 = vld [vmem:[%s4 + $0xec] sm:$0xf]
      %v3756 = vld [vmem:[%s4 + $0xf0] sm:$0xf]
      %v3757 = vld [vmem:[%s4 + $0xf4] sm:$0xf]
      %v3758 = vld [vmem:[%s4 + $0xf8] sm:$0xf]
      %v3759 = vld [vmem:[%s4 + $0xfc] sm:$0xf]
      %v3760 = vld [vmem:[%s4 + $0x100] sm:$0xf]
      %v3761 = vld [vmem:[%s4 + $0x104] sm:$0xf]
      %v3762 = vld [vmem:[%s4 + $0x108] sm:$0xf]
      %v3763 = vld [vmem:[%s4 + $0x10c] sm:$0xf]
      %v3764 = vld [vmem:[%s4 + $0x110] sm:$0xf]
      %v3765 = vld [vmem:[%s4 + $0x114] sm:$0xf]
      %v3766 = vld [vmem:[%s4 + $0x118] sm:$0xf]
      %v3767 = vld [vmem:[%s4 + $0x11c] sm:$0xf]
      %v3768 = vld [vmem:[%s4 + $0x120] sm:$0xf]
      %v3769 = vld [vmem:[%s4 + $0x124] sm:$0xf]
      %v3770 = vld [vmem:[%s4 + $0x128] sm:$0xf]
      %v3771 = vld [vmem:[%s4 + $0x12c] sm:$0xf]
      %v3772 = vld [vmem:[%s4 + $0x130] sm:$0xf]
      %v3773 = vld [vmem:[%s4 + $0x134] sm:$0xf]
      %v3774 = vld [vmem:[%s4 + $0x138] sm:$0xf]
      %v3775 = vld [vmem:[%s4 + $0x13c] sm:$0xf]
      %v3776 = vld [vmem:[%s4 + $0x140] sm:$0xf]
      %v3777 = vld [vmem:[%s4 + $0x144] sm:$0xf]
      %v3778 = vld [vmem:[%s4 + $0x148] sm:$0xf]
      %v3779 = vld [vmem:[%s4 + $0x14c] sm:$0xf]
      %v3780 = vld [vmem:[%s4 + $0x150] sm:$0xf]
      %v3781 = vld [vmem:[%s4 + $0x154] sm:$0xf]
      %v3782 = vld [vmem:[%s4 + $0x158] sm:$0xf]
      %v3783 = vld [vmem:[%s4 + $0x15c] sm:$0xf]
      %v3784 = vld [vmem:[%s4 + $0x160] sm:$0xf]
      %v3785 = vld [vmem:[%s4 + $0x164] sm:$0xf]
      %v3786 = vld [vmem:[%s4 + $0x168] sm:$0xf]
      %v3787 = vld [vmem:[%s4 + $0x16c] sm:$0xf]
      %v3788 = vld [vmem:[%s4 + $0x170] sm:$0xf]
      %v3789 = vld [vmem:[%s4 + $0x174] sm:$0xf]
      %v3790 = vld [vmem:[%s4 + $0x178] sm:$0xf]
      %v3791 = vld [vmem:[%s4 + $0x17c] sm:$0xf]
      %v3792 = vld [vmem:[%s4 + $0x180] sm:$0xf]
      %v3793 = vld [vmem:[%s4 + $0x184] sm:$0xf]
      %v3794 = vld [vmem:[%s4 + $0x188] sm:$0xf]
      %v3795 = vld [vmem:[%s4 + $0x18c] sm:$0xf]
      %v3796 = vld [vmem:[%s4 + $0x190] sm:$0xf]
      %v3797 = vld [vmem:[%s4 + $0x194] sm:$0xf]
      %v3798 = vld [vmem:[%s4 + $0x198] sm:$0xf]
      %v3799 = vld [vmem:[%s4 + $0x19c] sm:$0xf]
      %v3800 = vld [vmem:[%s4 + $0x1a0] sm:$0xf]
      %v3801 = vld [vmem:[%s4 + $0x1a4] sm:$0xf]
      %v3802 = vld [vmem:[%s4 + $0x1a8] sm:$0xf]
      %v3803 = vld [vmem:[%s4 + $0x1ac] sm:$0xf]
      %v3804 = vld [vmem:[%s4 + $0x1b0] sm:$0xf]
      %v3805 = vld [vmem:[%s4 + $0x1b4] sm:$0xf]
      %v3806 = vld [vmem:[%s4 + $0x1b8] sm:$0xf]
      %v3807 = vld [vmem:[%s4 + $0x1bc] sm:$0xf]
      %v3808 = vld [vmem:[%s4 + $0x1c0] sm:$0xf]
      %v3809 = vld [vmem:[%s4 + $0x1c4] sm:$0xf]
      %v3810 = vld [vmem:[%s4 + $0x1c8] sm:$0xf]
      %v3811 = vld [vmem:[%s4 + $0x1cc] sm:$0xf]
      %v3812 = vld [vmem:[%s4 + $0x1d0] sm:$0xf]
      %v3813 = vld [vmem:[%s4 + $0x1d4] sm:$0xf]
      %v3814 = vld [vmem:[%s4 + $0x1d8] sm:$0xf]
      %v3815 = vld [vmem:[%s4 + $0x1dc] sm:$0xf]
      %v3816 = vld [vmem:[%s4 + $0x1e0] sm:$0xf]
      %v3817 = vld [vmem:[%s4 + $0x1e4] sm:$0xf]
      %v3818 = vld [vmem:[%s4 + $0x1e8] sm:$0xf]
      %v3819 = vld [vmem:[%s4 + $0x1ec] sm:$0xf]
      %v3820 = vld [vmem:[%s4 + $0x1f0] sm:$0xf]
      %v3821 = vld [vmem:[%s4 + $0x1f4] sm:$0xf]
      %v3822 = vld [vmem:[%s4 + $0x1f8] sm:$0xf]
      %v3823 = vld [vmem:[%s4 + $0x1fc] sm:$0xf]
      %v3824 = vld [vmem:[%s4 + $0x200] sm:$0xf]
      %v3825 = vld [vmem:[%s4 + $0x204] sm:$0xf]
      %v3826 = vld [vmem:[%s4 + $0x208] sm:$0xf]
      %v3827 = vld [vmem:[%s4 + $0x20c] sm:$0xf]
      %v3828 = vld [vmem:[%s4 + $0x210] sm:$0xf]
      %v3829 = vld [vmem:[%s4 + $0x214] sm:$0xf]
      %v3830 = vld [vmem:[%s4 + $0x218] sm:$0xf]
      %v3831 = vld [vmem:[%s4 + $0x21c] sm:$0xf]
      %v3832 = vld [vmem:[%s4 + $0x220] sm:$0xf]
      %v3833 = vld [vmem:[%s4 + $0x224] sm:$0xf]
      %v3834 = vld [vmem:[%s4 + $0x228] sm:$0xf]
      %v3835 = vld [vmem:[%s4 + $0x22c] sm:$0xf]
      %v3836 = vld [vmem:[%s4 + $0x230] sm:$0xf]
      %v3837 = vld [vmem:[%s4 + $0x234] sm:$0xf]
      %v3838 = vld [vmem:[%s4 + $0x238] sm:$0xf]
      %v3839 = vld [vmem:[%s4 + $0x23c] sm:$0xf]
      %v3840 = vld [vmem:[%s4 + $0x240] sm:$0xf]
      %v3841 = vld [vmem:[%s4 + $0x244] sm:$0xf]
      %v3842 = vld [vmem:[%s4 + $0x248] sm:$0xf]
      %v3843 = vld [vmem:[%s4 + $0x24c] sm:$0xf]
      %v3844 = vld [vmem:[%s4 + $0x250] sm:$0xf]
      %v3845 = vld [vmem:[%s4 + $0x254] sm:$0xf]
      %v3846 = vld [vmem:[%s4 + $0x258] sm:$0xf]
      %v3847 = vld [vmem:[%s4 + $0x25c] sm:$0xf]
      %v3848 = vld [vmem:[%s4 + $0x260] sm:$0xf]
      %v3849 = vld [vmem:[%s4 + $0x264] sm:$0xf]
      %v3850 = vld [vmem:[%s4 + $0x268] sm:$0xf]
      %v3851 = vld [vmem:[%s4 + $0x26c] sm:$0xf]
      %v3852 = vld [vmem:[%s4 + $0x270] sm:$0xf]
      %v3853 = vld [vmem:[%s4 + $0x274] sm:$0xf]
      %v3854 = vld [vmem:[%s4 + $0x278] sm:$0xf]
      %v3855 = vld [vmem:[%s4 + $0x27c] sm:$0xf]
      %v3856 = vld [vmem:[%s4 + $0x280] sm:$0xf]
      %v3857 = vld [vmem:[%s4 + $0x284] sm:$0xf]
      %v3858 = vld [vmem:[%s4 + $0x288] sm:$0xf]
      %v3859 = vld [vmem:[%s4 + $0x28c] sm:$0xf]
      %v3860 = vld [vmem:[%s4 + $0x290] sm:$0xf]
      %v3861 = vld [vmem:[%s4 + $0x294] sm:$0xf]
      %v3862 = vld [vmem:[%s4 + $0x298] sm:$0xf]
      %v3863 = vld [vmem:[%s4 + $0x29c] sm:$0xf]
      %v3864 = vld [vmem:[%s4 + $0x2a0] sm:$0xf]
      %v3865 = vld [vmem:[%s4 + $0x2a4] sm:$0xf]
      %v3866 = vld [vmem:[%s4 + $0x2a8] sm:$0xf]
      %v3867 = vld [vmem:[%s4 + $0x2ac] sm:$0xf]
      %v3868 = vld [vmem:[%s4 + $0x2b0] sm:$0xf]
      %v3869 = vld [vmem:[%s4 + $0x2b4] sm:$0xf]
      %v3870 = vld [vmem:[%s4 + $0x2b8] sm:$0xf]
      %v3871 = vld [vmem:[%s4 + $0x2bc] sm:$0xf]
      %v3872 = vld [vmem:[%s4 + $0x2c0] sm:$0xf]
      %v3873 = vld [vmem:[%s4 + $0x2c4] sm:$0xf]
      %v3874 = vld [vmem:[%s4 + $0x2c8] sm:$0xf]
      %v3875 = vld [vmem:[%s4 + $0x2cc] sm:$0xf]
      %v3876 = vld [vmem:[%s4 + $0x2d0] sm:$0xf]
      %v3877 = vld [vmem:[%s4 + $0x2d4] sm:$0xf]
      %v3878 = vld [vmem:[%s4 + $0x2d8] sm:$0xf]
      %v3879 = vld [vmem:[%s4 + $0x2dc] sm:$0xf]
      %v3880 = vld [vmem:[%s4 + $0x2e0] sm:$0xf]
      %v3881 = vld [vmem:[%s4 + $0x2e4] sm:$0xf]
      %v3882 = vld [vmem:[%s4 + $0x2e8] sm:$0xf]
      %v3883 = vld [vmem:[%s4 + $0x2ec] sm:$0xf]
      %v3884 = vld [vmem:[%s4 + $0x2f0] sm:$0xf]
      %v3885 = vld [vmem:[%s4 + $0x2f4] sm:$0xf]
      %v3886 = vld [vmem:[%s4 + $0x2f8] sm:$0xf]
      %v3887 = vld [vmem:[%s4 + $0x2fc] sm:$0xf]
      %v3888 = vld [vmem:[%s4 + $0x300] sm:$0xf]
      %v3889 = vld [vmem:[%s4 + $0x304] sm:$0xf]
      %v3890 = vld [vmem:[%s4 + $0x308] sm:$0xf]
      %v3891 = vld [vmem:[%s4 + $0x30c] sm:$0xf]
      %v3892 = vld [vmem:[%s4 + $0x310] sm:$0xf]
      %v3893 = vld [vmem:[%s4 + $0x314] sm:$0xf]
      %v3894 = vld [vmem:[%s4 + $0x318] sm:$0xf]
      %v3895 = vld [vmem:[%s4 + $0x31c] sm:$0xf]
      %v3896 = vld [vmem:[%s4 + $0x320] sm:$0xf]
      %v3897 = vld [vmem:[%s4 + $0x324] sm:$0xf]
      %v3898 = vld [vmem:[%s4 + $0x328] sm:$0xf]
      %v3899 = vld [vmem:[%s4 + $0x32c] sm:$0xf]
      %v3900 = vld [vmem:[%s4 + $0x330] sm:$0xf]
      %v3901 = vld [vmem:[%s4 + $0x334] sm:$0xf]
      %v3902 = vld [vmem:[%s4 + $0x338] sm:$0xf]
      %v3903 = vld [vmem:[%s4 + $0x33c] sm:$0xf]
      %v3904 = vld [vmem:[%s4 + $0x340] sm:$0xf]
      %v3905 = vld [vmem:[%s4 + $0x344] sm:$0xf]
      %v3906 = vld [vmem:[%s4 + $0x348] sm:$0xf]
      %v3907 = vld [vmem:[%s4 + $0x34c] sm:$0xf]
      %v3908 = vld [vmem:[%s4 + $0x350] sm:$0xf]
      %v3909 = vld [vmem:[%s4 + $0x354] sm:$0xf]
      %v3910 = vld [vmem:[%s4 + $0x358] sm:$0xf]
      %v3911 = vld [vmem:[%s4 + $0x35c] sm:$0xf]
      %v3912 = vld [vmem:[%s4 + $0x360] sm:$0xf]
      %v3913 = vld [vmem:[%s4 + $0x364] sm:$0xf]
      %v3914 = vld [vmem:[%s4 + $0x368] sm:$0xf]
      %v3915 = vld [vmem:[%s4 + $0x36c] sm:$0xf]
      %v3916 = vld [vmem:[%s4 + $0x370] sm:$0xf]
      %v3917 = vld [vmem:[%s4 + $0x374] sm:$0xf]
      %v3918 = vld [vmem:[%s4 + $0x378] sm:$0xf]
      %v3919 = vld [vmem:[%s4 + $0x37c] sm:$0xf]
      %v3920 = vld [vmem:[%s4 + $0x380] sm:$0xf]
      %v3921 = vld [vmem:[%s4 + $0x384] sm:$0xf]
      %v3922 = vld [vmem:[%s4 + $0x388] sm:$0xf]
      %v3923 = vld [vmem:[%s4 + $0x38c] sm:$0xf]
      %v3924 = vld [vmem:[%s4 + $0x390] sm:$0xf]
      %v3925 = vld [vmem:[%s4 + $0x394] sm:$0xf]
      %v3926 = vld [vmem:[%s4 + $0x398] sm:$0xf]
      %v3927 = vld [vmem:[%s4 + $0x39c] sm:$0xf]
      %v3928 = vld [vmem:[%s4 + $0x3a0] sm:$0xf]
      %v3929 = vld [vmem:[%s4 + $0x3a4] sm:$0xf]
      %v3930 = vld [vmem:[%s4 + $0x3a8] sm:$0xf]
      %v3931 = vld [vmem:[%s4 + $0x3ac] sm:$0xf]
      %v3932 = vld [vmem:[%s4 + $0x3b0] sm:$0xf]
      %v3933 = vld [vmem:[%s4 + $0x3b4] sm:$0xf]
      %v3934 = vld [vmem:[%s4 + $0x3b8] sm:$0xf]
      %v3935 = vld [vmem:[%s4 + $0x3bc] sm:$0xf]
      %v3936 = vld [vmem:[%s4 + $0x3c0] sm:$0xf]
      %v3937 = vld [vmem:[%s4 + $0x3c4] sm:$0xf]
      %v3938 = vld [vmem:[%s4 + $0x3c8] sm:$0xf]
      %v3939 = vld [vmem:[%s4 + $0x3cc] sm:$0xf]
      %v3940 = vld [vmem:[%s4 + $0x3d0] sm:$0xf]
      %v3941 = vld [vmem:[%s4 + $0x3d4] sm:$0xf]
      %v3942 = vld [vmem:[%s4 + $0x3d8] sm:$0xf]
      %v3943 = vld [vmem:[%s4 + $0x3dc] sm:$0xf]
      %v3944 = vld [vmem:[%s4 + $0x3e0] sm:$0xf]
      %v3945 = vld [vmem:[%s4 + $0x3e4] sm:$0xf]
      %v3946 = vld [vmem:[%s4 + $0x3e8] sm:$0xf]
      %v3947 = vld [vmem:[%s4 + $0x3ec] sm:$0xf]
      %v3948 = vld [vmem:[%s4 + $0x3f0] sm:$0xf]
      %v3949 = vld [vmem:[%s4 + $0x3f4] sm:$0xf]
      %v3950 = vld [vmem:[%s4 + $0x3f8] sm:$0xf]
      %v3951 = vld [vmem:[%s4 + $0x3fc] sm:$0xf]
      %v3952 = vld [vmem:[%s4 + $0x400] sm:$0xf]
      %v3953 = vld [vmem:[%s4 + $0x404] sm:$0xf]
      %v3954 = vld [vmem:[%s4 + $0x408] sm:$0xf]
      %v3955 = vld [vmem:[%s4 + $0x40c] sm:$0xf]
      %v3956 = vld [vmem:[%s4 + $0x410] sm:$0xf]
      %v3957 = vld [vmem:[%s4 + $0x414] sm:$0xf]
      %v3958 = vld [vmem:[%s4 + $0x418] sm:$0xf]
      %v3959 = vld [vmem:[%s4 + $0x41c] sm:$0xf]
      %v3960 = vld [vmem:[%s4 + $0x420] sm:$0xf]
      %v3961 = vld [vmem:[%s4 + $0x424] sm:$0xf]
      %v3962 = vld [vmem:[%s4 + $0x428] sm:$0xf]
      %v3963 = vld [vmem:[%s4 + $0x42c] sm:$0xf]
      %v3964 = vld [vmem:[%s4 + $0x430] sm:$0xf]
      %v3965 = vld [vmem:[%s4 + $0x434] sm:$0xf]
      %v3966 = vld [vmem:[%s4 + $0x438] sm:$0xf]
      %v3967 = vld [vmem:[%s4 + $0x43c] sm:$0xf]
      %v3968 = vld [vmem:[%s4 + $0x440] sm:$0xf]
      %v3969 = vld [vmem:[%s4 + $0x444] sm:$0xf]
      %v3970 = vld [vmem:[%s4 + $0x448] sm:$0xf]
      %v3971 = vld [vmem:[%s4 + $0x44c] sm:$0xf]
      %v3972 = vld [vmem:[%s4 + $0x450] sm:$0xf]
      %v3973 = vld [vmem:[%s4 + $0x454] sm:$0xf]
      %v3974 = vld [vmem:[%s4 + $0x458] sm:$0xf]
      %v3975 = vld [vmem:[%s4 + $0x45c] sm:$0xf]
      %v3976 = vld [vmem:[%s4 + $0x460] sm:$0xf]
      %v3977 = vld [vmem:[%s4 + $0x464] sm:$0xf]
      %v3978 = vld [vmem:[%s4 + $0x468] sm:$0xf]
      %v3979 = vld [vmem:[%s4 + $0x46c] sm:$0xf]
      %v3980 = vld [vmem:[%s4 + $0x470] sm:$0xf]
      %v3981 = vld [vmem:[%s4 + $0x474] sm:$0xf]
      %v3982 = vld [vmem:[%s4 + $0x478] sm:$0xf]
      %v3983 = vld [vmem:[%s4 + $0x47c] sm:$0xf]
      %v3984 = vld [vmem:[%s4 + $0x480] sm:$0xf]
      %v3985 = vld [vmem:[%s4 + $0x484] sm:$0xf]
      %v3986 = vld [vmem:[%s4 + $0x488] sm:$0xf]
      %v3987 = vld [vmem:[%s4 + $0x48c] sm:$0xf]
      %v3988 = vld [vmem:[%s4 + $0x490] sm:$0xf]
      %v3989 = vld [vmem:[%s4 + $0x494] sm:$0xf]
      %v3990 = vld [vmem:[%s4 + $0x498] sm:$0xf]
      %v3991 = vld [vmem:[%s4 + $0x49c] sm:$0xf]
      %v3992 = vld [vmem:[%s4 + $0x4a0] sm:$0xf]
      %v3993 = vld [vmem:[%s4 + $0x4a4] sm:$0xf]
      %v3994 = vld [vmem:[%s4 + $0x4a8] sm:$0xf]
      %v3995 = vld [vmem:[%s4 + $0x4ac] sm:$0xf]
      %v3996 = vld [vmem:[%s4 + $0x4b0] sm:$0xf]
      %v3997 = vld [vmem:[%s4 + $0x4b4] sm:$0xf]
      %v3998 = vld [vmem:[%s4 + $0x4b8] sm:$0xf]
      %v3999 = vld [vmem:[%s4 + $0x4bc] sm:$0xf]
      %v4000 = vld [vmem:[%s4 + $0x4c0] sm:$0xf]
      %v4001 = vld [vmem:[%s4 + $0x4c4] sm:$0xf]
      %v4002 = vld [vmem:[%s4 + $0x4c8] sm:$0xf]
      %v4003 = vld [vmem:[%s4 + $0x4cc] sm:$0xf]
      %v4004 = vld [vmem:[%s4 + $0x4d0] sm:$0xf]
      %v4005 = vld [vmem:[%s4 + $0x4d4] sm:$0xf]
      %v4006 = vld [vmem:[%s4 + $0x4d8] sm:$0xf]
      %v4007 = vld [vmem:[%s4 + $0x4dc] sm:$0xf]
      %v4008 = vld [vmem:[%s4 + $0x4e0] sm:$0xf]
      %v4009 = vld [vmem:[%s4 + $0x4e4] sm:$0xf]
      %v4010 = vld [vmem:[%s4 + $0x4e8] sm:$0xf]
      %v4011 = vld [vmem:[%s4 + $0x4ec] sm:$0xf]
      %v4012 = vld [vmem:[%s4 + $0x4f0] sm:$0xf]
      %v4013 = vld [vmem:[%s4 + $0x4f4] sm:$0xf]
      %v4014 = vld [vmem:[%s4 + $0x4f8] sm:$0xf]
      %v4015 = vld [vmem:[%s4 + $0x4fc] sm:$0xf]
      %v4016 = vld [vmem:[%s4 + $0x500] sm:$0xf]
      %v4017 = vld [vmem:[%s4 + $0x504] sm:$0xf]
      %v4018 = vld [vmem:[%s4 + $0x508] sm:$0xf]
      %v4019 = vld [vmem:[%s4 + $0x50c] sm:$0xf]
      %v4020 = vld [vmem:[%s4 + $0x510] sm:$0xf]
      %v4021 = vld [vmem:[%s4 + $0x514] sm:$0xf]
      %v4022 = vld [vmem:[%s4 + $0x518] sm:$0xf]
      %v4023 = vld [vmem:[%s4 + $0x51c] sm:$0xf]
      %v4024 = vld [vmem:[%s4 + $0x520] sm:$0xf]
      %v4025 = vld [vmem:[%s4 + $0x524] sm:$0xf]
      %v4026 = vld [vmem:[%s4 + $0x528] sm:$0xf]
      %v4027 = vld [vmem:[%s4 + $0x52c] sm:$0xf]
      %v4028 = vld [vmem:[%s4 + $0x530] sm:$0xf]
      %v4029 = vld [vmem:[%s4 + $0x534] sm:$0xf]
      %v4030 = vld [vmem:[%s4 + $0x538] sm:$0xf]
      %v4031 = vld [vmem:[%s4 + $0x53c] sm:$0xf]
      %v4032 = vld [vmem:[%s4 + $0x540] sm:$0xf]
      %v4033 = vld [vmem:[%s4 + $0x544] sm:$0xf]
      %v4034 = vld [vmem:[%s4 + $0x548] sm:$0xf]
      %v4035 = vld [vmem:[%s4 + $0x54c] sm:$0xf]
      %v4036 = vld [vmem:[%s4 + $0x550] sm:$0xf]
      %v4037 = vld [vmem:[%s4 + $0x554] sm:$0xf]
      %v4038 = vld [vmem:[%s4 + $0x558] sm:$0xf]
      %v4039 = vld [vmem:[%s4 + $0x55c] sm:$0xf]
      %v4040 = vld [vmem:[%s4 + $0x560] sm:$0xf]
      %v4041 = vld [vmem:[%s4 + $0x564] sm:$0xf]
      %v4042 = vld [vmem:[%s4 + $0x568] sm:$0xf]
      %v4043 = vld [vmem:[%s4 + $0x56c] sm:$0xf]
      %v4044 = vld [vmem:[%s4 + $0x570] sm:$0xf]
      %v4045 = vld [vmem:[%s4 + $0x574] sm:$0xf]
      %v4046 = vld [vmem:[%s4 + $0x578] sm:$0xf]
      %v4047 = vld [vmem:[%s4 + $0x57c] sm:$0xf]
      %v4048 = vld [vmem:[%s4 + $0x580] sm:$0xf]
      %v4049 = vld [vmem:[%s4 + $0x584] sm:$0xf]
      %v4050 = vld [vmem:[%s4 + $0x588] sm:$0xf]
      %v4051 = vld [vmem:[%s4 + $0x58c] sm:$0xf]
      %v4052 = vld [vmem:[%s4 + $0x590] sm:$0xf]
      %v4053 = vld [vmem:[%s4 + $0x594] sm:$0xf]
      %v4054 = vld [vmem:[%s4 + $0x598] sm:$0xf]
      %v4055 = vld [vmem:[%s4 + $0x59c] sm:$0xf]
      %v4056 = vld [vmem:[%s4 + $0x5a0] sm:$0xf]
      %v4057 = vld [vmem:[%s4 + $0x5a4] sm:$0xf]
      %v4058 = vld [vmem:[%s4 + $0x5a8] sm:$0xf]
      %v4059 = vld [vmem:[%s4 + $0x5ac] sm:$0xf]
      %v4060 = vld [vmem:[%s4 + $0x5b0] sm:$0xf]
      %v4061 = vld [vmem:[%s4 + $0x5b4] sm:$0xf]
      %v4062 = vld [vmem:[%s4 + $0x5b8] sm:$0xf]
      %v4063 = vld [vmem:[%s4 + $0x5bc] sm:$0xf]
      %v4064 = vld [vmem:[%s4 + $0x5c0] sm:$0xf]
      %v4065 = vld [vmem:[%s4 + $0x5c4] sm:$0xf]
      %v4066 = vld [vmem:[%s4 + $0x5c8] sm:$0xf]
      %v4067 = vld [vmem:[%s4 + $0x5cc] sm:$0xf]
      %v4068 = vld [vmem:[%s4 + $0x5d0] sm:$0xf]
      %v4069 = vld [vmem:[%s4 + $0x5d4] sm:$0xf]
      %v4070 = vld [vmem:[%s4 + $0x5d8] sm:$0xf]
      %v4071 = vld [vmem:[%s4 + $0x5dc] sm:$0xf]
      %v4072 = vld [vmem:[%s4 + $0x5e0] sm:$0xf]
      %v4073 = vld [vmem:[%s4 + $0x5e4] sm:$0xf]
      %v4074 = vld [vmem:[%s4 + $0x5e8] sm:$0xf]
      %v4075 = vld [vmem:[%s4 + $0x5ec] sm:$0xf]
      %v4076 = vld [vmem:[%s4 + $0x5f0] sm:$0xf]
      %v4077 = vld [vmem:[%s4 + $0x5f4] sm:$0xf]
      %v4078 = vld [vmem:[%s4 + $0x5f8] sm:$0xf]
      %v4079 = vld [vmem:[%s4 + $0x5fc] sm:$0xf]
      %v4080 = vld [vmem:[%s5] sm:$0x1]
      %v4082 = vperm.slane %v4080, 0
      %v4468 = vunpack.c.l.b16 %v3696
      %v4469 = vunpack.c.l.b16 %v3697
      %v4470 = vunpack.c.l.b16 %v3698
      %v4471 = vunpack.c.l.b16 %v3699
      %v4472 = vunpack.c.l.b16 %v3700
      %v4473 = vunpack.c.l.b16 %v3701
      %v4474 = vunpack.c.l.b16 %v3702
      %v4475 = vunpack.c.l.b16 %v3703
      %v4476 = vunpack.c.l.b16 %v3704
      %v4477 = vunpack.c.l.b16 %v3705
      %v4478 = vunpack.c.l.b16 %v3706
      %v4479 = vunpack.c.l.b16 %v3707
      %v4480 = vunpack.c.l.b16 %v3708
      %v4481 = vunpack.c.l.b16 %v3709
      %v4482 = vunpack.c.l.b16 %v3710
      %v4483 = vunpack.c.l.b16 %v3711
      %v4484 = vunpack.c.l.b16 %v3712
      %v4485 = vunpack.c.l.b16 %v3713
      %v4486 = vunpack.c.l.b16 %v3714
      %v4487 = vunpack.c.l.b16 %v3715
      %v4488 = vunpack.c.l.b16 %v3716
      %v4489 = vunpack.c.l.b16 %v3717
      %v4490 = vunpack.c.l.b16 %v3718
      %v4491 = vunpack.c.l.b16 %v3719
      %v4492 = vunpack.c.l.b16 %v3720
      %v4493 = vunpack.c.l.b16 %v3721
      %v4494 = vunpack.c.l.b16 %v3722
      %v4495 = vunpack.c.l.b16 %v3723
      %v4496 = vunpack.c.l.b16 %v3724
      %v4497 = vunpack.c.l.b16 %v3725
      %v4498 = vunpack.c.l.b16 %v3726
      %v4499 = vunpack.c.l.b16 %v3727
      %v4500 = vunpack.c.l.b16 %v3728
      %v4501 = vunpack.c.l.b16 %v3729
      %v4502 = vunpack.c.l.b16 %v3730
      %v4503 = vunpack.c.l.b16 %v3731
      %v4504 = vunpack.c.l.b16 %v3732
      %v4505 = vunpack.c.l.b16 %v3733
      %v4506 = vunpack.c.l.b16 %v3734
      %v4507 = vunpack.c.l.b16 %v3735
      %v4508 = vunpack.c.l.b16 %v3736
      %v4509 = vunpack.c.l.b16 %v3737
      %v4510 = vunpack.c.l.b16 %v3738
      %v4511 = vunpack.c.l.b16 %v3739
      %v4512 = vunpack.c.l.b16 %v3740
      %v4513 = vunpack.c.l.b16 %v3741
      %v4514 = vunpack.c.l.b16 %v3742
      %v4515 = vunpack.c.l.b16 %v3743
      %v4516 = vunpack.c.l.b16 %v3744
      %v4517 = vunpack.c.l.b16 %v3745
      %v4518 = vunpack.c.l.b16 %v3746
      %v4519 = vunpack.c.l.b16 %v3747
      %v4520 = vunpack.c.l.b16 %v3748
      %v4521 = vunpack.c.l.b16 %v3749
      %v4522 = vunpack.c.l.b16 %v3750
      %v4523 = vunpack.c.l.b16 %v3751
      %v4524 = vunpack.c.l.b16 %v3752
      %v4525 = vunpack.c.l.b16 %v3753
      %v4526 = vunpack.c.l.b16 %v3754
      %v4527 = vunpack.c.l.b16 %v3755
      %v4528 = vunpack.c.l.b16 %v3756
      %v4529 = vunpack.c.l.b16 %v3757
      %v4530 = vunpack.c.l.b16 %v3758
      %v4531 = vunpack.c.l.b16 %v3759
      %v4532 = vunpack.c.l.b16 %v3760
      %v4533 = vunpack.c.l.b16 %v3761
      %v4534 = vunpack.c.l.b16 %v3762
      %v4535 = vunpack.c.l.b16 %v3763
      %v4536 = vunpack.c.l.b16 %v3764
      %v4537 = vunpack.c.l.b16 %v3765
      %v4538 = vunpack.c.l.b16 %v3766
      %v4539 = vunpack.c.l.b16 %v3767
      %v4540 = vunpack.c.l.b16 %v3768
      %v4541 = vunpack.c.l.b16 %v3769
      %v4542 = vunpack.c.l.b16 %v3770
      %v4543 = vunpack.c.l.b16 %v3771
      %v4544 = vunpack.c.l.b16 %v3772
      %v4545 = vunpack.c.l.b16 %v3773
      %v4546 = vunpack.c.l.b16 %v3774
      %v4547 = vunpack.c.l.b16 %v3775
      %v4548 = vunpack.c.l.b16 %v3776
      %v4549 = vunpack.c.l.b16 %v3777
      %v4550 = vunpack.c.l.b16 %v3778
      %v4551 = vunpack.c.l.b16 %v3779
      %v4552 = vunpack.c.l.b16 %v3780
      %v4553 = vunpack.c.l.b16 %v3781
      %v4554 = vunpack.c.l.b16 %v3782
      %v4555 = vunpack.c.l.b16 %v3783
      %v4556 = vunpack.c.l.b16 %v3784
      %v4557 = vunpack.c.l.b16 %v3785
      %v4558 = vunpack.c.l.b16 %v3786
      %v4559 = vunpack.c.l.b16 %v3787
      %v4560 = vunpack.c.l.b16 %v3788
      %v4561 = vunpack.c.l.b16 %v3789
      %v4562 = vunpack.c.l.b16 %v3790
      %v4563 = vunpack.c.l.b16 %v3791
      %v4564 = vunpack.c.l.b16 %v3792
      %v4565 = vunpack.c.l.b16 %v3793
      %v4566 = vunpack.c.l.b16 %v3794
      %v4567 = vunpack.c.l.b16 %v3795
      %v4568 = vunpack.c.l.b16 %v3796
      %v4569 = vunpack.c.l.b16 %v3797
      %v4570 = vunpack.c.l.b16 %v3798
      %v4571 = vunpack.c.l.b16 %v3799
      %v4572 = vunpack.c.l.b16 %v3800
      %v4573 = vunpack.c.l.b16 %v3801
      %v4574 = vunpack.c.l.b16 %v3802
      %v4575 = vunpack.c.l.b16 %v3803
      %v4576 = vunpack.c.l.b16 %v3804
      %v4577 = vunpack.c.l.b16 %v3805
      %v4578 = vunpack.c.l.b16 %v3806
      %v4579 = vunpack.c.l.b16 %v3807
      %v4580 = vunpack.c.l.b16 %v3808
      %v4581 = vunpack.c.l.b16 %v3809
      %v4582 = vunpack.c.l.b16 %v3810
      %v4583 = vunpack.c.l.b16 %v3811
      %v4584 = vunpack.c.l.b16 %v3812
      %v4585 = vunpack.c.l.b16 %v3813
      %v4586 = vunpack.c.l.b16 %v3814
      %v4587 = vunpack.c.l.b16 %v3815
      %v4588 = vunpack.c.l.b16 %v3816
      %v4589 = vunpack.c.l.b16 %v3817
      %v4590 = vunpack.c.l.b16 %v3818
      %v4591 = vunpack.c.l.b16 %v3819
      %v4592 = vunpack.c.l.b16 %v3820
      %v4593 = vunpack.c.l.b16 %v3821
      %v4594 = vunpack.c.l.b16 %v3822
      %v4595 = vunpack.c.l.b16 %v3823
      %v4596 = vunpack.c.l.b16 %v3824
      %v4597 = vunpack.c.l.b16 %v3825
      %v4598 = vunpack.c.l.b16 %v3826
      %v4599 = vunpack.c.l.b16 %v3827
      %v4600 = vunpack.c.l.b16 %v3828
      %v4601 = vunpack.c.l.b16 %v3829
      %v4602 = vunpack.c.l.b16 %v3830
      %v4603 = vunpack.c.l.b16 %v3831
      %v4604 = vunpack.c.l.b16 %v3832
      %v4605 = vunpack.c.l.b16 %v3833
      %v4606 = vunpack.c.l.b16 %v3834
      %v4607 = vunpack.c.l.b16 %v3835
      %v4608 = vunpack.c.l.b16 %v3836
      %v4609 = vunpack.c.l.b16 %v3837
      %v4610 = vunpack.c.l.b16 %v3838
      %v4611 = vunpack.c.l.b16 %v3839
      %v4612 = vunpack.c.l.b16 %v3840
      %v4613 = vunpack.c.l.b16 %v3841
      %v4614 = vunpack.c.l.b16 %v3842
      %v4615 = vunpack.c.l.b16 %v3843
      %v4616 = vunpack.c.l.b16 %v3844
      %v4617 = vunpack.c.l.b16 %v3845
      %v4618 = vunpack.c.l.b16 %v3846
      %v4619 = vunpack.c.l.b16 %v3847
      %v4620 = vunpack.c.l.b16 %v3848
      %v4621 = vunpack.c.l.b16 %v3849
      %v4622 = vunpack.c.l.b16 %v3850
      %v4623 = vunpack.c.l.b16 %v3851
      %v4624 = vunpack.c.l.b16 %v3852
      %v4625 = vunpack.c.l.b16 %v3853
      %v4626 = vunpack.c.l.b16 %v3854
      %v4627 = vunpack.c.l.b16 %v3855
      %v4628 = vunpack.c.l.b16 %v3856
      %v4629 = vunpack.c.l.b16 %v3857
      %v4630 = vunpack.c.l.b16 %v3858
      %v4631 = vunpack.c.l.b16 %v3859
      %v4632 = vunpack.c.l.b16 %v3860
      %v4633 = vunpack.c.l.b16 %v3861
      %v4634 = vunpack.c.l.b16 %v3862
      %v4635 = vunpack.c.l.b16 %v3863
      %v4636 = vunpack.c.l.b16 %v3864
      %v4637 = vunpack.c.l.b16 %v3865
      %v4638 = vunpack.c.l.b16 %v3866
      %v4639 = vunpack.c.l.b16 %v3867
      %v4640 = vunpack.c.l.b16 %v3868
      %v4641 = vunpack.c.l.b16 %v3869
      %v4642 = vunpack.c.l.b16 %v3870
      %v4643 = vunpack.c.l.b16 %v3871
      %v4644 = vunpack.c.l.b16 %v3872
      %v4645 = vunpack.c.l.b16 %v3873
      %v4646 = vunpack.c.l.b16 %v3874
      %v4647 = vunpack.c.l.b16 %v3875
      %v4648 = vunpack.c.l.b16 %v3876
      %v4649 = vunpack.c.l.b16 %v3877
      %v4650 = vunpack.c.l.b16 %v3878
      %v4651 = vunpack.c.l.b16 %v3879
      %v4652 = vunpack.c.l.b16 %v3880
      %v4653 = vunpack.c.l.b16 %v3881
      %v4654 = vunpack.c.l.b16 %v3882
      %v4655 = vunpack.c.l.b16 %v3883
      %v4656 = vunpack.c.l.b16 %v3884
      %v4657 = vunpack.c.l.b16 %v3885
      %v4658 = vunpack.c.l.b16 %v3886
      %v4659 = vunpack.c.l.b16 %v3887
      %v4660 = vunpack.c.l.b16 %v3888
      %v4661 = vunpack.c.l.b16 %v3889
      %v4662 = vunpack.c.l.b16 %v3890
      %v4663 = vunpack.c.l.b16 %v3891
      %v4664 = vunpack.c.l.b16 %v3892
      %v4665 = vunpack.c.l.b16 %v3893
      %v4666 = vunpack.c.l.b16 %v3894
      %v4667 = vunpack.c.l.b16 %v3895
      %v4668 = vunpack.c.l.b16 %v3896
      %v4669 = vunpack.c.l.b16 %v3897
      %v4670 = vunpack.c.l.b16 %v3898
      %v4671 = vunpack.c.l.b16 %v3899
      %v4672 = vunpack.c.l.b16 %v3900
      %v4673 = vunpack.c.l.b16 %v3901
      %v4674 = vunpack.c.l.b16 %v3902
      %v4675 = vunpack.c.l.b16 %v3903
      %v4676 = vunpack.c.l.b16 %v3904
      %v4677 = vunpack.c.l.b16 %v3905
      %v4678 = vunpack.c.l.b16 %v3906
      %v4679 = vunpack.c.l.b16 %v3907
      %v4680 = vunpack.c.l.b16 %v3908
      %v4681 = vunpack.c.l.b16 %v3909
      %v4682 = vunpack.c.l.b16 %v3910
      %v4683 = vunpack.c.l.b16 %v3911
      %v4684 = vunpack.c.l.b16 %v3912
      %v4685 = vunpack.c.l.b16 %v3913
      %v4686 = vunpack.c.l.b16 %v3914
      %v4687 = vunpack.c.l.b16 %v3915
      %v4688 = vunpack.c.l.b16 %v3916
      %v4689 = vunpack.c.l.b16 %v3917
      %v4690 = vunpack.c.l.b16 %v3918
      %v4691 = vunpack.c.l.b16 %v3919
      %v4692 = vunpack.c.l.b16 %v3920
      %v4693 = vunpack.c.l.b16 %v3921
      %v4694 = vunpack.c.l.b16 %v3922
      %v4695 = vunpack.c.l.b16 %v3923
      %v4696 = vunpack.c.l.b16 %v3924
      %v4697 = vunpack.c.l.b16 %v3925
      %v4698 = vunpack.c.l.b16 %v3926
      %v4699 = vunpack.c.l.b16 %v3927
      %v4700 = vunpack.c.l.b16 %v3928
      %v4701 = vunpack.c.l.b16 %v3929
      %v4702 = vunpack.c.l.b16 %v3930
      %v4703 = vunpack.c.l.b16 %v3931
      %v4704 = vunpack.c.l.b16 %v3932
      %v4705 = vunpack.c.l.b16 %v3933
      %v4706 = vunpack.c.l.b16 %v3934
      %v4707 = vunpack.c.l.b16 %v3935
      %v4708 = vunpack.c.l.b16 %v3936
      %v4709 = vunpack.c.l.b16 %v3937
      %v4710 = vunpack.c.l.b16 %v3938
      %v4711 = vunpack.c.l.b16 %v3939
      %v4712 = vunpack.c.l.b16 %v3940
      %v4713 = vunpack.c.l.b16 %v3941
      %v4714 = vunpack.c.l.b16 %v3942
      %v4715 = vunpack.c.l.b16 %v3943
      %v4716 = vunpack.c.l.b16 %v3944
      %v4717 = vunpack.c.l.b16 %v3945
      %v4718 = vunpack.c.l.b16 %v3946
      %v4719 = vunpack.c.l.b16 %v3947
      %v4720 = vunpack.c.l.b16 %v3948
      %v4721 = vunpack.c.l.b16 %v3949
      %v4722 = vunpack.c.l.b16 %v3950
      %v4723 = vunpack.c.l.b16 %v3951
      %v4724 = vunpack.c.l.b16 %v3952
      %v4725 = vunpack.c.l.b16 %v3953
      %v4726 = vunpack.c.l.b16 %v3954
      %v4727 = vunpack.c.l.b16 %v3955
      %v4728 = vunpack.c.l.b16 %v3956
      %v4729 = vunpack.c.l.b16 %v3957
      %v4730 = vunpack.c.l.b16 %v3958
      %v4731 = vunpack.c.l.b16 %v3959
      %v4732 = vunpack.c.l.b16 %v3960
      %v4733 = vunpack.c.l.b16 %v3961
      %v4734 = vunpack.c.l.b16 %v3962
      %v4735 = vunpack.c.l.b16 %v3963
      %v4736 = vunpack.c.l.b16 %v3964
      %v4737 = vunpack.c.l.b16 %v3965
      %v4738 = vunpack.c.l.b16 %v3966
      %v4739 = vunpack.c.l.b16 %v3967
      %v4740 = vunpack.c.l.b16 %v3968
      %v4741 = vunpack.c.l.b16 %v3969
      %v4742 = vunpack.c.l.b16 %v3970
      %v4743 = vunpack.c.l.b16 %v3971
      %v4744 = vunpack.c.l.b16 %v3972
      %v4745 = vunpack.c.l.b16 %v3973
      %v4746 = vunpack.c.l.b16 %v3974
      %v4747 = vunpack.c.l.b16 %v3975
      %v4748 = vunpack.c.l.b16 %v3976
      %v4749 = vunpack.c.l.b16 %v3977
      %v4750 = vunpack.c.l.b16 %v3978
      %v4751 = vunpack.c.l.b16 %v3979
      %v4752 = vunpack.c.l.b16 %v3980
      %v4753 = vunpack.c.l.b16 %v3981
      %v4754 = vunpack.c.l.b16 %v3982
      %v4755 = vunpack.c.l.b16 %v3983
      %v4756 = vunpack.c.l.b16 %v3984
      %v4757 = vunpack.c.l.b16 %v3985
      %v4758 = vunpack.c.l.b16 %v3986
      %v4759 = vunpack.c.l.b16 %v3987
      %v4760 = vunpack.c.l.b16 %v3988
      %v4761 = vunpack.c.l.b16 %v3989
      %v4762 = vunpack.c.l.b16 %v3990
      %v4763 = vunpack.c.l.b16 %v3991
      %v4764 = vunpack.c.l.b16 %v3992
      %v4765 = vunpack.c.l.b16 %v3993
      %v4766 = vunpack.c.l.b16 %v3994
      %v4767 = vunpack.c.l.b16 %v3995
      %v4768 = vunpack.c.l.b16 %v3996
      %v4769 = vunpack.c.l.b16 %v3997
      %v4770 = vunpack.c.l.b16 %v3998
      %v4771 = vunpack.c.l.b16 %v3999
      %v4772 = vunpack.c.l.b16 %v4000
      %v4773 = vunpack.c.l.b16 %v4001
      %v4774 = vunpack.c.l.b16 %v4002
      %v4775 = vunpack.c.l.b16 %v4003
      %v4776 = vunpack.c.l.b16 %v4004
      %v4777 = vunpack.c.l.b16 %v4005
      %v4778 = vunpack.c.l.b16 %v4006
      %v4779 = vunpack.c.l.b16 %v4007
      %v4780 = vunpack.c.l.b16 %v4008
      %v4781 = vunpack.c.l.b16 %v4009
      %v4782 = vunpack.c.l.b16 %v4010
      %v4783 = vunpack.c.l.b16 %v4011
      %v4784 = vunpack.c.l.b16 %v4012
      %v4785 = vunpack.c.l.b16 %v4013
      %v4786 = vunpack.c.l.b16 %v4014
      %v4787 = vunpack.c.l.b16 %v4015
      %v4788 = vunpack.c.l.b16 %v4016
      %v4789 = vunpack.c.l.b16 %v4017
      %v4790 = vunpack.c.l.b16 %v4018
      %v4791 = vunpack.c.l.b16 %v4019
      %v4792 = vunpack.c.l.b16 %v4020
      %v4793 = vunpack.c.l.b16 %v4021
      %v4794 = vunpack.c.l.b16 %v4022
      %v4795 = vunpack.c.l.b16 %v4023
      %v4796 = vunpack.c.l.b16 %v4024
      %v4797 = vunpack.c.l.b16 %v4025
      %v4798 = vunpack.c.l.b16 %v4026
      %v4799 = vunpack.c.l.b16 %v4027
      %v4800 = vunpack.c.l.b16 %v4028
      %v4801 = vunpack.c.l.b16 %v4029
      %v4802 = vunpack.c.l.b16 %v4030
      %v4803 = vunpack.c.l.b16 %v4031
      %v4804 = vunpack.c.l.b16 %v4032
      %v4805 = vunpack.c.l.b16 %v4033
      %v4806 = vunpack.c.l.b16 %v4034
      %v4807 = vunpack.c.l.b16 %v4035
      %v4808 = vunpack.c.l.b16 %v4036
      %v4809 = vunpack.c.l.b16 %v4037
      %v4810 = vunpack.c.l.b16 %v4038
      %v4811 = vunpack.c.l.b16 %v4039
      %v4812 = vunpack.c.l.b16 %v4040
      %v4813 = vunpack.c.l.b16 %v4041
      %v4814 = vunpack.c.l.b16 %v4042
      %v4815 = vunpack.c.l.b16 %v4043
      %v4816 = vunpack.c.l.b16 %v4044
      %v4817 = vunpack.c.l.b16 %v4045
      %v4818 = vunpack.c.l.b16 %v4046
      %v4819 = vunpack.c.l.b16 %v4047
      %v4820 = vunpack.c.l.b16 %v4048
      %v4821 = vunpack.c.l.b16 %v4049
      %v4822 = vunpack.c.l.b16 %v4050
      %v4823 = vunpack.c.l.b16 %v4051
      %v4824 = vunpack.c.l.b16 %v4052
      %v4825 = vunpack.c.l.b16 %v4053
      %v4826 = vunpack.c.l.b16 %v4054
      %v4827 = vunpack.c.l.b16 %v4055
      %v4828 = vunpack.c.l.b16 %v4056
      %v4829 = vunpack.c.l.b16 %v4057
      %v4830 = vunpack.c.l.b16 %v4058
      %v4831 = vunpack.c.l.b16 %v4059
      %v4832 = vunpack.c.l.b16 %v4060
      %v4833 = vunpack.c.l.b16 %v4061
      %v4834 = vunpack.c.l.b16 %v4062
      %v4835 = vunpack.c.l.b16 %v4063
      %v4836 = vunpack.c.l.b16 %v4064
      %v4837 = vunpack.c.l.b16 %v4065
      %v4838 = vunpack.c.l.b16 %v4066
      %v4839 = vunpack.c.l.b16 %v4067
      %v4840 = vunpack.c.l.b16 %v4068
      %v4841 = vunpack.c.l.b16 %v4069
      %v4842 = vunpack.c.l.b16 %v4070
      %v4843 = vunpack.c.l.b16 %v4071
      %v4844 = vunpack.c.l.b16 %v4072
      %v4845 = vunpack.c.l.b16 %v4073
      %v4846 = vunpack.c.l.b16 %v4074
      %v4847 = vunpack.c.l.b16 %v4075
      %v4848 = vunpack.c.l.b16 %v4076
      %v4849 = vunpack.c.l.b16 %v4077
      %v4850 = vunpack.c.l.b16 %v4078
      %v4851 = vunpack.c.l.b16 %v4079
      %v4852 = vpack.c.b16 %v4469, %v4468
      %v4853 = vpack.c.b16 %v4471, %v4470
      %v4854 = vpack.c.b16 %v4473, %v4472
      %v4855 = vpack.c.b16 %v4475, %v4474
      %v4856 = vpack.c.b16 %v4477, %v4476
      %v4857 = vpack.c.b16 %v4479, %v4478
      %v4858 = vpack.c.b16 %v4481, %v4480
      %v4859 = vpack.c.b16 %v4483, %v4482
      %v4860 = vpack.c.b16 %v4485, %v4484
      %v4861 = vpack.c.b16 %v4487, %v4486
      %v4862 = vpack.c.b16 %v4489, %v4488
      %v4863 = vpack.c.b16 %v4491, %v4490
      %v4864 = vpack.c.b16 %v4493, %v4492
      %v4865 = vpack.c.b16 %v4495, %v4494
      %v4866 = vpack.c.b16 %v4497, %v4496
      %v4867 = vpack.c.b16 %v4499, %v4498
      %v4868 = vpack.c.b16 %v4501, %v4500
      %v4869 = vpack.c.b16 %v4503, %v4502
      %v4870 = vpack.c.b16 %v4505, %v4504
      %v4871 = vpack.c.b16 %v4507, %v4506
      %v4872 = vpack.c.b16 %v4509, %v4508
      %v4873 = vpack.c.b16 %v4511, %v4510
      %v4874 = vpack.c.b16 %v4513, %v4512
      %v4875 = vpack.c.b16 %v4515, %v4514
      %v4876 = vpack.c.b16 %v4517, %v4516
      %v4877 = vpack.c.b16 %v4519, %v4518
      %v4878 = vpack.c.b16 %v4521, %v4520
      %v4879 = vpack.c.b16 %v4523, %v4522
      %v4880 = vpack.c.b16 %v4525, %v4524
      %v4881 = vpack.c.b16 %v4527, %v4526
      %v4882 = vpack.c.b16 %v4529, %v4528
      %v4883 = vpack.c.b16 %v4531, %v4530
      %v4884 = vpack.c.b16 %v4533, %v4532
      %v4885 = vpack.c.b16 %v4535, %v4534
      %v4886 = vpack.c.b16 %v4537, %v4536
      %v4887 = vpack.c.b16 %v4539, %v4538
      %v4888 = vpack.c.b16 %v4541, %v4540
      %v4889 = vpack.c.b16 %v4543, %v4542
      %v4890 = vpack.c.b16 %v4545, %v4544
      %v4891 = vpack.c.b16 %v4547, %v4546
      %v4892 = vpack.c.b16 %v4549, %v4548
      %v4893 = vpack.c.b16 %v4551, %v4550
      %v4894 = vpack.c.b16 %v4553, %v4552
      %v4895 = vpack.c.b16 %v4555, %v4554
      %v4896 = vpack.c.b16 %v4557, %v4556
      %v4897 = vpack.c.b16 %v4559, %v4558
      %v4898 = vpack.c.b16 %v4561, %v4560
      %v4899 = vpack.c.b16 %v4563, %v4562
      %v4900 = vpack.c.b16 %v4565, %v4564
      %v4901 = vpack.c.b16 %v4567, %v4566
      %v4902 = vpack.c.b16 %v4569, %v4568
      %v4903 = vpack.c.b16 %v4571, %v4570
      %v4904 = vpack.c.b16 %v4573, %v4572
      %v4905 = vpack.c.b16 %v4575, %v4574
      %v4906 = vpack.c.b16 %v4577, %v4576
      %v4907 = vpack.c.b16 %v4579, %v4578
      %v4908 = vpack.c.b16 %v4581, %v4580
      %v4909 = vpack.c.b16 %v4583, %v4582
      %v4910 = vpack.c.b16 %v4585, %v4584
      %v4911 = vpack.c.b16 %v4587, %v4586
      %v4912 = vpack.c.b16 %v4589, %v4588
      %v4913 = vpack.c.b16 %v4591, %v4590
      %v4914 = vpack.c.b16 %v4593, %v4592
      %v4915 = vpack.c.b16 %v4595, %v4594
      %v4916 = vpack.c.b16 %v4597, %v4596
      %v4917 = vpack.c.b16 %v4599, %v4598
      %v4918 = vpack.c.b16 %v4601, %v4600
      %v4919 = vpack.c.b16 %v4603, %v4602
      %v4920 = vpack.c.b16 %v4605, %v4604
      %v4921 = vpack.c.b16 %v4607, %v4606
      %v4922 = vpack.c.b16 %v4609, %v4608
      %v4923 = vpack.c.b16 %v4611, %v4610
      %v4924 = vpack.c.b16 %v4613, %v4612
      %v4925 = vpack.c.b16 %v4615, %v4614
      %v4926 = vpack.c.b16 %v4617, %v4616
      %v4927 = vpack.c.b16 %v4619, %v4618
      %v4928 = vpack.c.b16 %v4621, %v4620
      %v4929 = vpack.c.b16 %v4623, %v4622
      %v4930 = vpack.c.b16 %v4625, %v4624
      %v4931 = vpack.c.b16 %v4627, %v4626
      %v4932 = vpack.c.b16 %v4629, %v4628
      %v4933 = vpack.c.b16 %v4631, %v4630
      %v4934 = vpack.c.b16 %v4633, %v4632
      %v4935 = vpack.c.b16 %v4635, %v4634
      %v4936 = vpack.c.b16 %v4637, %v4636
      %v4937 = vpack.c.b16 %v4639, %v4638
      %v4938 = vpack.c.b16 %v4641, %v4640
      %v4939 = vpack.c.b16 %v4643, %v4642
      %v4940 = vpack.c.b16 %v4645, %v4644
      %v4941 = vpack.c.b16 %v4647, %v4646
      %v4942 = vpack.c.b16 %v4649, %v4648
      %v4943 = vpack.c.b16 %v4651, %v4650
      %v4944 = vpack.c.b16 %v4653, %v4652
      %v4945 = vpack.c.b16 %v4655, %v4654
      %v4946 = vpack.c.b16 %v4657, %v4656
      %v4947 = vpack.c.b16 %v4659, %v4658
      %v4948 = vpack.c.b16 %v4661, %v4660
      %v4949 = vpack.c.b16 %v4663, %v4662
      %v4950 = vpack.c.b16 %v4665, %v4664
      %v4951 = vpack.c.b16 %v4667, %v4666
      %v4952 = vpack.c.b16 %v4669, %v4668
      %v4953 = vpack.c.b16 %v4671, %v4670
      %v4954 = vpack.c.b16 %v4673, %v4672
      %v4955 = vpack.c.b16 %v4675, %v4674
      %v4956 = vpack.c.b16 %v4677, %v4676
      %v4957 = vpack.c.b16 %v4679, %v4678
      %v4958 = vpack.c.b16 %v4681, %v4680
      %v4959 = vpack.c.b16 %v4683, %v4682
      %v4960 = vpack.c.b16 %v4685, %v4684
      %v4961 = vpack.c.b16 %v4687, %v4686
      %v4962 = vpack.c.b16 %v4689, %v4688
      %v4963 = vpack.c.b16 %v4691, %v4690
      %v4964 = vpack.c.b16 %v4693, %v4692
      %v4965 = vpack.c.b16 %v4695, %v4694
      %v4966 = vpack.c.b16 %v4697, %v4696
      %v4967 = vpack.c.b16 %v4699, %v4698
      %v4968 = vpack.c.b16 %v4701, %v4700
      %v4969 = vpack.c.b16 %v4703, %v4702
      %v4970 = vpack.c.b16 %v4705, %v4704
      %v4971 = vpack.c.b16 %v4707, %v4706
      %v4972 = vpack.c.b16 %v4709, %v4708
      %v4973 = vpack.c.b16 %v4711, %v4710
      %v4974 = vpack.c.b16 %v4713, %v4712
      %v4975 = vpack.c.b16 %v4715, %v4714
      %v4976 = vpack.c.b16 %v4717, %v4716
      %v4977 = vpack.c.b16 %v4719, %v4718
      %v4978 = vpack.c.b16 %v4721, %v4720
      %v4979 = vpack.c.b16 %v4723, %v4722
      %v4980 = vpack.c.b16 %v4725, %v4724
      %v4981 = vpack.c.b16 %v4727, %v4726
      %v4982 = vpack.c.b16 %v4729, %v4728
      %v4983 = vpack.c.b16 %v4731, %v4730
      %v4984 = vpack.c.b16 %v4733, %v4732
      %v4985 = vpack.c.b16 %v4735, %v4734
      %v4986 = vpack.c.b16 %v4737, %v4736
      %v4987 = vpack.c.b16 %v4739, %v4738
      %v4988 = vpack.c.b16 %v4741, %v4740
      %v4989 = vpack.c.b16 %v4743, %v4742
      %v4990 = vpack.c.b16 %v4745, %v4744
      %v4991 = vpack.c.b16 %v4747, %v4746
      %v4992 = vpack.c.b16 %v4749, %v4748
      %v4993 = vpack.c.b16 %v4751, %v4750
      %v4994 = vpack.c.b16 %v4753, %v4752
      %v4995 = vpack.c.b16 %v4755, %v4754
      %v4996 = vpack.c.b16 %v4757, %v4756
      %v4997 = vpack.c.b16 %v4759, %v4758
      %v4998 = vpack.c.b16 %v4761, %v4760
      %v4999 = vpack.c.b16 %v4763, %v4762
      %v5000 = vpack.c.b16 %v4765, %v4764
      %v5001 = vpack.c.b16 %v4767, %v4766
      %v5002 = vpack.c.b16 %v4769, %v4768
      %v5003 = vpack.c.b16 %v4771, %v4770
      %v5004 = vpack.c.b16 %v4773, %v4772
      %v5005 = vpack.c.b16 %v4775, %v4774
      %v5006 = vpack.c.b16 %v4777, %v4776
      %v5007 = vpack.c.b16 %v4779, %v4778
      %v5008 = vpack.c.b16 %v4781, %v4780
      %v5009 = vpack.c.b16 %v4783, %v4782
      %v5010 = vpack.c.b16 %v4785, %v4784
      %v5011 = vpack.c.b16 %v4787, %v4786
      %v5012 = vpack.c.b16 %v4789, %v4788
      %v5013 = vpack.c.b16 %v4791, %v4790
      %v5014 = vpack.c.b16 %v4793, %v4792
      %v5015 = vpack.c.b16 %v4795, %v4794
      %v5016 = vpack.c.b16 %v4797, %v4796
      %v5017 = vpack.c.b16 %v4799, %v4798
      %v5018 = vpack.c.b16 %v4801, %v4800
      %v5019 = vpack.c.b16 %v4803, %v4802
      %v5020 = vpack.c.b16 %v4805, %v4804
      %v5021 = vpack.c.b16 %v4807, %v4806
      %v5022 = vpack.c.b16 %v4809, %v4808
      %v5023 = vpack.c.b16 %v4811, %v4810
      %v5024 = vpack.c.b16 %v4813, %v4812
      %v5025 = vpack.c.b16 %v4815, %v4814
      %v5026 = vpack.c.b16 %v4817, %v4816
      %v5027 = vpack.c.b16 %v4819, %v4818
      %v5028 = vpack.c.b16 %v4821, %v4820
      %v5029 = vpack.c.b16 %v4823, %v4822
      %v5030 = vpack.c.b16 %v4825, %v4824
      %v5031 = vpack.c.b16 %v4827, %v4826
      %v5032 = vpack.c.b16 %v4829, %v4828
      %v5033 = vpack.c.b16 %v4831, %v4830
      %v5034 = vpack.c.b16 %v4833, %v4832
      %v5035 = vpack.c.b16 %v4835, %v4834
      %v5036 = vpack.c.b16 %v4837, %v4836
      %v5037 = vpack.c.b16 %v4839, %v4838
      %v5038 = vpack.c.b16 %v4841, %v4840
      %v5039 = vpack.c.b16 %v4843, %v4842
      %v5040 = vpack.c.b16 %v4845, %v4844
      %v5041 = vpack.c.b16 %v4847, %v4846
      %v5042 = vpack.c.b16 %v4849, %v4848
      %v5043 = vpack.c.b16 %v4851, %v4850
      %5236 = vmatpush.bf16.msra.mxu0 %v4859
      %5237 = vmatpush.bf16.msra.mxu0 %v4858
      %5238 = vmatpush.bf16.msra.mxu0 %v4857
      %5239 = vmatpush.bf16.msra.mxu0 %v4856
      %5240 = vmatpush.bf16.msra.mxu0 %v4855
      %5241 = vmatpush.bf16.msra.mxu0 %v4854
      %5242 = vmatpush.bf16.msra.mxu0 %v4853
      %5243 = vmatpush.bf16.msra.mxu0 %v4852
      %5244 = vmatmul.bf16.gmra.mxu0 %v1452
      %v5245 = vpop.f32.mrf.mxu0
      %v5246 = vadd.f32 %v4082, %v5245
      %v5247 = vpop.f32.mrf.mxu0
      %v5248 = vadd.f32 %v4082, %v5247
      %5249 = vmatmul.bf16.gmra.mxu0 %v1476
      %v5250 = vpop.f32.mrf.mxu0
      %v5251 = vadd.f32 %v4082, %v5250
      %v5252 = vpop.f32.mrf.mxu0
      %v5253 = vadd.f32 %v4082, %v5252
      %5254 = vmatmul.bf16.gmra.mxu0 %v1500
      %v5255 = vpop.f32.mrf.mxu0
      %v5256 = vadd.f32 %v4082, %v5255
      %v5257 = vpop.f32.mrf.mxu0
      %v5258 = vadd.f32 %v4082, %v5257
      %5259 = vmatmul.bf16.gmra.mxu0 %v1524
      %v5260 = vpop.f32.mrf.mxu0
      %v5261 = vadd.f32 %v4082, %v5260
      %v5262 = vpop.f32.mrf.mxu0
      %v5263 = vadd.f32 %v4082, %v5262
      %5264 = vdwg.mxu0
      %5265 = vmatpush.bf16.msra.mxu0 %v4867
      %5266 = vmatpush.bf16.msra.mxu0 %v4866
      %5267 = vmatpush.bf16.msra.mxu0 %v4865
      %5268 = vmatpush.bf16.msra.mxu0 %v4864
      %5269 = vmatpush.bf16.msra.mxu0 %v4863
      %5270 = vmatpush.bf16.msra.mxu0 %v4862
      %5271 = vmatpush.bf16.msra.mxu0 %v4861
      %5272 = vmatpush.bf16.msra.mxu0 %v4860
      %5273 = vmatmul.bf16.gmra.mxu0 %v1453
      %v5274 = vpop.f32.mrf.mxu0
      %v5275 = vadd.f32 %v5246, %v5274
      %v5276 = vpop.f32.mrf.mxu0
      %v5277 = vadd.f32 %v5248, %v5276
      %5278 = vmatmul.bf16.gmra.mxu0 %v1477
      %v5279 = vpop.f32.mrf.mxu0
      %v5280 = vadd.f32 %v5251, %v5279
      %v5281 = vpop.f32.mrf.mxu0
      %v5282 = vadd.f32 %v5253, %v5281
      %5283 = vmatmul.bf16.gmra.mxu0 %v1501
      %v5284 = vpop.f32.mrf.mxu0
      %v5285 = vadd.f32 %v5256, %v5284
      %v5286 = vpop.f32.mrf.mxu0
      %v5287 = vadd.f32 %v5258, %v5286
      %5288 = vmatmul.bf16.gmra.mxu0 %v1525
      %v5289 = vpop.f32.mrf.mxu0
      %v5290 = vadd.f32 %v5261, %v5289
      %v5291 = vpop.f32.mrf.mxu0
      %v5292 = vadd.f32 %v5263, %v5291
      %5293 = vdwg.mxu0
      %5294 = vmatpush.bf16.msra.mxu0 %v4875
      %5295 = vmatpush.bf16.msra.mxu0 %v4874
      %5296 = vmatpush.bf16.msra.mxu0 %v4873
      %5297 = vmatpush.bf16.msra.mxu0 %v4872
      %5298 = vmatpush.bf16.msra.mxu0 %v4871
      %5299 = vmatpush.bf16.msra.mxu0 %v4870
      %5300 = vmatpush.bf16.msra.mxu0 %v4869
      %5301 = vmatpush.bf16.msra.mxu0 %v4868
      %5302 = vmatmul.bf16.gmra.mxu0 %v1454
      %v5303 = vpop.f32.mrf.mxu0
      %v5304 = vadd.f32 %v5275, %v5303
      %v5305 = vpop.f32.mrf.mxu0
      %v5306 = vadd.f32 %v5277, %v5305
      %5307 = vmatmul.bf16.gmra.mxu0 %v1478
      %v5308 = vpop.f32.mrf.mxu0
      %v5309 = vadd.f32 %v5280, %v5308
      %v5310 = vpop.f32.mrf.mxu0
      %v5311 = vadd.f32 %v5282, %v5310
      %5312 = vmatmul.bf16.gmra.mxu0 %v1502
      %v5313 = vpop.f32.mrf.mxu0
      %v5314 = vadd.f32 %v5285, %v5313
      %v5315 = vpop.f32.mrf.mxu0
      %v5316 = vadd.f32 %v5287, %v5315
      %5317 = vmatmul.bf16.gmra.mxu0 %v1526
      %v5318 = vpop.f32.mrf.mxu0
      %v5319 = vadd.f32 %v5290, %v5318
      %v5320 = vpop.f32.mrf.mxu0
      %v5321 = vadd.f32 %v5292, %v5320
      %5322 = vdwg.mxu0
      %5323 = vmatpush.bf16.msra.mxu0 %v4883
      %5324 = vmatpush.bf16.msra.mxu0 %v4882
      %5325 = vmatpush.bf16.msra.mxu0 %v4881
      %5326 = vmatpush.bf16.msra.mxu0 %v4880
      %5327 = vmatpush.bf16.msra.mxu0 %v4879
      %5328 = vmatpush.bf16.msra.mxu0 %v4878
      %5329 = vmatpush.bf16.msra.mxu0 %v4877
      %5330 = vmatpush.bf16.msra.mxu0 %v4876
      %5331 = vmatmul.bf16.gmra.mxu0 %v1455
      %v5332 = vpop.f32.mrf.mxu0
      %v5333 = vadd.f32 %v5304, %v5332
      %v5334 = vpop.f32.mrf.mxu0
      %v5335 = vadd.f32 %v5306, %v5334
      %5336 = vmatmul.bf16.gmra.mxu0 %v1479
      %v5337 = vpop.f32.mrf.mxu0
      %v5338 = vadd.f32 %v5309, %v5337
      %v5339 = vpop.f32.mrf.mxu0
      %v5340 = vadd.f32 %v5311, %v5339
      %5341 = vmatmul.bf16.gmra.mxu0 %v1503
      %v5342 = vpop.f32.mrf.mxu0
      %v5343 = vadd.f32 %v5314, %v5342
      %v5344 = vpop.f32.mrf.mxu0
      %v5345 = vadd.f32 %v5316, %v5344
      %5346 = vmatmul.bf16.gmra.mxu0 %v1527
      %v5347 = vpop.f32.mrf.mxu0
      %v5348 = vadd.f32 %v5319, %v5347
      %v5349 = vpop.f32.mrf.mxu0
      %v5350 = vadd.f32 %v5321, %v5349
      %5351 = vdwg.mxu0
      %5352 = vmatpush.bf16.msra.mxu0 %v4891
      %5353 = vmatpush.bf16.msra.mxu0 %v4890
      %5354 = vmatpush.bf16.msra.mxu0 %v4889
      %5355 = vmatpush.bf16.msra.mxu0 %v4888
      %5356 = vmatpush.bf16.msra.mxu0 %v4887
      %5357 = vmatpush.bf16.msra.mxu0 %v4886
      %5358 = vmatpush.bf16.msra.mxu0 %v4885
      %5359 = vmatpush.bf16.msra.mxu0 %v4884
      %5360 = vmatmul.bf16.gmra.mxu0 %v1456
      %v5361 = vpop.f32.mrf.mxu0
      %v5362 = vadd.f32 %v5333, %v5361
      %v5363 = vpop.f32.mrf.mxu0
      %v5364 = vadd.f32 %v5335, %v5363
      %5365 = vmatmul.bf16.gmra.mxu0 %v1480
      %v5366 = vpop.f32.mrf.mxu0
      %v5367 = vadd.f32 %v5338, %v5366
      %v5368 = vpop.f32.mrf.mxu0
      %v5369 = vadd.f32 %v5340, %v5368
      %5370 = vmatmul.bf16.gmra.mxu0 %v1504
      %v5371 = vpop.f32.mrf.mxu0
      %v5372 = vadd.f32 %v5343, %v5371
      %v5373 = vpop.f32.mrf.mxu0
      %v5374 = vadd.f32 %v5345, %v5373
      %5375 = vmatmul.bf16.gmra.mxu0 %v1528
      %v5376 = vpop.f32.mrf.mxu0
      %v5377 = vadd.f32 %v5348, %v5376
      %v5378 = vpop.f32.mrf.mxu0
      %v5379 = vadd.f32 %v5350, %v5378
      %5380 = vdwg.mxu0
      %5381 = vmatpush.bf16.msra.mxu0 %v4899
      %5382 = vmatpush.bf16.msra.mxu0 %v4898
      %5383 = vmatpush.bf16.msra.mxu0 %v4897
      %5384 = vmatpush.bf16.msra.mxu0 %v4896
      %5385 = vmatpush.bf16.msra.mxu0 %v4895
      %5386 = vmatpush.bf16.msra.mxu0 %v4894
      %5387 = vmatpush.bf16.msra.mxu0 %v4893
      %5388 = vmatpush.bf16.msra.mxu0 %v4892
      %5389 = vmatmul.bf16.gmra.mxu0 %v1457
      %v5390 = vpop.f32.mrf.mxu0
      %v5391 = vadd.f32 %v5362, %v5390
      %v5392 = vpop.f32.mrf.mxu0
      %v5393 = vadd.f32 %v5364, %v5392
      %5394 = vmatmul.bf16.gmra.mxu0 %v1481
      %v5395 = vpop.f32.mrf.mxu0
      %v5396 = vadd.f32 %v5367, %v5395
      %v5397 = vpop.f32.mrf.mxu0
      %v5398 = vadd.f32 %v5369, %v5397
      %5399 = vmatmul.bf16.gmra.mxu0 %v1505
      %v5400 = vpop.f32.mrf.mxu0
      %v5401 = vadd.f32 %v5372, %v5400
      %v5402 = vpop.f32.mrf.mxu0
      %v5403 = vadd.f32 %v5374, %v5402
      %5404 = vmatmul.bf16.gmra.mxu0 %v1529
      %v5405 = vpop.f32.mrf.mxu0
      %v5406 = vadd.f32 %v5377, %v5405
      %v5407 = vpop.f32.mrf.mxu0
      %v5408 = vadd.f32 %v5379, %v5407
      %5409 = vdwg.mxu0
      %5410 = vmatpush.bf16.msra.mxu0 %v4907
      %5411 = vmatpush.bf16.msra.mxu0 %v4906
      %5412 = vmatpush.bf16.msra.mxu0 %v4905
      %5413 = vmatpush.bf16.msra.mxu0 %v4904
      %5414 = vmatpush.bf16.msra.mxu0 %v4903
      %5415 = vmatpush.bf16.msra.mxu0 %v4902
      %5416 = vmatpush.bf16.msra.mxu0 %v4901
      %5417 = vmatpush.bf16.msra.mxu0 %v4900
      %5418 = vmatmul.bf16.gmra.mxu0 %v1458
      %v5419 = vpop.f32.mrf.mxu0
      %v5420 = vadd.f32 %v5391, %v5419
      %v5421 = vpop.f32.mrf.mxu0
      %v5422 = vadd.f32 %v5393, %v5421
      %5423 = vmatmul.bf16.gmra.mxu0 %v1482
      %v5424 = vpop.f32.mrf.mxu0
      %v5425 = vadd.f32 %v5396, %v5424
      %v5426 = vpop.f32.mrf.mxu0
      %v5427 = vadd.f32 %v5398, %v5426
      %5428 = vmatmul.bf16.gmra.mxu0 %v1506
      %v5429 = vpop.f32.mrf.mxu0
      %v5430 = vadd.f32 %v5401, %v5429
      %v5431 = vpop.f32.mrf.mxu0
      %v5432 = vadd.f32 %v5403, %v5431
      %5433 = vmatmul.bf16.gmra.mxu0 %v1530
      %v5434 = vpop.f32.mrf.mxu0
      %v5435 = vadd.f32 %v5406, %v5434
      %v5436 = vpop.f32.mrf.mxu0
      %v5437 = vadd.f32 %v5408, %v5436
      %5438 = vdwg.mxu0
      %5439 = vmatpush.bf16.msra.mxu0 %v4915
      %5440 = vmatpush.bf16.msra.mxu0 %v4914
      %5441 = vmatpush.bf16.msra.mxu0 %v4913
      %5442 = vmatpush.bf16.msra.mxu0 %v4912
      %5443 = vmatpush.bf16.msra.mxu0 %v4911
      %5444 = vmatpush.bf16.msra.mxu0 %v4910
      %5445 = vmatpush.bf16.msra.mxu0 %v4909
      %5446 = vmatpush.bf16.msra.mxu0 %v4908
      %5447 = vmatmul.bf16.gmra.mxu0 %v1459
      %v5448 = vpop.f32.mrf.mxu0
      %v5449 = vadd.f32 %v5420, %v5448
      %v5450 = vpop.f32.mrf.mxu0
      %v5451 = vadd.f32 %v5422, %v5450
      %5452 = vmatmul.bf16.gmra.mxu0 %v1483
      %v5453 = vpop.f32.mrf.mxu0
      %v5454 = vadd.f32 %v5425, %v5453
      %v5455 = vpop.f32.mrf.mxu0
      %v5456 = vadd.f32 %v5427, %v5455
      %5457 = vmatmul.bf16.gmra.mxu0 %v1507
      %v5458 = vpop.f32.mrf.mxu0
      %v5459 = vadd.f32 %v5430, %v5458
      %v5460 = vpop.f32.mrf.mxu0
      %v5461 = vadd.f32 %v5432, %v5460
      %5462 = vmatmul.bf16.gmra.mxu0 %v1531
      %v5463 = vpop.f32.mrf.mxu0
      %v5464 = vadd.f32 %v5435, %v5463
      %v5465 = vpop.f32.mrf.mxu0
      %v5466 = vadd.f32 %v5437, %v5465
      %5467 = vdwg.mxu0
      %5468 = vmatpush.bf16.msra.mxu0 %v4923
      %5469 = vmatpush.bf16.msra.mxu0 %v4922
      %5470 = vmatpush.bf16.msra.mxu0 %v4921
      %5471 = vmatpush.bf16.msra.mxu0 %v4920
      %5472 = vmatpush.bf16.msra.mxu0 %v4919
      %5473 = vmatpush.bf16.msra.mxu0 %v4918
      %5474 = vmatpush.bf16.msra.mxu0 %v4917
      %5475 = vmatpush.bf16.msra.mxu0 %v4916
      %5476 = vmatmul.bf16.gmra.mxu0 %v1460
      %v5477 = vpop.f32.mrf.mxu0
      %v5478 = vadd.f32 %v5449, %v5477
      %v5479 = vpop.f32.mrf.mxu0
      %v5480 = vadd.f32 %v5451, %v5479
      %5481 = vmatmul.bf16.gmra.mxu0 %v1484
      %v5482 = vpop.f32.mrf.mxu0
      %v5483 = vadd.f32 %v5454, %v5482
      %v5484 = vpop.f32.mrf.mxu0
      %v5485 = vadd.f32 %v5456, %v5484
      %5486 = vmatmul.bf16.gmra.mxu0 %v1508
      %v5487 = vpop.f32.mrf.mxu0
      %v5488 = vadd.f32 %v5459, %v5487
      %v5489 = vpop.f32.mrf.mxu0
      %v5490 = vadd.f32 %v5461, %v5489
      %5491 = vmatmul.bf16.gmra.mxu0 %v1532
      %v5492 = vpop.f32.mrf.mxu0
      %v5493 = vadd.f32 %v5464, %v5492
      %v5494 = vpop.f32.mrf.mxu0
      %v5495 = vadd.f32 %v5466, %v5494
      %5496 = vdwg.mxu0
      %5497 = vmatpush.bf16.msra.mxu0 %v4931
      %5498 = vmatpush.bf16.msra.mxu0 %v4930
      %5499 = vmatpush.bf16.msra.mxu0 %v4929
      %5500 = vmatpush.bf16.msra.mxu0 %v4928
      %5501 = vmatpush.bf16.msra.mxu0 %v4927
      %5502 = vmatpush.bf16.msra.mxu0 %v4926
      %5503 = vmatpush.bf16.msra.mxu0 %v4925
      %5504 = vmatpush.bf16.msra.mxu0 %v4924
      %5505 = vmatmul.bf16.gmra.mxu0 %v1461
      %v5506 = vpop.f32.mrf.mxu0
      %v5507 = vadd.f32 %v5478, %v5506
      %v5508 = vpop.f32.mrf.mxu0
      %v5509 = vadd.f32 %v5480, %v5508
      %5510 = vmatmul.bf16.gmra.mxu0 %v1485
      %v5511 = vpop.f32.mrf.mxu0
      %v5512 = vadd.f32 %v5483, %v5511
      %v5513 = vpop.f32.mrf.mxu0
      %v5514 = vadd.f32 %v5485, %v5513
      %5515 = vmatmul.bf16.gmra.mxu0 %v1509
      %v5516 = vpop.f32.mrf.mxu0
      %v5517 = vadd.f32 %v5488, %v5516
      %v5518 = vpop.f32.mrf.mxu0
      %v5519 = vadd.f32 %v5490, %v5518
      %5520 = vmatmul.bf16.gmra.mxu0 %v1533
      %v5521 = vpop.f32.mrf.mxu0
      %v5522 = vadd.f32 %v5493, %v5521
      %v5523 = vpop.f32.mrf.mxu0
      %v5524 = vadd.f32 %v5495, %v5523
      %5525 = vdwg.mxu0
      %5526 = vmatpush.bf16.msra.mxu0 %v4939
      %5527 = vmatpush.bf16.msra.mxu0 %v4938
      %5528 = vmatpush.bf16.msra.mxu0 %v4937
      %5529 = vmatpush.bf16.msra.mxu0 %v4936
      %5530 = vmatpush.bf16.msra.mxu0 %v4935
      %5531 = vmatpush.bf16.msra.mxu0 %v4934
      %5532 = vmatpush.bf16.msra.mxu0 %v4933
      %5533 = vmatpush.bf16.msra.mxu0 %v4932
      %5534 = vmatmul.bf16.gmra.mxu0 %v1462
      %v5535 = vpop.f32.mrf.mxu0
      %v5536 = vadd.f32 %v5507, %v5535
      %v5537 = vpop.f32.mrf.mxu0
      %v5538 = vadd.f32 %v5509, %v5537
      %5539 = vmatmul.bf16.gmra.mxu0 %v1486
      %v5540 = vpop.f32.mrf.mxu0
      %v5541 = vadd.f32 %v5512, %v5540
      %v5542 = vpop.f32.mrf.mxu0
      %v5543 = vadd.f32 %v5514, %v5542
      %5544 = vmatmul.bf16.gmra.mxu0 %v1510
      %v5545 = vpop.f32.mrf.mxu0
      %v5546 = vadd.f32 %v5517, %v5545
      %v5547 = vpop.f32.mrf.mxu0
      %v5548 = vadd.f32 %v5519, %v5547
      %5549 = vmatmul.bf16.gmra.mxu0 %v1534
      %v5550 = vpop.f32.mrf.mxu0
      %v5551 = vadd.f32 %v5522, %v5550
      %v5552 = vpop.f32.mrf.mxu0
      %v5553 = vadd.f32 %v5524, %v5552
      %5554 = vdwg.mxu0
      %5555 = vmatpush.bf16.msra.mxu0 %v4947
      %5556 = vmatpush.bf16.msra.mxu0 %v4946
      %5557 = vmatpush.bf16.msra.mxu0 %v4945
      %5558 = vmatpush.bf16.msra.mxu0 %v4944
      %5559 = vmatpush.bf16.msra.mxu0 %v4943
      %5560 = vmatpush.bf16.msra.mxu0 %v4942
      %5561 = vmatpush.bf16.msra.mxu0 %v4941
      %5562 = vmatpush.bf16.msra.mxu0 %v4940
      %5563 = vmatmul.bf16.gmra.mxu0 %v1463
      %v5564 = vpop.f32.mrf.mxu0
      %v5565 = vadd.f32 %v5536, %v5564
      %v5566 = vpop.f32.mrf.mxu0
      %v5567 = vadd.f32 %v5538, %v5566
      %5568 = vmatmul.bf16.gmra.mxu0 %v1487
      %v5569 = vpop.f32.mrf.mxu0
      %v5570 = vadd.f32 %v5541, %v5569
      %v5571 = vpop.f32.mrf.mxu0
      %v5572 = vadd.f32 %v5543, %v5571
      %5573 = vmatmul.bf16.gmra.mxu0 %v1511
      %v5574 = vpop.f32.mrf.mxu0
      %v5575 = vadd.f32 %v5546, %v5574
      %v5576 = vpop.f32.mrf.mxu0
      %v5577 = vadd.f32 %v5548, %v5576
      %5578 = vmatmul.bf16.gmra.mxu0 %v1535
      %v5579 = vpop.f32.mrf.mxu0
      %v5580 = vadd.f32 %v5551, %v5579
      %v5581 = vpop.f32.mrf.mxu0
      %v5582 = vadd.f32 %v5553, %v5581
      %5583 = vdwg.mxu0
      %5584 = vmatpush.bf16.msra.mxu0 %v4955
      %5585 = vmatpush.bf16.msra.mxu0 %v4954
      %5586 = vmatpush.bf16.msra.mxu0 %v4953
      %5587 = vmatpush.bf16.msra.mxu0 %v4952
      %5588 = vmatpush.bf16.msra.mxu0 %v4951
      %5589 = vmatpush.bf16.msra.mxu0 %v4950
      %5590 = vmatpush.bf16.msra.mxu0 %v4949
      %5591 = vmatpush.bf16.msra.mxu0 %v4948
      %5592 = vmatmul.bf16.gmra.mxu0 %v1464
      %v5593 = vpop.f32.mrf.mxu0
      %v5594 = vadd.f32 %v5565, %v5593
      %v5595 = vpop.f32.mrf.mxu0
      %v5596 = vadd.f32 %v5567, %v5595
      %5597 = vmatmul.bf16.gmra.mxu0 %v1488
      %v5598 = vpop.f32.mrf.mxu0
      %v5599 = vadd.f32 %v5570, %v5598
      %v5600 = vpop.f32.mrf.mxu0
      %v5601 = vadd.f32 %v5572, %v5600
      %5602 = vmatmul.bf16.gmra.mxu0 %v1512
      %v5603 = vpop.f32.mrf.mxu0
      %v5604 = vadd.f32 %v5575, %v5603
      %v5605 = vpop.f32.mrf.mxu0
      %v5606 = vadd.f32 %v5577, %v5605
      %5607 = vmatmul.bf16.gmra.mxu0 %v1536
      %v5608 = vpop.f32.mrf.mxu0
      %v5609 = vadd.f32 %v5580, %v5608
      %v5610 = vpop.f32.mrf.mxu0
      %v5611 = vadd.f32 %v5582, %v5610
      %5612 = vdwg.mxu0
      %5613 = vmatpush.bf16.msra.mxu0 %v4963
      %5614 = vmatpush.bf16.msra.mxu0 %v4962
      %5615 = vmatpush.bf16.msra.mxu0 %v4961
      %5616 = vmatpush.bf16.msra.mxu0 %v4960
      %5617 = vmatpush.bf16.msra.mxu0 %v4959
      %5618 = vmatpush.bf16.msra.mxu0 %v4958
      %5619 = vmatpush.bf16.msra.mxu0 %v4957
      %5620 = vmatpush.bf16.msra.mxu0 %v4956
      %5621 = vmatmul.bf16.gmra.mxu0 %v1465
      %v5622 = vpop.f32.mrf.mxu0
      %v5623 = vadd.f32 %v5594, %v5622
      %v5624 = vpop.f32.mrf.mxu0
      %v5625 = vadd.f32 %v5596, %v5624
      %5626 = vmatmul.bf16.gmra.mxu0 %v1489
      %v5627 = vpop.f32.mrf.mxu0
      %v5628 = vadd.f32 %v5599, %v5627
      %v5629 = vpop.f32.mrf.mxu0
      %v5630 = vadd.f32 %v5601, %v5629
      %5631 = vmatmul.bf16.gmra.mxu0 %v1513
      %v5632 = vpop.f32.mrf.mxu0
      %v5633 = vadd.f32 %v5604, %v5632
      %v5634 = vpop.f32.mrf.mxu0
      %v5635 = vadd.f32 %v5606, %v5634
      %5636 = vmatmul.bf16.gmra.mxu0 %v1537
      %v5637 = vpop.f32.mrf.mxu0
      %v5638 = vadd.f32 %v5609, %v5637
      %v5639 = vpop.f32.mrf.mxu0
      %v5640 = vadd.f32 %v5611, %v5639
      %5641 = vdwg.mxu0
      %5642 = vmatpush.bf16.msra.mxu0 %v4971
      %5643 = vmatpush.bf16.msra.mxu0 %v4970
      %5644 = vmatpush.bf16.msra.mxu0 %v4969
      %5645 = vmatpush.bf16.msra.mxu0 %v4968
      %5646 = vmatpush.bf16.msra.mxu0 %v4967
      %5647 = vmatpush.bf16.msra.mxu0 %v4966
      %5648 = vmatpush.bf16.msra.mxu0 %v4965
      %5649 = vmatpush.bf16.msra.mxu0 %v4964
      %5650 = vmatmul.bf16.gmra.mxu0 %v1466
      %v5651 = vpop.f32.mrf.mxu0
      %v5652 = vadd.f32 %v5623, %v5651
      %v5653 = vpop.f32.mrf.mxu0
      %v5654 = vadd.f32 %v5625, %v5653
      %5655 = vmatmul.bf16.gmra.mxu0 %v1490
      %v5656 = vpop.f32.mrf.mxu0
      %v5657 = vadd.f32 %v5628, %v5656
      %v5658 = vpop.f32.mrf.mxu0
      %v5659 = vadd.f32 %v5630, %v5658
      %5660 = vmatmul.bf16.gmra.mxu0 %v1514
      %v5661 = vpop.f32.mrf.mxu0
      %v5662 = vadd.f32 %v5633, %v5661
      %v5663 = vpop.f32.mrf.mxu0
      %v5664 = vadd.f32 %v5635, %v5663
      %5665 = vmatmul.bf16.gmra.mxu0 %v1538
      %v5666 = vpop.f32.mrf.mxu0
      %v5667 = vadd.f32 %v5638, %v5666
      %v5668 = vpop.f32.mrf.mxu0
      %v5669 = vadd.f32 %v5640, %v5668
      %5670 = vdwg.mxu0
      %5671 = vmatpush.bf16.msra.mxu0 %v4979
      %5672 = vmatpush.bf16.msra.mxu0 %v4978
      %5673 = vmatpush.bf16.msra.mxu0 %v4977
      %5674 = vmatpush.bf16.msra.mxu0 %v4976
      %5675 = vmatpush.bf16.msra.mxu0 %v4975
      %5676 = vmatpush.bf16.msra.mxu0 %v4974
      %5677 = vmatpush.bf16.msra.mxu0 %v4973
      %5678 = vmatpush.bf16.msra.mxu0 %v4972
      %5679 = vmatmul.bf16.gmra.mxu0 %v1467
      %v5680 = vpop.f32.mrf.mxu0
      %v5681 = vadd.f32 %v5652, %v5680
      %v5682 = vpop.f32.mrf.mxu0
      %v5683 = vadd.f32 %v5654, %v5682
      %5684 = vmatmul.bf16.gmra.mxu0 %v1491
      %v5685 = vpop.f32.mrf.mxu0
      %v5686 = vadd.f32 %v5657, %v5685
      %v5687 = vpop.f32.mrf.mxu0
      %v5688 = vadd.f32 %v5659, %v5687
      %5689 = vmatmul.bf16.gmra.mxu0 %v1515
      %v5690 = vpop.f32.mrf.mxu0
      %v5691 = vadd.f32 %v5662, %v5690
      %v5692 = vpop.f32.mrf.mxu0
      %v5693 = vadd.f32 %v5664, %v5692
      %5694 = vmatmul.bf16.gmra.mxu0 %v1539
      %v5695 = vpop.f32.mrf.mxu0
      %v5696 = vadd.f32 %v5667, %v5695
      %v5697 = vpop.f32.mrf.mxu0
      %v5698 = vadd.f32 %v5669, %v5697
      %5699 = vdwg.mxu0
      %5700 = vmatpush.bf16.msra.mxu0 %v4987
      %5701 = vmatpush.bf16.msra.mxu0 %v4986
      %5702 = vmatpush.bf16.msra.mxu0 %v4985
      %5703 = vmatpush.bf16.msra.mxu0 %v4984
      %5704 = vmatpush.bf16.msra.mxu0 %v4983
      %5705 = vmatpush.bf16.msra.mxu0 %v4982
      %5706 = vmatpush.bf16.msra.mxu0 %v4981
      %5707 = vmatpush.bf16.msra.mxu0 %v4980
      %5708 = vmatmul.bf16.gmra.mxu0 %v1468
      %v5709 = vpop.f32.mrf.mxu0
      %v5710 = vadd.f32 %v5681, %v5709
      %v5711 = vpop.f32.mrf.mxu0
      %v5712 = vadd.f32 %v5683, %v5711
      %5713 = vmatmul.bf16.gmra.mxu0 %v1492
      %v5714 = vpop.f32.mrf.mxu0
      %v5715 = vadd.f32 %v5686, %v5714
      %v5716 = vpop.f32.mrf.mxu0
      %v5717 = vadd.f32 %v5688, %v5716
      %5718 = vmatmul.bf16.gmra.mxu0 %v1516
      %v5719 = vpop.f32.mrf.mxu0
      %v5720 = vadd.f32 %v5691, %v5719
      %v5721 = vpop.f32.mrf.mxu0
      %v5722 = vadd.f32 %v5693, %v5721
      %5723 = vmatmul.bf16.gmra.mxu0 %v1540
      %v5724 = vpop.f32.mrf.mxu0
      %v5725 = vadd.f32 %v5696, %v5724
      %v5726 = vpop.f32.mrf.mxu0
      %v5727 = vadd.f32 %v5698, %v5726
      %5728 = vdwg.mxu0
      %5729 = vmatpush.bf16.msra.mxu0 %v4995
      %5730 = vmatpush.bf16.msra.mxu0 %v4994
      %5731 = vmatpush.bf16.msra.mxu0 %v4993
      %5732 = vmatpush.bf16.msra.mxu0 %v4992
      %5733 = vmatpush.bf16.msra.mxu0 %v4991
      %5734 = vmatpush.bf16.msra.mxu0 %v4990
      %5735 = vmatpush.bf16.msra.mxu0 %v4989
      %5736 = vmatpush.bf16.msra.mxu0 %v4988
      %5737 = vmatmul.bf16.gmra.mxu0 %v1469
      %v5738 = vpop.f32.mrf.mxu0
      %v5739 = vadd.f32 %v5710, %v5738
      %v5740 = vpop.f32.mrf.mxu0
      %v5741 = vadd.f32 %v5712, %v5740
      %5742 = vmatmul.bf16.gmra.mxu0 %v1493
      %v5743 = vpop.f32.mrf.mxu0
      %v5744 = vadd.f32 %v5715, %v5743
      %v5745 = vpop.f32.mrf.mxu0
      %v5746 = vadd.f32 %v5717, %v5745
      %5747 = vmatmul.bf16.gmra.mxu0 %v1517
      %v5748 = vpop.f32.mrf.mxu0
      %v5749 = vadd.f32 %v5720, %v5748
      %v5750 = vpop.f32.mrf.mxu0
      %v5751 = vadd.f32 %v5722, %v5750
      %5752 = vmatmul.bf16.gmra.mxu0 %v1541
      %v5753 = vpop.f32.mrf.mxu0
      %v5754 = vadd.f32 %v5725, %v5753
      %v5755 = vpop.f32.mrf.mxu0
      %v5756 = vadd.f32 %v5727, %v5755
      %5757 = vdwg.mxu0
      %5758 = vmatpush.bf16.msra.mxu0 %v5003
      %5759 = vmatpush.bf16.msra.mxu0 %v5002
      %5760 = vmatpush.bf16.msra.mxu0 %v5001
      %5761 = vmatpush.bf16.msra.mxu0 %v5000
      %5762 = vmatpush.bf16.msra.mxu0 %v4999
      %5763 = vmatpush.bf16.msra.mxu0 %v4998
      %5764 = vmatpush.bf16.msra.mxu0 %v4997
      %5765 = vmatpush.bf16.msra.mxu0 %v4996
      %5766 = vmatmul.bf16.gmra.mxu0 %v1470
      %v5767 = vpop.f32.mrf.mxu0
      %v5768 = vadd.f32 %v5739, %v5767
      %v5769 = vpop.f32.mrf.mxu0
      %v5770 = vadd.f32 %v5741, %v5769
      %5771 = vmatmul.bf16.gmra.mxu0 %v1494
      %v5772 = vpop.f32.mrf.mxu0
      %v5773 = vadd.f32 %v5744, %v5772
      %v5774 = vpop.f32.mrf.mxu0
      %v5775 = vadd.f32 %v5746, %v5774
      %5776 = vmatmul.bf16.gmra.mxu0 %v1518
      %v5777 = vpop.f32.mrf.mxu0
      %v5778 = vadd.f32 %v5749, %v5777
      %v5779 = vpop.f32.mrf.mxu0
      %v5780 = vadd.f32 %v5751, %v5779
      %5781 = vmatmul.bf16.gmra.mxu0 %v1542
      %v5782 = vpop.f32.mrf.mxu0
      %v5783 = vadd.f32 %v5754, %v5782
      %v5784 = vpop.f32.mrf.mxu0
      %v5785 = vadd.f32 %v5756, %v5784
      %5786 = vdwg.mxu0
      %5787 = vmatpush.bf16.msra.mxu0 %v5011
      %5788 = vmatpush.bf16.msra.mxu0 %v5010
      %5789 = vmatpush.bf16.msra.mxu0 %v5009
      %5790 = vmatpush.bf16.msra.mxu0 %v5008
      %5791 = vmatpush.bf16.msra.mxu0 %v5007
      %5792 = vmatpush.bf16.msra.mxu0 %v5006
      %5793 = vmatpush.bf16.msra.mxu0 %v5005
      %5794 = vmatpush.bf16.msra.mxu0 %v5004
      %5795 = vmatmul.bf16.gmra.mxu0 %v1471
      %v5796 = vpop.f32.mrf.mxu0
      %v5797 = vadd.f32 %v5768, %v5796
      %v5798 = vpop.f32.mrf.mxu0
      %v5799 = vadd.f32 %v5770, %v5798
      %5800 = vmatmul.bf16.gmra.mxu0 %v1495
      %v5801 = vpop.f32.mrf.mxu0
      %v5802 = vadd.f32 %v5773, %v5801
      %v5803 = vpop.f32.mrf.mxu0
      %v5804 = vadd.f32 %v5775, %v5803
      %5805 = vmatmul.bf16.gmra.mxu0 %v1519
      %v5806 = vpop.f32.mrf.mxu0
      %v5807 = vadd.f32 %v5778, %v5806
      %v5808 = vpop.f32.mrf.mxu0
      %v5809 = vadd.f32 %v5780, %v5808
      %5810 = vmatmul.bf16.gmra.mxu0 %v1543
      %v5811 = vpop.f32.mrf.mxu0
      %v5812 = vadd.f32 %v5783, %v5811
      %v5813 = vpop.f32.mrf.mxu0
      %v5814 = vadd.f32 %v5785, %v5813
      %5815 = vdwg.mxu0
      %5816 = vmatpush.bf16.msra.mxu0 %v5019
      %5817 = vmatpush.bf16.msra.mxu0 %v5018
      %5818 = vmatpush.bf16.msra.mxu0 %v5017
      %5819 = vmatpush.bf16.msra.mxu0 %v5016
      %5820 = vmatpush.bf16.msra.mxu0 %v5015
      %5821 = vmatpush.bf16.msra.mxu0 %v5014
      %5822 = vmatpush.bf16.msra.mxu0 %v5013
      %5823 = vmatpush.bf16.msra.mxu0 %v5012
      %5824 = vmatmul.bf16.gmra.mxu0 %v1472
      %v5825 = vpop.f32.mrf.mxu0
      %v5826 = vadd.f32 %v5797, %v5825
      %v5827 = vpop.f32.mrf.mxu0
      %v5828 = vadd.f32 %v5799, %v5827
      %5829 = vmatmul.bf16.gmra.mxu0 %v1496
      %v5830 = vpop.f32.mrf.mxu0
      %v5831 = vadd.f32 %v5802, %v5830
      %v5832 = vpop.f32.mrf.mxu0
      %v5833 = vadd.f32 %v5804, %v5832
      %5834 = vmatmul.bf16.gmra.mxu0 %v1520
      %v5835 = vpop.f32.mrf.mxu0
      %v5836 = vadd.f32 %v5807, %v5835
      %v5837 = vpop.f32.mrf.mxu0
      %v5838 = vadd.f32 %v5809, %v5837
      %5839 = vmatmul.bf16.gmra.mxu0 %v1544
      %v5840 = vpop.f32.mrf.mxu0
      %v5841 = vadd.f32 %v5812, %v5840
      %v5842 = vpop.f32.mrf.mxu0
      %v5843 = vadd.f32 %v5814, %v5842
      %5844 = vdwg.mxu0
      %5845 = vmatpush.bf16.msra.mxu0 %v5027
      %5846 = vmatpush.bf16.msra.mxu0 %v5026
      %5847 = vmatpush.bf16.msra.mxu0 %v5025
      %5848 = vmatpush.bf16.msra.mxu0 %v5024
      %5849 = vmatpush.bf16.msra.mxu0 %v5023
      %5850 = vmatpush.bf16.msra.mxu0 %v5022
      %5851 = vmatpush.bf16.msra.mxu0 %v5021
      %5852 = vmatpush.bf16.msra.mxu0 %v5020
      %5853 = vmatmul.bf16.gmra.mxu0 %v1473
      %v5854 = vpop.f32.mrf.mxu0
      %v5855 = vadd.f32 %v5826, %v5854
      %v5856 = vpop.f32.mrf.mxu0
      %v5857 = vadd.f32 %v5828, %v5856
      %5858 = vmatmul.bf16.gmra.mxu0 %v1497
      %v5859 = vpop.f32.mrf.mxu0
      %v5860 = vadd.f32 %v5831, %v5859
      %v5861 = vpop.f32.mrf.mxu0
      %v5862 = vadd.f32 %v5833, %v5861
      %5863 = vmatmul.bf16.gmra.mxu0 %v1521
      %v5864 = vpop.f32.mrf.mxu0
      %v5865 = vadd.f32 %v5836, %v5864
      %v5866 = vpop.f32.mrf.mxu0
      %v5867 = vadd.f32 %v5838, %v5866
      %5868 = vmatmul.bf16.gmra.mxu0 %v1545
      %v5869 = vpop.f32.mrf.mxu0
      %v5870 = vadd.f32 %v5841, %v5869
      %v5871 = vpop.f32.mrf.mxu0
      %v5872 = vadd.f32 %v5843, %v5871
      %5873 = vdwg.mxu0
      %5874 = vmatpush.bf16.msra.mxu0 %v5035
      %5875 = vmatpush.bf16.msra.mxu0 %v5034
      %5876 = vmatpush.bf16.msra.mxu0 %v5033
      %5877 = vmatpush.bf16.msra.mxu0 %v5032
      %5878 = vmatpush.bf16.msra.mxu0 %v5031
      %5879 = vmatpush.bf16.msra.mxu0 %v5030
      %5880 = vmatpush.bf16.msra.mxu0 %v5029
      %5881 = vmatpush.bf16.msra.mxu0 %v5028
      %5882 = vmatmul.bf16.gmra.mxu0 %v1474
      %v5883 = vpop.f32.mrf.mxu0
      %v5884 = vadd.f32 %v5855, %v5883
      %v5885 = vpop.f32.mrf.mxu0
      %v5886 = vadd.f32 %v5857, %v5885
      %5887 = vmatmul.bf16.gmra.mxu0 %v1498
      %v5888 = vpop.f32.mrf.mxu0
      %v5889 = vadd.f32 %v5860, %v5888
      %v5890 = vpop.f32.mrf.mxu0
      %v5891 = vadd.f32 %v5862, %v5890
      %5892 = vmatmul.bf16.gmra.mxu0 %v1522
      %v5893 = vpop.f32.mrf.mxu0
      %v5894 = vadd.f32 %v5865, %v5893
      %v5895 = vpop.f32.mrf.mxu0
      %v5896 = vadd.f32 %v5867, %v5895
      %5897 = vmatmul.bf16.gmra.mxu0 %v1546
      %v5898 = vpop.f32.mrf.mxu0
      %v5899 = vadd.f32 %v5870, %v5898
      %v5900 = vpop.f32.mrf.mxu0
      %v5901 = vadd.f32 %v5872, %v5900
      %5902 = vdwg.mxu0
      %5903 = vmatpush.bf16.msra.mxu0 %v5043
      %5904 = vmatpush.bf16.msra.mxu0 %v5042
      %5905 = vmatpush.bf16.msra.mxu0 %v5041
      %5906 = vmatpush.bf16.msra.mxu0 %v5040
      %5907 = vmatpush.bf16.msra.mxu0 %v5039
      %5908 = vmatpush.bf16.msra.mxu0 %v5038
      %5909 = vmatpush.bf16.msra.mxu0 %v5037
      %5910 = vmatpush.bf16.msra.mxu0 %v5036
      %5911 = vmatmul.bf16.gmra.mxu0 %v1475
      %v5912 = vpop.f32.mrf.mxu0
      %v5913 = vadd.f32 %v5884, %v5912
      %v5914 = vpop.f32.mrf.mxu0
      %v5915 = vadd.f32 %v5886, %v5914
      %5916 = vmatmul.bf16.gmra.mxu0 %v1499
      %v5917 = vpop.f32.mrf.mxu0
      %v5918 = vadd.f32 %v5889, %v5917
      %v5919 = vpop.f32.mrf.mxu0
      %v5920 = vadd.f32 %v5891, %v5919
      %5921 = vmatmul.bf16.gmra.mxu0 %v1523
      %v5922 = vpop.f32.mrf.mxu0
      %v5923 = vadd.f32 %v5894, %v5922
      %v5924 = vpop.f32.mrf.mxu0
      %v5925 = vadd.f32 %v5896, %v5924
      %5926 = vmatmul.bf16.gmra.mxu0 %v1547
      %v5927 = vpop.f32.mrf.mxu0
      %v5928 = vadd.f32 %v5899, %v5927
      %v5929 = vpop.f32.mrf.mxu0
      %v5930 = vadd.f32 %v5901, %v5929
      %5931 = vdwg.mxu0
      %v5932 = vmax.f32 %v5913, 0.0
      %v5933 = vmax.f32 %v5915, 0.0
      %v5934 = vmax.f32 %v5918, 0.0
      %v5935 = vmax.f32 %v5920, 0.0
      %v5936 = vmax.f32 %v5923, 0.0
      %v5937 = vmax.f32 %v5925, 0.0
      %v5938 = vmax.f32 %v5928, 0.0
      %v5939 = vmax.f32 %v5930, 0.0
      %v5940 = vpack.c.bf16 %v5933, %v5932
      %v5941 = vpack.c.bf16 %v5935, %v5934
      %v5942 = vpack.c.bf16 %v5937, %v5936
      %v5943 = vpack.c.bf16 %v5939, %v5938
      %5944 = vmatpush.bf16.msra.mxu0 0
      %5945 = vmatpush.bf16.msra.mxu0 0
      %5946 = vmatpush.bf16.msra.mxu0 0
      %5947 = vmatpush.bf16.msra.mxu0 0
      %5948 = vmatpush.bf16.msra.mxu0 %v5943
      %5949 = vmatpush.bf16.msra.mxu0 %v5942
      %5950 = vmatpush.bf16.msra.mxu0 %v5941
      %5951 = vmatpush.bf16.msra.mxu0 %v5940
      %5952 = vmatmul.bf16.gmra.mxu0 %v3510
      %v5953 = vpop.f32.mrf.mxu0
      %v5954 = vadd.f32 0.0, %v5953
      %v5955 = vpop.f32.mrf.mxu0
      %v5956 = vadd.f32 0.0, %v5955
      %5957 = vdwg.mxu0
      %v5958 = vmul.f32 %v5954, %v760
      %v5959 = vmul.f32 %v5956, %v775
      %v5960 = vpack.c.bf16 %v5959, %v5958
      %v5961 = vld [vmem:[%s10] sm:$0xf]
      %v5962 = vld [vmem:[%s10 + $0x4] sm:$0xf]
      %v5963 = vld [vmem:[%s10 + $0x8] sm:$0xf]
      %v5964 = vld [vmem:[%s10 + $0xc] sm:$0xf]
      %v5965 = vld [vmem:[%s10 + $0x10] sm:$0xf]
      %v5966 = vld [vmem:[%s10 + $0x14] sm:$0xf]
      %v5967 = vld [vmem:[%s10 + $0x18] sm:$0xf]
      %v5968 = vld [vmem:[%s10 + $0x1c] sm:$0xf]
      %v5969 = vld [vmem:[%s10 + $0x20] sm:$0xf]
      %v5970 = vld [vmem:[%s10 + $0x24] sm:$0xf]
      %v5971 = vld [vmem:[%s10 + $0x28] sm:$0xf]
      %v5972 = vld [vmem:[%s10 + $0x2c] sm:$0xf]
      %v5973 = vld [vmem:[%s10 + $0x30] sm:$0xf]
      %v5974 = vld [vmem:[%s10 + $0x34] sm:$0xf]
      %v5975 = vld [vmem:[%s10 + $0x38] sm:$0xf]
      %v5976 = vld [vmem:[%s10 + $0x3c] sm:$0xf]
      %v5977 = vld [vmem:[%s11] sm:$0x1]
      %v5979 = vperm.slane %v5977, 0
      %v5997 = vunpack.c.l.b16 %v5961
      %v5998 = vunpack.c.l.b16 %v5962
      %v5999 = vunpack.c.l.b16 %v5963
      %v6000 = vunpack.c.l.b16 %v5964
      %v6001 = vunpack.c.l.b16 %v5965
      %v6002 = vunpack.c.l.b16 %v5966
      %v6003 = vunpack.c.l.b16 %v5967
      %v6004 = vunpack.c.l.b16 %v5968
      %v6005 = vunpack.c.l.b16 %v5969
      %v6006 = vunpack.c.l.b16 %v5970
      %v6007 = vunpack.c.l.b16 %v5971
      %v6008 = vunpack.c.l.b16 %v5972
      %v6009 = vunpack.c.l.b16 %v5973
      %v6010 = vunpack.c.l.b16 %v5974
      %v6011 = vunpack.c.l.b16 %v5975
      %v6012 = vunpack.c.l.b16 %v5976
      %v6013 = vpack.c.b16 %v5998, %v5997
      %v6014 = vpack.c.b16 %v6000, %v5999
      %v6015 = vpack.c.b16 %v6002, %v6001
      %v6016 = vpack.c.b16 %v6004, %v6003
      %v6017 = vpack.c.b16 %v6006, %v6005
      %v6018 = vpack.c.b16 %v6008, %v6007
      %v6019 = vpack.c.b16 %v6010, %v6009
      %v6020 = vpack.c.b16 %v6012, %v6011
      %6029 = vmatpush.bf16.msra.mxu0 %v6020
      %6030 = vmatpush.bf16.msra.mxu0 %v6019
      %6031 = vmatpush.bf16.msra.mxu0 %v6018
      %6032 = vmatpush.bf16.msra.mxu0 %v6017
      %6033 = vmatpush.bf16.msra.mxu0 %v6016
      %6034 = vmatpush.bf16.msra.mxu0 %v6015
      %6035 = vmatpush.bf16.msra.mxu0 %v6014
      %6036 = vmatpush.bf16.msra.mxu0 %v6013
      %6037 = vmatmul.bf16.gmra.mxu0 %v5960
      %v6038 = vpop.f32.mrf.mxu0
      %v6039 = vadd.f32 %v5979, %v6038
      %v6040 = vpop.f32.mrf.mxu0
      %v6041 = vadd.f32 %v5979, %v6040
      %6042 = vdwg.mxu0
      %v6043 = vmax.f32 %v6039, 0.0
      %v6044 = vmax.f32 %v6041, 0.0
      %v6045 = vpack.c.bf16 %v6044, %v6043
      %v6046 = vld [vmem:[%s12] sm:$0xf]
      %v6047 = vld [vmem:[%s12 + $0x4] sm:$0xf]
      %v6048 = vld [vmem:[%s12 + $0x8] sm:$0xf]
      %v6049 = vld [vmem:[%s12 + $0xc] sm:$0xf]
      %v6050 = vld [vmem:[%s12 + $0x10] sm:$0xf]
      %v6051 = vld [vmem:[%s12 + $0x14] sm:$0xf]
      %v6052 = vld [vmem:[%s12 + $0x18] sm:$0xf]
      %v6053 = vld [vmem:[%s12 + $0x1c] sm:$0xf]
      %v6054 = vld [vmem:[%s12 + $0x20] sm:$0xf]
      %v6055 = vld [vmem:[%s12 + $0x24] sm:$0xf]
      %v6056 = vld [vmem:[%s12 + $0x28] sm:$0xf]
      %v6057 = vld [vmem:[%s12 + $0x2c] sm:$0xf]
      %v6058 = vld [vmem:[%s12 + $0x30] sm:$0xf]
      %v6059 = vld [vmem:[%s12 + $0x34] sm:$0xf]
      %v6060 = vld [vmem:[%s12 + $0x38] sm:$0xf]
      %v6061 = vld [vmem:[%s12 + $0x3c] sm:$0xf]
      %v6062 = vld [vmem:[%s13] sm:$0x1]
      %v6064 = vperm.slane %v6062, 0
      %v6082 = vunpack.c.l.b16 %v6046
      %v6083 = vunpack.c.l.b16 %v6047
      %v6084 = vunpack.c.l.b16 %v6048
      %v6085 = vunpack.c.l.b16 %v6049
      %v6086 = vunpack.c.l.b16 %v6050
      %v6087 = vunpack.c.l.b16 %v6051
      %v6088 = vunpack.c.l.b16 %v6052
      %v6089 = vunpack.c.l.b16 %v6053
      %v6090 = vunpack.c.l.b16 %v6054
      %v6091 = vunpack.c.l.b16 %v6055
      %v6092 = vunpack.c.l.b16 %v6056
      %v6093 = vunpack.c.l.b16 %v6057
      %v6094 = vunpack.c.l.b16 %v6058
      %v6095 = vunpack.c.l.b16 %v6059
      %v6096 = vunpack.c.l.b16 %v6060
      %v6097 = vunpack.c.l.b16 %v6061
      %v6098 = vpack.c.b16 %v6083, %v6082
      %v6099 = vpack.c.b16 %v6085, %v6084
      %v6100 = vpack.c.b16 %v6087, %v6086
      %v6101 = vpack.c.b16 %v6089, %v6088
      %v6102 = vpack.c.b16 %v6091, %v6090
      %v6103 = vpack.c.b16 %v6093, %v6092
      %v6104 = vpack.c.b16 %v6095, %v6094
      %v6105 = vpack.c.b16 %v6097, %v6096
      %6114 = vmatpush.bf16.msra.mxu0 %v6105
      %6115 = vmatpush.bf16.msra.mxu0 %v6104
      %6116 = vmatpush.bf16.msra.mxu0 %v6103
      %6117 = vmatpush.bf16.msra.mxu0 %v6102
      %6118 = vmatpush.bf16.msra.mxu0 %v6101
      %6119 = vmatpush.bf16.msra.mxu0 %v6100
      %6120 = vmatpush.bf16.msra.mxu0 %v6099
      %6121 = vmatpush.bf16.msra.mxu0 %v6098
      %6122 = vmatmul.bf16.gmra.mxu0 %v6045
      %v6123 = vpop.f32.mrf.mxu0
      %v6124 = vadd.f32 %v6064, %v6123
      %v6125 = vpop.f32.mrf.mxu0
      %v6126 = vadd.f32 %v6064, %v6125
      %6127 = vdwg.mxu0
      %6128 = vst [vmem:[%s635] sm:$0xff] %v6124
      %6129 = vst [vmem:[%s635 + $0x8] sm:$0xff] %v6126
      %v6130 = vpack.c.bf16 %v3694, %v3692
      %v6131 = vld [vmem:[%s14] sm:$0xf]
      %v6132 = vld [vmem:[%s14 + $0x4] sm:$0xf]
      %v6133 = vld [vmem:[%s14 + $0x8] sm:$0xf]
      %v6134 = vld [vmem:[%s14 + $0xc] sm:$0xf]
      %v6135 = vld [vmem:[%s14 + $0x10] sm:$0xf]
      %v6136 = vld [vmem:[%s14 + $0x14] sm:$0xf]
      %v6137 = vld [vmem:[%s14 + $0x18] sm:$0xf]
      %v6138 = vld [vmem:[%s14 + $0x1c] sm:$0xf]
      %v6139 = vld [vmem:[%s14 + $0x20] sm:$0xf]
      %v6140 = vld [vmem:[%s14 + $0x24] sm:$0xf]
      %v6141 = vld [vmem:[%s14 + $0x28] sm:$0xf]
      %v6142 = vld [vmem:[%s14 + $0x2c] sm:$0xf]
      %v6143 = vld [vmem:[%s14 + $0x30] sm:$0xf]
      %v6144 = vld [vmem:[%s14 + $0x34] sm:$0xf]
      %v6145 = vld [vmem:[%s14 + $0x38] sm:$0xf]
      %v6146 = vld [vmem:[%s14 + $0x3c] sm:$0xf]
      %v6147 = vld [vmem:[%s15] sm:$0x1]
      %v6149 = vperm.slane %v6147, 0
      %v6167 = vunpack.c.l.b16 %v6131
      %v6168 = vunpack.c.l.b16 %v6132
      %v6169 = vunpack.c.l.b16 %v6133
      %v6170 = vunpack.c.l.b16 %v6134
      %v6171 = vunpack.c.l.b16 %v6135
      %v6172 = vunpack.c.l.b16 %v6136
      %v6173 = vunpack.c.l.b16 %v6137
      %v6174 = vunpack.c.l.b16 %v6138
      %v6175 = vunpack.c.l.b16 %v6139
      %v6176 = vunpack.c.l.b16 %v6140
      %v6177 = vunpack.c.l.b16 %v6141
      %v6178 = vunpack.c.l.b16 %v6142
      %v6179 = vunpack.c.l.b16 %v6143
      %v6180 = vunpack.c.l.b16 %v6144
      %v6181 = vunpack.c.l.b16 %v6145
      %v6182 = vunpack.c.l.b16 %v6146
      %v6183 = vpack.c.b16 %v6168, %v6167
      %v6184 = vpack.c.b16 %v6170, %v6169
      %v6185 = vpack.c.b16 %v6172, %v6171
      %v6186 = vpack.c.b16 %v6174, %v6173
      %v6187 = vpack.c.b16 %v6176, %v6175
      %v6188 = vpack.c.b16 %v6178, %v6177
      %v6189 = vpack.c.b16 %v6180, %v6179
      %v6190 = vpack.c.b16 %v6182, %v6181
      %6199 = vmatpush.bf16.msra.mxu0 %v6190
      %6200 = vmatpush.bf16.msra.mxu0 %v6189
      %6201 = vmatpush.bf16.msra.mxu0 %v6188
      %6202 = vmatpush.bf16.msra.mxu0 %v6187
      %6203 = vmatpush.bf16.msra.mxu0 %v6186
      %6204 = vmatpush.bf16.msra.mxu0 %v6185
      %6205 = vmatpush.bf16.msra.mxu0 %v6184
      %6206 = vmatpush.bf16.msra.mxu0 %v6183
      %6207 = vmatmul.bf16.gmra.mxu0 %v6130
      %v6208 = vpop.f32.mrf.mxu0
      %v6209 = vadd.f32 %v6149, %v6208
      %v6210 = vpop.f32.mrf.mxu0
      %v6211 = vadd.f32 %v6149, %v6210
      %6212 = vdwg.mxu0
      %v6213 = vmax.f32 %v6209, 0.0
      %v6214 = vmax.f32 %v6211, 0.0
      %v6215 = vpack.c.bf16 %v6214, %v6213
      %v6216 = vld [vmem:[%s16] sm:$0xf]
      %v6217 = vld [vmem:[%s16 + $0x4] sm:$0xf]
      %v6218 = vld [vmem:[%s16 + $0x8] sm:$0xf]
      %v6219 = vld [vmem:[%s16 + $0xc] sm:$0xf]
      %v6220 = vld [vmem:[%s16 + $0x10] sm:$0xf]
      %v6221 = vld [vmem:[%s16 + $0x14] sm:$0xf]
      %v6222 = vld [vmem:[%s16 + $0x18] sm:$0xf]
      %v6223 = vld [vmem:[%s16 + $0x1c] sm:$0xf]
      %v6224 = vld [vmem:[%s16 + $0x20] sm:$0xf]
      %v6225 = vld [vmem:[%s16 + $0x24] sm:$0xf]
      %v6226 = vld [vmem:[%s16 + $0x28] sm:$0xf]
      %v6227 = vld [vmem:[%s16 + $0x2c] sm:$0xf]
      %v6228 = vld [vmem:[%s16 + $0x30] sm:$0xf]
      %v6229 = vld [vmem:[%s16 + $0x34] sm:$0xf]
      %v6230 = vld [vmem:[%s16 + $0x38] sm:$0xf]
      %v6231 = vld [vmem:[%s16 + $0x3c] sm:$0xf]
      %v6232 = vld [vmem:[%s17] sm:$0x1]
      %v6234 = vperm.slane %v6232, 0
      %v6252 = vunpack.c.l.b16 %v6216
      %v6253 = vunpack.c.l.b16 %v6217
      %v6254 = vunpack.c.l.b16 %v6218
      %v6255 = vunpack.c.l.b16 %v6219
      %v6256 = vunpack.c.l.b16 %v6220
      %v6257 = vunpack.c.l.b16 %v6221
      %v6258 = vunpack.c.l.b16 %v6222
      %v6259 = vunpack.c.l.b16 %v6223
      %v6260 = vunpack.c.l.b16 %v6224
      %v6261 = vunpack.c.l.b16 %v6225
      %v6262 = vunpack.c.l.b16 %v6226
      %v6263 = vunpack.c.l.b16 %v6227
      %v6264 = vunpack.c.l.b16 %v6228
      %v6265 = vunpack.c.l.b16 %v6229
      %v6266 = vunpack.c.l.b16 %v6230
      %v6267 = vunpack.c.l.b16 %v6231
      %v6268 = vpack.c.b16 %v6253, %v6252
      %v6269 = vpack.c.b16 %v6255, %v6254
      %v6270 = vpack.c.b16 %v6257, %v6256
      %v6271 = vpack.c.b16 %v6259, %v6258
      %v6272 = vpack.c.b16 %v6261, %v6260
      %v6273 = vpack.c.b16 %v6263, %v6262
      %v6274 = vpack.c.b16 %v6265, %v6264
      %v6275 = vpack.c.b16 %v6267, %v6266
      %6284 = vmatpush.bf16.msra.mxu0 %v6275
      %6285 = vmatpush.bf16.msra.mxu0 %v6274
      %6286 = vmatpush.bf16.msra.mxu0 %v6273
      %6287 = vmatpush.bf16.msra.mxu0 %v6272
      %6288 = vmatpush.bf16.msra.mxu0 %v6271
      %6289 = vmatpush.bf16.msra.mxu0 %v6270
      %6290 = vmatpush.bf16.msra.mxu0 %v6269
      %6291 = vmatpush.bf16.msra.mxu0 %v6268
      %6292 = vmatmul.bf16.gmra.mxu0 %v6215
      %v6293 = vpop.f32.mrf.mxu0
      %v6294 = vadd.f32 %v6234, %v6293
      %v6295 = vpop.f32.mrf.mxu0
      %v6296 = vadd.f32 %v6234, %v6295
      %6297 = vdwg.mxu0
      %6298 = vst [vmem:[%s630] sm:$0xff] %v6294
      %6299 = vst [vmem:[%s630 + $0x8] sm:$0xff] %v6296
      %p6300 = scmp.lt.s32.totalorder %s31, 3
      %s6301 = scalar_select %p6300, %s31, 3
      %s6302 = smul.addr %s6301, 2
      %s6303 = smul.addr %s6302, 8
      %s6304 = scalar_lea.vmem %s18, %s6303
      %p6305 = scmp.lt.s32.totalorder %s31, 3
      %s6306 = scalar_select %p6305, %s31, 3
      %s6307 = smul.addr %s6306, 2
      %s6308 = smul.addr %s6307, 8
      %s6309 = scalar_lea.vmem %s19, %s6308
      // Predicated region
      $region93: #{r2o_forward.1} parent=91 // pred_check
        %p6310 = pneg %p437
      $region94: #{r2o_forward.1} parent=91 // pred_check_branch
        %6312 = sbr.rel (%p6310) target = $region96
      $region95: #{r2o_forward.1} parent=91 // pred_region
        _
      $region96: #{r2o_forward.1} parent=91 // pred_fallthru
        _
      // Predicated region
      $region97: #{r2o_forward.1} parent=91 // pred_check
        %p6313 = pneg %p463
      $region98: #{r2o_forward.1} parent=91 // pred_check_branch
        %6315 = sbr.rel (%p6313) target = $region100
      $region99: #{r2o_forward.1} parent=91 // pred_region
        _
      $region100: #{r2o_forward.1} parent=91 // pred_fallthru
        _
    $region92: #{r2o_forward.1} parent=5 // pred_fallthru
      _
    %p6316 = scmp.le.s32.totalorder 2, %s26
    // Predicated region
    $region101: #{r2o_forward.1} parent=5 // pred_check
      %p6317 = pneg %p6316
    $region102: #{r2o_forward.1} parent=5 // pred_check_branch
      %6319 = sbr.rel (%p6317) target = $region104
    $region103: #{r2o_forward.1} parent=5 // pred_region
      %s6320 = ssub.s32 %s26, 2
      // Predicated region
      $region105: #{r2o_forward.1} parent=103 // pred_check
        %p6321 = pneg %p443
      $region106: #{r2o_forward.1} parent=103 // pred_check_branch
        %6323 = sbr.rel (%p6321) target = $region108
      $region107: #{r2o_forward.1} parent=103 // pred_region
        %p6324 = scmp.lt.s32.totalorder %s32, 3
        %s6325 = scalar_select %p6324, %s32, 3
        %s6326 = smul.addr %s6325, 2
        %s6327 = smul.addr %s6326, 8
        %s6328 = scalar_lea.vmem %s18, %s6327
      $region108: #{r2o_forward.1} parent=103 // pred_fallthru
        _
      // Predicated region
      $region109: #{r2o_forward.1} parent=103 // pred_check
        %p6329 = pneg %p469
      $region110: #{r2o_forward.1} parent=103 // pred_check_branch
        %6331 = sbr.rel (%p6329) target = $region112
      $region111: #{r2o_forward.1} parent=103 // pred_region
        %p6332 = scmp.lt.s32.totalorder %s32, 3
        %s6333 = scalar_select %p6332, %s32, 3
        %s6334 = smul.addr %s6333, 2
        %s6335 = smul.addr %s6334, 8
        %s6336 = scalar_lea.vmem %s19, %s6335
      $region112: #{r2o_forward.1} parent=103 // pred_fallthru
        _
    $region104: #{r2o_forward.1} parent=5 // pred_fallthru
      _
  $region6: #{r2o_forward.1} parent=0 // loop_footer
    %s30 = sadd.s32 1, %s26
  $region7: #{r2o_forward.1} parent=0 // loop_footer_branch
    %25 = sbr.rel target = $region3
  $region8: #{r2o_forward.1} parent=0 // loop_exit
    _

</llo_original>
